<compile_context>
chip_gen: v7x
topology: tpu7x:2x2x1
jax: 0.10.0
libtpu: 0.0.40
codegen_flags: <defaults>
</compile_context>

<pallas_src>
import math
import functools

import numpy as np
import jax
import jax.numpy as jnp
from jax import lax
from jax.experimental import pallas as pl
from jax.experimental.pallas import tpu as pltpu

# ---------------- model hyper-parameters (synthetic base_model) ----------------
D_MODEL = 32          # base_model.d_model
N_FEATURES = 4        # input feature dim of x
NUM_HEADS = 4         # item_attention heads
HEAD_DIM = D_MODEL // NUM_HEADS
MLP_HIDDEN = 64       # base_model.mlp hidden width (Linear-ReLU-Linear assumed)
MAX_SEQ = 64          # positional_encoding length
LN_EPS = 1e-5
OUT_W = 128           # lane-dense output width (first 2*G columns carry mean|log_std)


def _cdiv(a, b):
    return -(-a // b)


def _round_up(a, m):
    return _cdiv(a, m) * m


# ------------------------------- Pallas kernel ---------------------------------
def pfn_kernel(xy_ref, pos_ref, w_enc_ref, w_kv_ref, wq_ref, seg_k_ref, seg_v_ref,
               mask_ref, wo_ref, w1_ref, w2_ref, wh_ref, gsum_ref, gbc_ref,
               vec_wide_ref, b1_ref, vec_gd_ref, bh_ref, out_ref, *, seq_len):
    # xy_ref  : (TBp, Sp, G*Fp)   G lane-packed batch groups of fused [x | y_clean | 1]
    # pos_ref : (Sp, G*D)         positional encoding, lane-tiled over groups
    # weights : block-diagonal over the G groups (built once in the wrapper)
    # vec_wide: (2, G*2D) rows = [bk|bv fused ; bq (scaled, K-half only)]
    # vec_gd  : (6, G*D)  rows = [bo, g1, be1, b2, g2, be2]
    TBp, Sp, GFp = xy_ref.shape
    GD = w_enc_ref.shape[1]
    G2D = w_kv_ref.shape[1]
    GH = seg_k_ref.shape[1]

    # ---- fused feature/target/bias encoder (one tall matmul) + positional enc ----
    xy = xy_ref[...]
    h = jnp.dot(xy.reshape(TBp * Sp, GFp), w_enc_ref[...],
                preferred_element_type=jnp.float32)
    h = h.reshape(TBp, Sp, GD) + pos_ref[...][None, :, :]            # (TBp, Sp, GD)

    # ---- fused K|V projection with fused bias row over the full (padded) sequence ----
    kv = jnp.dot(h.reshape(TBp * Sp, GD), w_kv_ref[...],
                 preferred_element_type=jnp.float32) + vec_wide_ref[0:1, :]
    kv = kv.reshape(TBp, Sp, G2D)                                    # K half | V half per group

    # ---- query for the last real sequence position only ----
    # 1/sqrt(head_dim) and the K-half placement are folded into wq/bq, so q2's V lanes are 0.
    h_last = h[:, seq_len - 1, :]                                    # (TBp, GD)
    q2 = jnp.dot(h_last, wq_ref[...], preferred_element_type=jnp.float32) \
        + vec_wide_ref[1:2, :]                                       # (TBp, G2D)

    # ---- per-(group, head) scores via one block-indicator matmul; no lane slicing ----
    prod = q2[:, None, :] * kv                                       # (TBp, Sp, G2D)
    scores = jnp.dot(prod.reshape(TBp * Sp, G2D), seg_k_ref[...],
                     preferred_element_type=jnp.float32).reshape(TBp, Sp, GH)
    scores = scores + mask_ref[...][None, :, :]                      # mask padded key positions
    scores = scores - jnp.max(scores, axis=1, keepdims=True)
    p = jnp.exp(scores)
    p = p * (1.0 / jnp.sum(p, axis=1, keepdims=True))                # (TBp, Sp, GH)

    # ---- expand head probs into the V half, contract over sequence, project with [0; Wo] ----
    p_exp = jnp.dot(p.reshape(TBp * Sp, GH), seg_v_ref[...],
                    preferred_element_type=jnp.float32).reshape(TBp, Sp, G2D)
    attn = jnp.sum(p_exp * kv, axis=1)                               # (TBp, G2D), K half is 0
    attn = jnp.dot(attn, wo_ref[...], preferred_element_type=jnp.float32) \
        + vec_gd_ref[0:1, :]                                         # + bo  -> (TBp, GD)

    def group_layernorm(z, gamma, beta):
        # per-32-lane-group LayerNorm via resident indicator matmuls (gsum holds 1/d_model)
        mu = jnp.dot(z, gsum_ref[...], preferred_element_type=jnp.float32)       # (TBp, G)
        zc = z - jnp.dot(mu, gbc_ref[...], preferred_element_type=jnp.float32)
        var = jnp.dot(zc * zc, gsum_ref[...], preferred_element_type=jnp.float32)
        rstd = jnp.dot(lax.rsqrt(var + LN_EPS), gbc_ref[...],
                       preferred_element_type=jnp.float32)
        return zc * rstd * gamma + beta

    # tail on the last row only (LN/MLP are position-wise; heads read only h2[:, -1])
    h1 = group_layernorm(h_last + attn, vec_gd_ref[1:2, :], vec_gd_ref[2:3, :])
    hidden = jnp.maximum(
        jnp.dot(h1, w1_ref[...], preferred_element_type=jnp.float32) + b1_ref[...], 0.0)
    mlp = jnp.dot(hidden, w2_ref[...], preferred_element_type=jnp.float32) \
        + vec_gd_ref[3:4, :]
    h2 = group_layernorm(h1 + mlp, vec_gd_ref[4:5, :], vec_gd_ref[5:6, :])

    # fused mean|log_std heads, padded to a lane-dense (TBp, 128) store
    out_ref[...] = jnp.dot(h2, wh_ref[...], preferred_element_type=jnp.float32) \
        + bh_ref[...]


# --------------------------------- wrapper --------------------------------------
def simple_pfn_forward(x_context, y_context, x_target, params, *, block_b=256):
    B, Lc, F = x_context.shape
    S = Lc + 1
    if S > MAX_SEQ:
        raise ValueError(f"sequence length {S} exceeds positional encoding length {MAX_SEQ}")
    S_pad = _round_up(S, 8)                 # sublane-align seq so in-kernel reshapes are free
    D = params["Wf"].shape[1]
    H = NUM_HEADS
    HD = D // H
    Fp = F + 2
    f32 = jnp.float32

    # lane-packing factor: pack G batch elements per 128-lane group (falls back to 1)
    G = 128 // D if (D <= 128 and 128 % D == 0) else 1
    GD, G2D, GH, GF = G * D, G * 2 * D, G * H, G * Fp

    # ---- glue: build fused (B, S_pad, F+2) input  [x | y_cleaned | 1] ----
    x_combined = jnp.concatenate([x_context, x_target[:, None, :]], axis=1).astype(f32)
    y_clean = jnp.where(jnp.isnan(y_context), 0.0, y_context).astype(f32)   # NaN handling
    y_combined = jnp.concatenate([y_clean, jnp.zeros((B, 1, 1), f32)], axis=1)  # target y -> 0
    ones = jnp.ones((B, S, 1), f32)
    xy = jnp.concatenate([x_combined, y_combined, ones], axis=-1)            # (B, S, Fp)
    xy = jnp.pad(xy, ((0, 0), (0, S_pad - S), (0, 0)))

    # ---- batch tiling: even grid when split (v7x 2xTC), packed sublane rows multiple of 8 ----
    n_steps = _cdiv(B, block_b)
    if B >= 16 * G:                          # enough rows to split across two TensorCores
        n_steps = max(n_steps, 2)
    if n_steps > 1 and n_steps % 2 == 1:
        n_steps += 1
    tb = _round_up(_cdiv(B, n_steps), 8 * G)     # real batch rows per grid step
    B_pad = tb * n_steps
    TBp = tb // G                                # packed rows per grid step (multiple of 8)

    if B_pad != B:
        xy = jnp.pad(xy, ((0, B_pad - B), (0, 0), (0, 0)))
    # pack G consecutive batch elements side-by-side on the lane axis
    xy_p = xy.reshape(B_pad // G, G, S_pad, Fp).transpose(0, 2, 1, 3) \
             .reshape(B_pad // G, S_pad, GF)

    # ---- pack weights into G-way block-diagonal / lane-tiled form (one-time, tiny) ----
    eyeG = jnp.eye(G, dtype=f32)
    bd = lambda w: jnp.kron(eyeG, w.astype(f32))          # block-diag, G identical blocks
    lt = lambda v: jnp.tile(v.astype(f32), (1, G))        # lane-tile a (1, n) row vector

    pos_p = jnp.tile(jnp.pad(params["pos"][:S].astype(f32), ((0, S_pad - S), (0, 0))), (1, G))
    w_enc = bd(jnp.concatenate([params["Wf"], params["Wt"],
                                params["bf"] + params["bt"]], axis=0))       # (GF, GD)
    w_kv = bd(jnp.concatenate([params["Wk"], params["Wv"]], axis=1))          # (GD, G2D)
    b_kv = lt(jnp.concatenate([params["bk"], params["bv"]], axis=1))          # (1, G2D)
    scale = 1.0 / math.sqrt(HD)                                               # fold into Wq/bq
    w_q = bd(jnp.concatenate([params["Wq"] * scale, jnp.zeros((D, D), f32)], axis=1))
    b_q = lt(jnp.concatenate([params["bq"] * scale, jnp.zeros((1, D), f32)], axis=1))

    # head segment / indicator matrices (resident constants; no per-step iota work)
    seg = (np.arange(D)[:, None] // HD == np.arange(H)[None, :]).astype(np.float32)  # (D, H)
    seg_k = bd(jnp.asarray(np.concatenate([seg, np.zeros((D, H), np.float32)], axis=0)))
    seg_v = bd(jnp.asarray(np.concatenate([np.zeros((H, D), np.float32), seg.T], axis=1)))
    mask_p = jnp.tile(jnp.where(jnp.arange(S_pad)[:, None] < S, 0.0, -1e30).astype(f32),
                      (1, GH))                                                # (S_pad, GH)

    w_o = bd(jnp.concatenate([jnp.zeros((D, D), f32), params["Wo"]], axis=0))  # [0; Wo]
    w_1 = bd(params["W1"])
    b_1 = lt(params["b1"])
    w_2 = bd(params["W2"])
    w_h = jnp.pad(bd(jnp.concatenate([params["Wm"], params["Ws"]], axis=1)),
                  ((0, 0), (0, OUT_W - 2 * G)))                               # (GD, OUT_W)
    b_h = jnp.pad(lt(jnp.concatenate([params["bm"], params["bs"]], axis=1)),
                  ((0, 0), (0, OUT_W - 2 * G)))                               # (1, OUT_W)
    g_sum = bd(jnp.full((D, 1), 1.0 / D, f32))                                # (GD, G)
    g_bc = bd(jnp.ones((1, D), f32))                                          # (G, GD)

    vec_wide = jnp.concatenate([b_kv, b_q], axis=0)                           # (2, G2D)
    vec_gd = jnp.concatenate([lt(params["bo"]), lt(params["g1"]), lt(params["be1"]),
                              lt(params["b2"]), lt(params["g2"]), lt(params["be2"])],
                             axis=0)                                          # (6, GD)

    weights = [pos_p, w_enc, w_kv, w_q, seg_k, seg_v, mask_p, w_o, w_1, w_2, w_h,
               g_sum, g_bc, vec_wide, b_1, vec_gd, b_h]

    def const_spec(a):
        nd = a.ndim
        return pl.BlockSpec(a.shape, lambda i, _nd=nd: (0,) * _nd)

    in_specs = [pl.BlockSpec((TBp, S_pad, GF), lambda i: (i, 0, 0))] \
        + [const_spec(w) for w in weights]
    out_specs = pl.BlockSpec((TBp, OUT_W), lambda i: (i, 0))

    # VMEM budget: live per-sequence intermediates (h, kv, prod, p_exp, scores, p) plus
    # double-buffered input/output blocks; keep the cap below v7x's 64 MiB physical VMEM.
    live = TBp * S_pad * 4 * (GD + 3 * G2D + 2 * GH) \
        + 2 * TBp * S_pad * GF * 4 + 2 * TBp * OUT_W * 4
    vmem_limit = int(min(60 * 2**20, max(32 * 2**20, 2 * live)))

    grid_spec = pltpu.PrefetchScalarGridSpec(
        num_scalar_prefetch=0,
        grid=(B_pad // tb,),
        in_specs=in_specs,
        out_specs=out_specs,
    )

    out_p = pl.pallas_call(
        functools.partial(pfn_kernel, seq_len=S),
        out_shape=jax.ShapeDtypeStruct((B_pad // G, OUT_W), jnp.float32),
        grid_spec=grid_spec,
        compiler_params=pltpu.CompilerParams(
            dimension_semantics=("parallel",),
            vmem_limit_bytes=vmem_limit),
    )(xy_p, *weights)

    # un-pack lane groups: column 2*g / 2*g+1 of packed row r is mean / log_std of batch r*G+g
    out = out_p[:, :2 * G].reshape(B_pad, 2)[:B]
    return out[:, 0:1], out[:, 1:2]


# --------------------------- pure-JAX reference ---------------------------------
def simple_pfn_reference(x_context, y_context, x_target, p):
    B, Lc, F = x_context.shape
    S = Lc + 1
    x_combined = jnp.concatenate([x_context, x_target[:, None, :]], axis=1)
    y_combined = jnp.concatenate(
        [y_context, jnp.full((B, 1, 1), jnp.nan, dtype=x_target.dtype)], axis=1)
    y_clean = jnp.where(jnp.isnan(y_combined), 0.0, y_combined)

    h = (x_combined @ p["Wf"] + p["bf"]) + (y_clean @ p["Wt"] + p["bt"]) + p["pos"][:S][None]

    q = h @ p["Wq"] + p["bq"]
    k = h @ p["Wk"] + p["bk"]
    v = h @ p["Wv"] + p["bv"]
    qh = q.reshape(B, S, NUM_HEADS, HEAD_DIM)
    kh = k.reshape(B, S, NUM_HEADS, HEAD_DIM)
    vh = v.reshape(B, S, NUM_HEADS, HEAD_DIM)
    scores = jnp.einsum("bqhd,bkhd->bhqk", qh, kh) / math.sqrt(HEAD_DIM)
    pattn = jax.nn.softmax(scores, axis=-1)
    attn = jnp.einsum("bhqk,bkhd->bqhd", pattn, vh).reshape(B, S, D_MODEL)
    attn = attn @ p["Wo"] + p["bo"]

    def ln(z, g, b):
        mu = z.mean(-1, keepdims=True)
        var = ((z - mu) ** 2).mean(-1, keepdims=True)
        return (z - mu) / jnp.sqrt(var + LN_EPS) * g + b

    h1 = ln(h + attn, p["g1"], p["be1"])
    mlp = jnp.maximum(h1 @ p["W1"] + p["b1"], 0.0) @ p["W2"] + p["b2"]
    h2 = ln(h1 + mlp, p["g2"], p["be2"])
    tgt = h2[:, -1, :]
    return tgt @ p["Wm"] + p["bm"], tgt @ p["Ws"] + p["bs"]


# -------------------------------- params init -----------------------------------
def init_params(key):
    ks = jax.random.split(key, 20)
    n = lambda k, shape, scale: (jax.random.normal(k, shape, jnp.float32) * scale)
    D, F, H = D_MODEL, N_FEATURES, MLP_HIDDEN
    return {
        "pos": n(ks[0], (MAX_SEQ, D), 0.02),
        "Wf": n(ks[1], (F, D), 1.0 / math.sqrt(F)),  "bf": jnp.zeros((1, D), jnp.float32),
        "Wt": n(ks[2], (1, D), 1.0),                 "bt": jnp.zeros((1, D), jnp.float32),
        "Wq": n(ks[3], (D, D), 1.0 / math.sqrt(D)),  "bq": jnp.zeros((1, D), jnp.float32),
        "Wk": n(ks[4], (D, D), 1.0 / math.sqrt(D)),  "bk": jnp.zeros((1, D), jnp.float32),
        "Wv": n(ks[5], (D, D), 1.0 / math.sqrt(D)),  "bv": jnp.zeros((1, D), jnp.float32),
        "Wo": n(ks[6], (D, D), 1.0 / math.sqrt(D)),  "bo": jnp.zeros((1, D), jnp.float32),
        "g1": jnp.ones((1, D), jnp.float32),         "be1": jnp.zeros((1, D), jnp.float32),
        "W1": n(ks[7], (D, H), 1.0 / math.sqrt(D)),  "b1": jnp.zeros((1, H), jnp.float32),
        "W2": n(ks[8], (H, D), 1.0 / math.sqrt(H)),  "b2": jnp.zeros((1, D), jnp.float32),
        "g2": jnp.ones((1, D), jnp.float32),         "be2": jnp.zeros((1, D), jnp.float32),
        "Wm": n(ks[9], (D, 1), 1.0 / math.sqrt(D)),  "bm": jnp.zeros((1, 1), jnp.float32),
        "Ws": n(ks[10], (D, 1), 1.0 / math.sqrt(D)), "bs": jnp.zeros((1, 1), jnp.float32),
    }


if __name__ == "__main__":
    key = jax.random.PRNGKey(0)
    kx, ky, kt, kp = jax.random.split(key, 4)

    B, Lc = 2, 8
    x_context = jax.random.normal(kx, (B, Lc, N_FEATURES), jnp.float32)
    y_context = jax.random.normal(ky, (B, Lc, 1), jnp.float32)
    x_target = jax.random.normal(kt, (B, N_FEATURES), jnp.float32)
    params = init_params(kp)

    mean, log_std = jax.jit(simple_pfn_forward)(x_context, y_context, x_target, params)
    jax.block_until_ready((mean, log_std))

    ref_mean, ref_log_std = simple_pfn_reference(x_context, y_context, x_target, params)
    assert mean.shape == (B, 1) and log_std.shape == (B, 1)
    np.testing.assert_allclose(np.asarray(mean), np.asarray(ref_mean), rtol=1e-4, atol=1e-4)
    np.testing.assert_allclose(np.asarray(log_std), np.asarray(ref_log_std), rtol=1e-4, atol=1e-4)
    print("KERNEL_OK")
</pallas_src>

<mosaic_0001>
module attributes {stable_mosaic.version = 11 : i64} {
  func.func @pfn_kernel(%arg0: i32, %arg1: memref<8x16x24xf32, #tpu.memory_space<vmem>>, %arg2: memref<16x128xf32, #tpu.memory_space<vmem>>, %arg3: memref<24x128xf32, #tpu.memory_space<vmem>>, %arg4: memref<128x256xf32, #tpu.memory_space<vmem>>, %arg5: memref<128x256xf32, #tpu.memory_space<vmem>>, %arg6: memref<256x16xf32, #tpu.memory_space<vmem>>, %arg7: memref<16x256xf32, #tpu.memory_space<vmem>>, %arg8: memref<16x16xf32, #tpu.memory_space<vmem>>, %arg9: memref<256x128xf32, #tpu.memory_space<vmem>>, %arg10: memref<128x256xf32, #tpu.memory_space<vmem>>, %arg11: memref<256x128xf32, #tpu.memory_space<vmem>>, %arg12: memref<128x128xf32, #tpu.memory_space<vmem>>, %arg13: memref<128x4xf32, #tpu.memory_space<vmem>>, %arg14: memref<4x128xf32, #tpu.memory_space<vmem>>, %arg15: memref<2x256xf32, #tpu.memory_space<vmem>>, %arg16: memref<1x256xf32, #tpu.memory_space<vmem>>, %arg17: memref<6x128xf32, #tpu.memory_space<vmem>>, %arg18: memref<1x128xf32, #tpu.memory_space<vmem>>, %arg19: memref<8x128xf32, #tpu.memory_space<vmem>>) attributes {dimension_semantics = [#tpu.dimension_semantics<parallel>], iteration_bounds = array<i64: 1>, scalar_prefetch = 0 : i64, scratch_operands = 0 : i64, tpu.core_type = #tpu.core_type<tc>, window_params = [{transform_indices = @transform_0, window_bounds = array<i64: 8, 16, 24>}, {pipeline_mode = #tpu.pipeline_mode<synchronous>, transform_indices = @transform_1, window_bounds = array<i64: 16, 128>}, {pipeline_mode = #tpu.pipeline_mode<synchronous>, transform_indices = @transform_2, window_bounds = array<i64: 24, 128>}, {pipeline_mode = #tpu.pipeline_mode<synchronous>, transform_indices = @transform_3, window_bounds = array<i64: 128, 256>}, {pipeline_mode = #tpu.pipeline_mode<synchronous>, transform_indices = @transform_4, window_bounds = array<i64: 128, 256>}, {pipeline_mode = #tpu.pipeline_mode<synchronous>, transform_indices = @transform_5, window_bounds = array<i64: 256, 16>}, {pipeline_mode = #tpu.pipeline_mode<synchronous>, transform_indices = @transform_6, window_bounds = array<i64: 16, 256>}, {pipeline_mode = #tpu.pipeline_mode<synchronous>, transform_indices = @transform_7, window_bounds = array<i64: 16, 16>}, {pipeline_mode = #tpu.pipeline_mode<synchronous>, transform_indices = @transform_8, window_bounds = array<i64: 256, 128>}, {pipeline_mode = #tpu.pipeline_mode<synchronous>, transform_indices = @transform_9, window_bounds = array<i64: 128, 256>}, {pipeline_mode = #tpu.pipeline_mode<synchronous>, transform_indices = @transform_10, window_bounds = array<i64: 256, 128>}, {pipeline_mode = #tpu.pipeline_mode<synchronous>, transform_indices = @transform_11, window_bounds = array<i64: 128, 128>}, {pipeline_mode = #tpu.pipeline_mode<synchronous>, transform_indices = @transform_12, window_bounds = array<i64: 128, 4>}, {pipeline_mode = #tpu.pipeline_mode<synchronous>, transform_indices = @transform_13, window_bounds = array<i64: 4, 128>}, {pipeline_mode = #tpu.pipeline_mode<synchronous>, transform_indices = @transform_14, window_bounds = array<i64: 2, 256>}, {pipeline_mode = #tpu.pipeline_mode<synchronous>, transform_indices = @transform_15, window_bounds = array<i64: 1, 256>}, {pipeline_mode = #tpu.pipeline_mode<synchronous>, transform_indices = @transform_16, window_bounds = array<i64: 6, 128>}, {pipeline_mode = #tpu.pipeline_mode<synchronous>, transform_indices = @transform_17, window_bounds = array<i64: 1, 128>}, {transform_indices = @transform_18, window_bounds = array<i64: 8, 128>}]} {
    %c0 = arith.constant 0 : index
    %c0_0 = arith.constant 0 : index
    %c0_1 = arith.constant 0 : index
    %0 = vector.load %arg1[%c0, %c0_0, %c0_1] : memref<8x16x24xf32, #tpu.memory_space<vmem>>, vector<8x16x24xf32>
    %1 = vector.shape_cast %0 : vector<8x16x24xf32> to vector<128x24xf32>
    %c0_2 = arith.constant 0 : index
    %c0_3 = arith.constant 0 : index
    %2 = vector.load %arg3[%c0_2, %c0_3] : memref<24x128xf32, #tpu.memory_space<vmem>>, vector<24x128xf32>
    %cst = arith.constant dense<0.000000e+00> : vector<128x128xf32>
    %3 = tpu.matmul %1, %2, %cst {dimension_numbers = #tpu.dot_dimension_numbers<[1], [0], [0], [1], [0, 0, 1, 1], [], []>} : vector<128x24xf32>, vector<24x128xf32>, vector<128x128xf32> -> vector<128x128xf32>
    %4 = vector.shape_cast %3 : vector<128x128xf32> to vector<8x16x128xf32>
    %c0_4 = arith.constant 0 : index
    %c0_5 = arith.constant 0 : index
    %5 = vector.load %arg2[%c0_4, %c0_5] : memref<16x128xf32, #tpu.memory_space<vmem>>, vector<16x128xf32>
    %6 = vector.shape_cast %5 : vector<16x128xf32> to vector<1x16x128xf32>
    %7 = vector.broadcast %6 : vector<1x16x128xf32> to vector<8x16x128xf32>
    %8 = arith.addf %4, %7 : vector<8x16x128xf32>
    %9 = vector.shape_cast %8 : vector<8x16x128xf32> to vector<128x128xf32>
    %c0_6 = arith.constant 0 : index
    %c0_7 = arith.constant 0 : index
    %10 = vector.load %arg4[%c0_6, %c0_7] : memref<128x256xf32, #tpu.memory_space<vmem>>, vector<128x256xf32>
    %cst_8 = arith.constant dense<0.000000e+00> : vector<128x256xf32>
    %11 = tpu.matmul %9, %10, %cst_8 {dimension_numbers = #tpu.dot_dimension_numbers<[1], [0], [0], [1], [0, 0, 1, 1], [], []>} : vector<128x128xf32>, vector<128x256xf32>, vector<128x256xf32> -> vector<128x256xf32>
    %c0_9 = arith.constant 0 : index
    %c0_10 = arith.constant 0 : index
    %12 = vector.load %arg15[%c0_9, %c0_10] : memref<2x256xf32, #tpu.memory_space<vmem>>, vector<1x256xf32>
    %13 = vector.broadcast %12 : vector<1x256xf32> to vector<128x256xf32>
    %14 = arith.addf %11, %13 : vector<128x256xf32>
    %15 = vector.shape_cast %14 : vector<128x256xf32> to vector<8x16x256xf32>
    %16 = vector.extract_strided_slice %8 {offsets = [0, 8, 0], sizes = [8, 1, 128], strides = [1, 1, 1]} : vector<8x16x128xf32> to vector<8x1x128xf32>
    %17 = vector.shape_cast %16 : vector<8x1x128xf32> to vector<8x128xf32>
    %c0_11 = arith.constant 0 : index
    %c0_12 = arith.constant 0 : index
    %18 = vector.load %arg5[%c0_11, %c0_12] : memref<128x256xf32, #tpu.memory_space<vmem>>, vector<128x256xf32>
    %cst_13 = arith.constant dense<0.000000e+00> : vector<8x256xf32>
    %19 = tpu.matmul %17, %18, %cst_13 {dimension_numbers = #tpu.dot_dimension_numbers<[1], [0], [0], [1], [0, 0, 1, 1], [], []>} : vector<8x128xf32>, vector<128x256xf32>, vector<8x256xf32> -> vector<8x256xf32>
    %c1 = arith.constant 1 : index
    %c0_14 = arith.constant 0 : index
    %20 = vector.load %arg15[%c1, %c0_14] : memref<2x256xf32, #tpu.memory_space<vmem>>, vector<1x256xf32>
    %21 = vector.broadcast %20 : vector<1x256xf32> to vector<8x256xf32>
    %22 = arith.addf %19, %21 : vector<8x256xf32>
    %23 = vector.shape_cast %22 : vector<8x256xf32> to vector<8x1x256xf32>
    %24 = vector.broadcast %23 : vector<8x1x256xf32> to vector<8x16x256xf32>
    %25 = arith.mulf %24, %15 : vector<8x16x256xf32>
    %26 = vector.shape_cast %25 : vector<8x16x256xf32> to vector<128x256xf32>
    %c0_15 = arith.constant 0 : index
    %c0_16 = arith.constant 0 : index
    %27 = vector.load %arg6[%c0_15, %c0_16] : memref<256x16xf32, #tpu.memory_space<vmem>>, vector<256x16xf32>
    %cst_17 = arith.constant dense<0.000000e+00> : vector<128x16xf32>
    %28 = tpu.matmul %26, %27, %cst_17 {dimension_numbers = #tpu.dot_dimension_numbers<[1], [0], [0], [1], [0, 0, 1, 1], [], []>} : vector<128x256xf32>, vector<256x16xf32>, vector<128x16xf32> -> vector<128x16xf32>
    %29 = vector.shape_cast %28 : vector<128x16xf32> to vector<8x16x16xf32>
    %c0_18 = arith.constant 0 : index
    %c0_19 = arith.constant 0 : index
    %30 = vector.load %arg8[%c0_18, %c0_19] : memref<16x16xf32, #tpu.memory_space<vmem>>, vector<16x16xf32>
    %31 = vector.shape_cast %30 : vector<16x16xf32> to vector<1x16x16xf32>
    %32 = vector.broadcast %31 : vector<1x16x16xf32> to vector<8x16x16xf32>
    %33 = arith.addf %29, %32 : vector<8x16x16xf32>
    %cst_20 = arith.constant dense<0xFF800000> : vector<8x16xf32>
    %34 = vector.multi_reduction <maximumf>, %33, %cst_20 [1] : vector<8x16x16xf32> to vector<8x16xf32>
    %35 = vector.shape_cast %34 : vector<8x16xf32> to vector<8x1x16xf32>
    %36 = vector.broadcast %35 : vector<8x1x16xf32> to vector<8x16x16xf32>
    %37 = arith.subf %33, %36 : vector<8x16x16xf32>
    %38 = math.exp %37 : vector<8x16x16xf32>
    %cst_21 = arith.constant dense<0.000000e+00> : vector<8x16xf32>
    %39 = vector.multi_reduction <add>, %38, %cst_21 [1] : vector<8x16x16xf32> to vector<8x16xf32>
    %40 = vector.shape_cast %39 : vector<8x16xf32> to vector<8x1x16xf32>
    %cst_22 = arith.constant 1.000000e+00 : f32
    %41 = vector.broadcast %cst_22 : f32 to vector<8x1x16xf32>
    %42 = arith.divf %41, %40 : vector<8x1x16xf32>
    %43 = vector.broadcast %42 : vector<8x1x16xf32> to vector<8x16x16xf32>
    %44 = arith.mulf %38, %43 : vector<8x16x16xf32>
    %45 = vector.shape_cast %44 : vector<8x16x16xf32> to vector<128x16xf32>
    %c0_23 = arith.constant 0 : index
    %c0_24 = arith.constant 0 : index
    %46 = vector.load %arg7[%c0_23, %c0_24] : memref<16x256xf32, #tpu.memory_space<vmem>>, vector<16x256xf32>
    %cst_25 = arith.constant dense<0.000000e+00> : vector<128x256xf32>
    %47 = tpu.matmul %45, %46, %cst_25 {dimension_numbers = #tpu.dot_dimension_numbers<[1], [0], [0], [1], [0, 0, 1, 1], [], []>} : vector<128x16xf32>, vector<16x256xf32>, vector<128x256xf32> -> vector<128x256xf32>
    %48 = vector.shape_cast %47 : vector<128x256xf32> to vector<8x16x256xf32>
    %49 = arith.mulf %48, %15 : vector<8x16x256xf32>
    %cst_26 = arith.constant dense<0.000000e+00> : vector<8x256xf32>
    %50 = vector.multi_reduction <add>, %49, %cst_26 [1] : vector<8x16x256xf32> to vector<8x256xf32>
    %c0_27 = arith.constant 0 : index
    %c0_28 = arith.constant 0 : index
    %51 = vector.load %arg9[%c0_27, %c0_28] : memref<256x128xf32, #tpu.memory_space<vmem>>, vector<256x128xf32>
    %cst_29 = arith.constant dense<0.000000e+00> : vector<8x128xf32>
    %52 = tpu.matmul %50, %51, %cst_29 {dimension_numbers = #tpu.dot_dimension_numbers<[1], [0], [0], [1], [0, 0, 1, 1], [], []>} : vector<8x256xf32>, vector<256x128xf32>, vector<8x128xf32> -> vector<8x128xf32>
    %c0_30 = arith.constant 0 : index
    %c0_31 = arith.constant 0 : index
    %53 = vector.load %arg17[%c0_30, %c0_31] : memref<6x128xf32, #tpu.memory_space<vmem>>, vector<1x128xf32>
    %54 = vector.broadcast %53 : vector<1x128xf32> to vector<8x128xf32>
    %55 = arith.addf %52, %54 : vector<8x128xf32>
    %56 = arith.addf %17, %55 : vector<8x128xf32>
    %c1_32 = arith.constant 1 : index
    %c0_33 = arith.constant 0 : index
    %57 = vector.load %arg17[%c1_32, %c0_33] : memref<6x128xf32, #tpu.memory_space<vmem>>, vector<1x128xf32>
    %c2 = arith.constant 2 : index
    %c0_34 = arith.constant 0 : index
    %58 = vector.load %arg17[%c2, %c0_34] : memref<6x128xf32, #tpu.memory_space<vmem>>, vector<1x128xf32>
    %c0_35 = arith.constant 0 : index
    %c0_36 = arith.constant 0 : index
    %59 = vector.load %arg13[%c0_35, %c0_36] : memref<128x4xf32, #tpu.memory_space<vmem>>, vector<128x4xf32>
    %cst_37 = arith.constant dense<0.000000e+00> : vector<8x4xf32>
    %60 = tpu.matmul %56, %59, %cst_37 {dimension_numbers = #tpu.dot_dimension_numbers<[1], [0], [0], [1], [0, 0, 1, 1], [], []>} : vector<8x128xf32>, vector<128x4xf32>, vector<8x4xf32> -> vector<8x4xf32>
    %c0_38 = arith.constant 0 : index
    %c0_39 = arith.constant 0 : index
    %61 = vector.load %arg14[%c0_38, %c0_39] : memref<4x128xf32, #tpu.memory_space<vmem>>, vector<4x128xf32>
    %cst_40 = arith.constant dense<0.000000e+00> : vector<8x128xf32>
    %62 = tpu.matmul %60, %61, %cst_40 {dimension_numbers = #tpu.dot_dimension_numbers<[1], [0], [0], [1], [0, 0, 1, 1], [], []>} : vector<8x4xf32>, vector<4x128xf32>, vector<8x128xf32> -> vector<8x128xf32>
    %63 = arith.subf %56, %62 : vector<8x128xf32>
    %64 = arith.mulf %63, %63 : vector<8x128xf32>
    %c0_41 = arith.constant 0 : index
    %c0_42 = arith.constant 0 : index
    %65 = vector.load %arg13[%c0_41, %c0_42] : memref<128x4xf32, #tpu.memory_space<vmem>>, vector<128x4xf32>
    %cst_43 = arith.constant dense<0.000000e+00> : vector<8x4xf32>
    %66 = tpu.matmul %64, %65, %cst_43 {dimension_numbers = #tpu.dot_dimension_numbers<[1], [0], [0], [1], [0, 0, 1, 1], [], []>} : vector<8x128xf32>, vector<128x4xf32>, vector<8x4xf32> -> vector<8x4xf32>
    %cst_44 = arith.constant 9.99999974E-6 : f32
    %67 = vector.broadcast %cst_44 : f32 to vector<8x4xf32>
    %68 = arith.addf %66, %67 : vector<8x4xf32>
    %69 = math.rsqrt %68 : vector<8x4xf32>
    %c0_45 = arith.constant 0 : index
    %c0_46 = arith.constant 0 : index
    %70 = vector.load %arg14[%c0_45, %c0_46] : memref<4x128xf32, #tpu.memory_space<vmem>>, vector<4x128xf32>
    %cst_47 = arith.constant dense<0.000000e+00> : vector<8x128xf32>
    %71 = tpu.matmul %69, %70, %cst_47 {dimension_numbers = #tpu.dot_dimension_numbers<[1], [0], [0], [1], [0, 0, 1, 1], [], []>} : vector<8x4xf32>, vector<4x128xf32>, vector<8x128xf32> -> vector<8x128xf32>
    %72 = arith.mulf %63, %71 : vector<8x128xf32>
    %73 = vector.broadcast %57 : vector<1x128xf32> to vector<8x128xf32>
    %74 = arith.mulf %72, %73 : vector<8x128xf32>
    %75 = vector.broadcast %58 : vector<1x128xf32> to vector<8x128xf32>
    %76 = arith.addf %74, %75 : vector<8x128xf32>
    %c0_48 = arith.constant 0 : index
    %c0_49 = arith.constant 0 : index
    %77 = vector.load %arg10[%c0_48, %c0_49] : memref<128x256xf32, #tpu.memory_space<vmem>>, vector<128x256xf32>
    %cst_50 = arith.constant dense<0.000000e+00> : vector<8x256xf32>
    %78 = tpu.matmul %76, %77, %cst_50 {dimension_numbers = #tpu.dot_dimension_numbers<[1], [0], [0], [1], [0, 0, 1, 1], [], []>} : vector<8x128xf32>, vector<128x256xf32>, vector<8x256xf32> -> vector<8x256xf32>
    %c0_51 = arith.constant 0 : index
    %c0_52 = arith.constant 0 : index
    %79 = vector.load %arg16[%c0_51, %c0_52] : memref<1x256xf32, #tpu.memory_space<vmem>>, vector<1x256xf32>
    %80 = vector.broadcast %79 : vector<1x256xf32> to vector<8x256xf32>
    %81 = arith.addf %78, %80 : vector<8x256xf32>
    %cst_53 = arith.constant 0.000000e+00 : f32
    %82 = vector.broadcast %cst_53 : f32 to vector<8x256xf32>
    %83 = arith.maximumf %81, %82 : vector<8x256xf32>
    %c0_54 = arith.constant 0 : index
    %c0_55 = arith.constant 0 : index
    %84 = vector.load %arg11[%c0_54, %c0_55] : memref<256x128xf32, #tpu.memory_space<vmem>>, vector<256x128xf32>
    %cst_56 = arith.constant dense<0.000000e+00> : vector<8x128xf32>
    %85 = tpu.matmul %83, %84, %cst_56 {dimension_numbers = #tpu.dot_dimension_numbers<[1], [0], [0], [1], [0, 0, 1, 1], [], []>} : vector<8x256xf32>, vector<256x128xf32>, vector<8x128xf32> -> vector<8x128xf32>
    %c3 = arith.constant 3 : index
    %c0_57 = arith.constant 0 : index
    %86 = vector.load %arg17[%c3, %c0_57] : memref<6x128xf32, #tpu.memory_space<vmem>>, vector<1x128xf32>
    %87 = vector.broadcast %86 : vector<1x128xf32> to vector<8x128xf32>
    %88 = arith.addf %85, %87 : vector<8x128xf32>
    %89 = arith.addf %76, %88 : vector<8x128xf32>
    %c4 = arith.constant 4 : index
    %c0_58 = arith.constant 0 : index
    %90 = vector.load %arg17[%c4, %c0_58] : memref<6x128xf32, #tpu.memory_space<vmem>>, vector<1x128xf32>
    %c5 = arith.constant 5 : index
    %c0_59 = arith.constant 0 : index
    %91 = vector.load %arg17[%c5, %c0_59] : memref<6x128xf32, #tpu.memory_space<vmem>>, vector<1x128xf32>
    %c0_60 = arith.constant 0 : index
    %c0_61 = arith.constant 0 : index
    %92 = vector.load %arg13[%c0_60, %c0_61] : memref<128x4xf32, #tpu.memory_space<vmem>>, vector<128x4xf32>
    %cst_62 = arith.constant dense<0.000000e+00> : vector<8x4xf32>
    %93 = tpu.matmul %89, %92, %cst_62 {dimension_numbers = #tpu.dot_dimension_numbers<[1], [0], [0], [1], [0, 0, 1, 1], [], []>} : vector<8x128xf32>, vector<128x4xf32>, vector<8x4xf32> -> vector<8x4xf32>
    %c0_63 = arith.constant 0 : index
    %c0_64 = arith.constant 0 : index
    %94 = vector.load %arg14[%c0_63, %c0_64] : memref<4x128xf32, #tpu.memory_space<vmem>>, vector<4x128xf32>
    %cst_65 = arith.constant dense<0.000000e+00> : vector<8x128xf32>
    %95 = tpu.matmul %93, %94, %cst_65 {dimension_numbers = #tpu.dot_dimension_numbers<[1], [0], [0], [1], [0, 0, 1, 1], [], []>} : vector<8x4xf32>, vector<4x128xf32>, vector<8x128xf32> -> vector<8x128xf32>
    %96 = arith.subf %89, %95 : vector<8x128xf32>
    %97 = arith.mulf %96, %96 : vector<8x128xf32>
    %c0_66 = arith.constant 0 : index
    %c0_67 = arith.constant 0 : index
    %98 = vector.load %arg13[%c0_66, %c0_67] : memref<128x4xf32, #tpu.memory_space<vmem>>, vector<128x4xf32>
    %cst_68 = arith.constant dense<0.000000e+00> : vector<8x4xf32>
    %99 = tpu.matmul %97, %98, %cst_68 {dimension_numbers = #tpu.dot_dimension_numbers<[1], [0], [0], [1], [0, 0, 1, 1], [], []>} : vector<8x128xf32>, vector<128x4xf32>, vector<8x4xf32> -> vector<8x4xf32>
    %cst_69 = arith.constant 9.99999974E-6 : f32
    %100 = vector.broadcast %cst_69 : f32 to vector<8x4xf32>
    %101 = arith.addf %99, %100 : vector<8x4xf32>
    %102 = math.rsqrt %101 : vector<8x4xf32>
    %c0_70 = arith.constant 0 : index
    %c0_71 = arith.constant 0 : index
    %103 = vector.load %arg14[%c0_70, %c0_71] : memref<4x128xf32, #tpu.memory_space<vmem>>, vector<4x128xf32>
    %cst_72 = arith.constant dense<0.000000e+00> : vector<8x128xf32>
    %104 = tpu.matmul %102, %103, %cst_72 {dimension_numbers = #tpu.dot_dimension_numbers<[1], [0], [0], [1], [0, 0, 1, 1], [], []>} : vector<8x4xf32>, vector<4x128xf32>, vector<8x128xf32> -> vector<8x128xf32>
    %105 = arith.mulf %96, %104 : vector<8x128xf32>
    %106 = vector.broadcast %90 : vector<1x128xf32> to vector<8x128xf32>
    %107 = arith.mulf %105, %106 : vector<8x128xf32>
    %108 = vector.broadcast %91 : vector<1x128xf32> to vector<8x128xf32>
    %109 = arith.addf %107, %108 : vector<8x128xf32>
    %c0_73 = arith.constant 0 : index
    %c0_74 = arith.constant 0 : index
    %110 = vector.load %arg12[%c0_73, %c0_74] : memref<128x128xf32, #tpu.memory_space<vmem>>, vector<128x128xf32>
    %cst_75 = arith.constant dense<0.000000e+00> : vector<8x128xf32>
    %111 = tpu.matmul %109, %110, %cst_75 {dimension_numbers = #tpu.dot_dimension_numbers<[1], [0], [0], [1], [0, 0, 1, 1], [], []>} : vector<8x128xf32>, vector<128x128xf32>, vector<8x128xf32> -> vector<8x128xf32>
    %c0_76 = arith.constant 0 : index
    %c0_77 = arith.constant 0 : index
    %112 = vector.load %arg18[%c0_76, %c0_77] : memref<1x128xf32, #tpu.memory_space<vmem>>, vector<1x128xf32>
    %113 = vector.broadcast %112 : vector<1x128xf32> to vector<8x128xf32>
    %114 = arith.addf %111, %113 : vector<8x128xf32>
    %c0_78 = arith.constant 0 : index
    %c0_79 = arith.constant 0 : index
    %115 = vector.load %arg19[%c0_78, %c0_79] : memref<8x128xf32, #tpu.memory_space<vmem>>, vector<8x128xf32>
    tpu.vector_store %arg19[%c0_78, %c0_79], %114 {strides = array<i32>} : memref<8x128xf32, #tpu.memory_space<vmem>>, vector<8x128xf32>,
    return
  }
  func.func @transform_0(%arg0: i32) -> (i32, i32, i32) {
    %c0_i32 = arith.constant 0 : i32
    %c0_i32_0 = arith.constant 0 : i32
    %c0_i32_1 = arith.constant 0 : i32
    return %arg0, %c0_i32, %c0_i32_0 : i32, i32, i32
  }
  func.func @transform_1(%arg0: i32) -> (i32, i32) {
    %c0_i32 = arith.constant 0 : i32
    %c0_i32_0 = arith.constant 0 : i32
    %c0_i32_1 = arith.constant 0 : i32
    return %c0_i32, %c0_i32_0 : i32, i32
  }
  func.func @transform_2(%arg0: i32) -> (i32, i32) {
    %c0_i32 = arith.constant 0 : i32
    %c0_i32_0 = arith.constant 0 : i32
    %c0_i32_1 = arith.constant 0 : i32
    return %c0_i32, %c0_i32_0 : i32, i32
  }
  func.func @transform_3(%arg0: i32) -> (i32, i32) {
    %c0_i32 = arith.constant 0 : i32
    %c0_i32_0 = arith.constant 0 : i32
    %c0_i32_1 = arith.constant 0 : i32
    return %c0_i32, %c0_i32_0 : i32, i32
  }
  func.func @transform_4(%arg0: i32) -> (i32, i32) {
    %c0_i32 = arith.constant 0 : i32
    %c0_i32_0 = arith.constant 0 : i32
    %c0_i32_1 = arith.constant 0 : i32
    return %c0_i32, %c0_i32_0 : i32, i32
  }
  func.func @transform_5(%arg0: i32) -> (i32, i32) {
    %c0_i32 = arith.constant 0 : i32
    %c0_i32_0 = arith.constant 0 : i32
    %c0_i32_1 = arith.constant 0 : i32
    return %c0_i32, %c0_i32_0 : i32, i32
  }
  func.func @transform_6(%arg0: i32) -> (i32, i32) {
    %c0_i32 = arith.constant 0 : i32
    %c0_i32_0 = arith.constant 0 : i32
    %c0_i32_1 = arith.constant 0 : i32
    return %c0_i32, %c0_i32_0 : i32, i32
  }
  func.func @transform_7(%arg0: i32) -> (i32, i32) {
    %c0_i32 = arith.constant 0 : i32
    %c0_i32_0 = arith.constant 0 : i32
    %c0_i32_1 = arith.constant 0 : i32
    return %c0_i32, %c0_i32_0 : i32, i32
  }
  func.func @transform_8(%arg0: i32) -> (i32, i32) {
    %c0_i32 = arith.constant 0 : i32
    %c0_i32_0 = arith.constant 0 : i32
    %c0_i32_1 = arith.constant 0 : i32
    return %c0_i32, %c0_i32_0 : i32, i32
  }
  func.func @transform_9(%arg0: i32) -> (i32, i32) {
    %c0_i32 = arith.constant 0 : i32
    %c0_i32_0 = arith.constant 0 : i32
    %c0_i32_1 = arith.constant 0 : i32
    return %c0_i32, %c0_i32_0 : i32, i32
  }
  func.func @transform_10(%arg0: i32) -> (i32, i32) {
    %c0_i32 = arith.constant 0 : i32
    %c0_i32_0 = arith.constant 0 : i32
    %c0_i32_1 = arith.constant 0 : i32
    return %c0_i32, %c0_i32_0 : i32, i32
  }
  func.func @transform_11(%arg0: i32) -> (i32, i32) {
    %c0_i32 = arith.constant 0 : i32
    %c0_i32_0 = arith.constant 0 : i32
    %c0_i32_1 = arith.constant 0 : i32
    return %c0_i32, %c0_i32_0 : i32, i32
  }
  func.func @transform_12(%arg0: i32) -> (i32, i32) {
    %c0_i32 = arith.constant 0 : i32
    %c0_i32_0 = arith.constant 0 : i32
    %c0_i32_1 = arith.constant 0 : i32
    return %c0_i32, %c0_i32_0 : i32, i32
  }
  func.func @transform_13(%arg0: i32) -> (i32, i32) {
    %c0_i32 = arith.constant 0 : i32
    %c0_i32_0 = arith.constant 0 : i32
    %c0_i32_1 = arith.constant 0 : i32
    return %c0_i32, %c0_i32_0 : i32, i32
  }
  func.func @transform_14(%arg0: i32) -> (i32, i32) {
    %c0_i32 = arith.constant 0 : i32
    %c0_i32_0 = arith.constant 0 : i32
    %c0_i32_1 = arith.constant 0 : i32
    return %c0_i32, %c0_i32_0 : i32, i32
  }
  func.func @transform_15(%arg0: i32) -> (i32, i32) {
    %c0_i32 = arith.constant 0 : i32
    %c0_i32_0 = arith.constant 0 : i32
    %c0_i32_1 = arith.constant 0 : i32
    return %c0_i32, %c0_i32_0 : i32, i32
  }
  func.func @transform_16(%arg0: i32) -> (i32, i32) {
    %c0_i32 = arith.constant 0 : i32
    %c0_i32_0 = arith.constant 0 : i32
    %c0_i32_1 = arith.constant 0 : i32
    return %c0_i32, %c0_i32_0 : i32, i32
  }
  func.func @transform_17(%arg0: i32) -> (i32, i32) {
    %c0_i32 = arith.constant 0 : i32
    %c0_i32_0 = arith.constant 0 : i32
    %c0_i32_1 = arith.constant 0 : i32
    return %c0_i32, %c0_i32_0 : i32, i32
  }
  func.func @transform_18(%arg0: i32) -> (i32, i32) {
    %c0_i32 = arith.constant 0 : i32
    %c0_i32_0 = arith.constant 0 : i32
    return %arg0, %c0_i32 : i32, i32
  }
}

</mosaic_0001>

<llo_original>
// kernel: tile.64
$region0: #{tile.64}
  %s0 = inlined_call_operand.vmem [shape: f32[16,4,32], index: 0, kind: input, shape index: {}]
  %s1 = inlined_call_operand.vmem [shape: f32[16,128], index: 1, kind: output, shape index: {}]
  $region1: #{tile.64} parent=0
    #allocation0 [shape = 'u8[65536]{0}', space=vmem, size = 0x10000, scoped, tag = 'scoped mem for input reshape']
    %s3 = sshllo.u32 0, 4
    %s4 = smul.addr 4, 15
    %s5 = scalar_lea.vmem %s0, %s4
    %v6 = vld [vmem:[%s5] sm:%s3]
    %s7 = scalar_lea.vmem [#allocation0], 120
    %8 = vst [vmem:[%s7] sm:%s3] %v6
    %s9 = smul.addr 4, 14
    %s10 = scalar_lea.vmem %s0, %s9
    %v11 = vld [vmem:[%s10] sm:%s3]
    %s12 = scalar_lea.vmem [#allocation0], 112
    %13 = vst [vmem:[%s12] sm:%s3] %v11
    %s14 = smul.addr 4, 13
    %s15 = scalar_lea.vmem %s0, %s14
    %v16 = vld [vmem:[%s15] sm:%s3]
    %s17 = scalar_lea.vmem [#allocation0], 104
    %18 = vst [vmem:[%s17] sm:%s3] %v16
    %s19 = smul.addr 4, 12
    %s20 = scalar_lea.vmem %s0, %s19
    %v21 = vld [vmem:[%s20] sm:%s3]
    %s22 = scalar_lea.vmem [#allocation0], 96
    %23 = vst [vmem:[%s22] sm:%s3] %v21
    %s24 = smul.addr 4, 11
    %s25 = scalar_lea.vmem %s0, %s24
    %v26 = vld [vmem:[%s25] sm:%s3]
    %s27 = scalar_lea.vmem [#allocation0], 88
    %28 = vst [vmem:[%s27] sm:%s3] %v26
    %s29 = smul.addr 4, 10
    %s30 = scalar_lea.vmem %s0, %s29
    %v31 = vld [vmem:[%s30] sm:%s3]
    %s32 = scalar_lea.vmem [#allocation0], 80
    %33 = vst [vmem:[%s32] sm:%s3] %v31
    %s34 = smul.addr 4, 9
    %s35 = scalar_lea.vmem %s0, %s34
    %v36 = vld [vmem:[%s35] sm:%s3]
    %s37 = scalar_lea.vmem [#allocation0], 72
    %38 = vst [vmem:[%s37] sm:%s3] %v36
    %s39 = smul.addr 4, 8
    %s40 = scalar_lea.vmem %s0, %s39
    %v41 = vld [vmem:[%s40] sm:%s3]
    %s42 = scalar_lea.vmem [#allocation0], 64
    %43 = vst [vmem:[%s42] sm:%s3] %v41
    %s44 = smul.addr 4, 7
    %s45 = scalar_lea.vmem %s0, %s44
    %v46 = vld [vmem:[%s45] sm:%s3]
    %s47 = scalar_lea.vmem [#allocation0], 56
    %48 = vst [vmem:[%s47] sm:%s3] %v46
    %s49 = smul.addr 4, 6
    %s50 = scalar_lea.vmem %s0, %s49
    %v51 = vld [vmem:[%s50] sm:%s3]
    %s52 = scalar_lea.vmem [#allocation0], 48
    %53 = vst [vmem:[%s52] sm:%s3] %v51
    %s54 = smul.addr 4, 5
    %s55 = scalar_lea.vmem %s0, %s54
    %v56 = vld [vmem:[%s55] sm:%s3]
    %s57 = scalar_lea.vmem [#allocation0], 40
    %58 = vst [vmem:[%s57] sm:%s3] %v56
    %s59 = smul.addr 4, 4
    %s60 = scalar_lea.vmem %s0, %s59
    %v61 = vld [vmem:[%s60] sm:%s3]
    %s62 = scalar_lea.vmem [#allocation0], 32
    %63 = vst [vmem:[%s62] sm:%s3] %v61
    %s64 = smul.addr 4, 3
    %s65 = scalar_lea.vmem %s0, %s64
    %v66 = vld [vmem:[%s65] sm:%s3]
    %s67 = scalar_lea.vmem [#allocation0], 24
    %68 = vst [vmem:[%s67] sm:%s3] %v66
    %s69 = smul.addr 4, 2
    %s70 = scalar_lea.vmem %s0, %s69
    %v71 = vld [vmem:[%s70] sm:%s3]
    %s72 = scalar_lea.vmem [#allocation0], 16
    %73 = vst [vmem:[%s72] sm:%s3] %v71
    %s74 = scalar_lea.vmem %s0, 4
    %v75 = vld [vmem:[%s74] sm:%s3]
    %s76 = scalar_lea.vmem [#allocation0], 8
    %77 = vst [vmem:[%s76] sm:%s3] %v75
    %v78 = vld [vmem:[%s0] sm:%s3]
    %79 = vst [vmem:[#allocation0] sm:%s3] %v78
    %v80 = vld [vmem:[#allocation0] ss:$8 sm:$0xf]
    %v81 = vld [vmem:[#allocation0] ss:$8 sm:$0xf0]
    %vm82 = vcmask 1047556
    %v83 = vsel %vm82, %v81, %v80
    %vm84 = vcmask 261120
    %85 = vst.msk [vmem:[%s1] sm:$0xff] %vm84, %v83
    %s86 = scalar_lea.vmem [#allocation0], 64
    %v87 = vld [vmem:[%s86] ss:$8 sm:$0xf]
    %s88 = scalar_lea.vmem [#allocation0], 64
    %v89 = vld [vmem:[%s88] ss:$8 sm:$0xf0]
    %vm90 = vcmask 1047556
    %v91 = vsel %vm90, %v89, %v87
    %vm92 = vcmask 261120
    %s93 = scalar_lea.vmem %s1, 8
    %94 = vst.msk [vmem:[%s93] sm:$0xff] %vm92, %v91
    %s95 = scalar_lea.vmem [#allocation0], 3
    %v96 = vld [vmem:[%s95] ss:$8 sm:$0xf]
    %s97 = scalar_lea.vmem [#allocation0], 3
    %v98 = vld [vmem:[%s97] ss:$8 sm:$0xf0]
    %vm99 = vcmask 1047556
    %v100 = vsel %vm99, %v98, %v96
    %101 = vrot.lane.b32.xlu0 %v100, 96
    %v102 = vpop.permute.xlu0 %101
    %vm103 = vcmask 1048320
    %104 = vst.msk [vmem:[%s1] sm:$0xff] %vm103, %v102
    %s105 = scalar_lea.vmem [#allocation0], 67
    %v106 = vld [vmem:[%s105] ss:$8 sm:$0xf]
    %s107 = scalar_lea.vmem [#allocation0], 67
    %v108 = vld [vmem:[%s107] ss:$8 sm:$0xf0]
    %vm109 = vcmask 1047556
    %v110 = vsel %vm109, %v108, %v106
    %111 = vrot.lane.b32.xlu0 %v110, 96
    %v112 = vpop.permute.xlu0 %111
    %vm113 = vcmask 1048320
    %s114 = scalar_lea.vmem %s1, 8
    %115 = vst.msk [vmem:[%s114] sm:$0xff] %vm113, %v112
    %s116 = scalar_lea.vmem [#allocation0], 2
    %v117 = vld [vmem:[%s116] ss:$8 sm:$0xf]
    %s118 = scalar_lea.vmem [#allocation0], 2
    %v119 = vld [vmem:[%s118] ss:$8 sm:$0xf0]
    %vm120 = vcmask 1047556
    %v121 = vsel %vm120, %v119, %v117
    %122 = vrot.lane.b32.xlu0 %v121, 64
    %v123 = vpop.permute.xlu0 %122
    %vm124 = vcmask 785920
    %125 = vst.msk [vmem:[%s1] sm:$0xff] %vm124, %v123
    %s126 = scalar_lea.vmem [#allocation0], 66
    %v127 = vld [vmem:[%s126] ss:$8 sm:$0xf]
    %s128 = scalar_lea.vmem [#allocation0], 66
    %v129 = vld [vmem:[%s128] ss:$8 sm:$0xf0]
    %vm130 = vcmask 1047556
    %v131 = vsel %vm130, %v129, %v127
    %132 = vrot.lane.b32.xlu0 %v131, 64
    %v133 = vpop.permute.xlu0 %132
    %vm134 = vcmask 785920
    %s135 = scalar_lea.vmem %s1, 8
    %136 = vst.msk [vmem:[%s135] sm:$0xff] %vm134, %v133
    %s137 = scalar_lea.vmem [#allocation0], 1
    %v138 = vld [vmem:[%s137] ss:$8 sm:$0xf]
    %s139 = scalar_lea.vmem [#allocation0], 1
    %v140 = vld [vmem:[%s139] ss:$8 sm:$0xf0]
    %vm141 = vcmask 1047556
    %v142 = vsel %vm141, %v140, %v138
    %143 = vrot.lane.b32.xlu0 %v142, 32
    %v144 = vpop.permute.xlu0 %143
    %vm145 = vcmask 523520
    %146 = vst.msk [vmem:[%s1] sm:$0xff] %vm145, %v144
    %s147 = scalar_lea.vmem [#allocation0], 65
    %v148 = vld [vmem:[%s147] ss:$8 sm:$0xf]
    %s149 = scalar_lea.vmem [#allocation0], 65
    %v150 = vld [vmem:[%s149] ss:$8 sm:$0xf0]
    %vm151 = vcmask 1047556
    %v152 = vsel %vm151, %v150, %v148
    %153 = vrot.lane.b32.xlu0 %v152, 32
    %v154 = vpop.permute.xlu0 %153
    %vm155 = vcmask 523520
    %s156 = scalar_lea.vmem %s1, 8
    %157 = vst.msk [vmem:[%s156] sm:$0xff] %vm155, %v154

// kernel: simple_pfn_forward.1
$region0: #{simple_pfn_forward.1}
  #allocation0 [shape = 'u32[]', space=smem, size = 0x4, offset = 0x4, fixed_abs, tag = 'smem constant byte address 0x4 - core index']
  #allocation1 [shape = 'u32[144,128]{1,0:T(1,128)}', space=vmem, size = 0x12000, scoped, tag = 'internal scratch']
  %s0 = inlined_call_operand.vmem [shape: f32[8,16,24], index: 0, kind: input, shape index: {}]
  %s1 = inlined_call_operand.vmem [shape: f32[16,128], index: 1, kind: input, shape index: {}]
  %s2 = inlined_call_operand.vmem [shape: f32[24,128], index: 2, kind: input, shape index: {}]
  %s3 = inlined_call_operand.vmem [shape: f32[128,256], index: 3, kind: input, shape index: {}]
  %s4 = inlined_call_operand.vmem [shape: f32[128,256], index: 4, kind: input, shape index: {}]
  %s5 = inlined_call_operand.vmem [shape: f32[256,16], index: 5, kind: input, shape index: {}]
  %s6 = inlined_call_operand.vmem [shape: f32[16,256], index: 6, kind: input, shape index: {}]
  %s7 = inlined_call_operand.vmem [shape: f32[16,16], index: 7, kind: input, shape index: {}]
  %s8 = inlined_call_operand.vmem [shape: f32[256,128], index: 8, kind: input, shape index: {}]
  %s9 = inlined_call_operand.vmem [shape: f32[128,256], index: 9, kind: input, shape index: {}]
  %s10 = inlined_call_operand.vmem [shape: f32[256,128], index: 10, kind: input, shape index: {}]
  %s11 = inlined_call_operand.vmem [shape: f32[128,128], index: 11, kind: input, shape index: {}]
  %s12 = inlined_call_operand.vmem [shape: f32[128,4], index: 12, kind: input, shape index: {}]
  %s13 = inlined_call_operand.vmem [shape: f32[4,128], index: 13, kind: input, shape index: {}]
  %s14 = inlined_call_operand.vmem [shape: f32[2,256], index: 14, kind: input, shape index: {}]
  %s15 = inlined_call_operand.vmem [shape: f32[1,256], index: 15, kind: input, shape index: {}]
  %s16 = inlined_call_operand.vmem [shape: f32[6,128], index: 16, kind: input, shape index: {}]
  %s17 = inlined_call_operand.vmem [shape: f32[1,128], index: 17, kind: input, shape index: {}]
  %s18 = inlined_call_operand.vmem [shape: f32[8,128], index: 18, kind: output, shape index: {}]
  %s19 = sld [smem:[#allocation0]]
  $region82: #{simple_pfn_forward.1} parent=0
    _
  %s21 = ssub.s32 1, %s19
  %s22 = scalar_select 0, %s21, %s19
  // Predicated region
  $region2: #{simple_pfn_forward.1} parent=0 // pred_check
    _
  $region3: #{simple_pfn_forward.1} parent=0 // pred_check_branch
    %24 = sbr.rel (0) target = $region5
  $region4: #{simple_pfn_forward.1} parent=0 // pred_region
    _
  $region5: #{simple_pfn_forward.1} parent=0 // pred_fallthru
    _
  // Predicated region
  $region6: #{simple_pfn_forward.1} parent=0 // pred_check
    _
  $region7: #{simple_pfn_forward.1} parent=0 // pred_check_branch
    %26 = sbr.rel (0) target = $region9
  $region8: #{simple_pfn_forward.1} parent=0 // pred_region
    _
  $region9: #{simple_pfn_forward.1} parent=0 // pred_fallthru
    _
  // Predicated region
  $region10: #{simple_pfn_forward.1} parent=0 // pred_check
    _
  $region11: #{simple_pfn_forward.1} parent=0 // pred_check_branch
    %28 = sbr.rel (0) target = $region13
  $region12: #{simple_pfn_forward.1} parent=0 // pred_region
    _
  $region13: #{simple_pfn_forward.1} parent=0 // pred_fallthru
    _
  // Predicated region
  $region14: #{simple_pfn_forward.1} parent=0 // pred_check
    _
  $region15: #{simple_pfn_forward.1} parent=0 // pred_check_branch
    %30 = sbr.rel (0) target = $region17
  $region16: #{simple_pfn_forward.1} parent=0 // pred_region
    _
  $region17: #{simple_pfn_forward.1} parent=0 // pred_fallthru
    _
  // Predicated region
  $region18: #{simple_pfn_forward.1} parent=0 // pred_check
    _
  $region19: #{simple_pfn_forward.1} parent=0 // pred_check_branch
    %32 = sbr.rel (0) target = $region21
  $region20: #{simple_pfn_forward.1} parent=0 // pred_region
    _
  $region21: #{simple_pfn_forward.1} parent=0 // pred_fallthru
    _
  // Predicated region
  $region22: #{simple_pfn_forward.1} parent=0 // pred_check
    _
  $region23: #{simple_pfn_forward.1} parent=0 // pred_check_branch
    %34 = sbr.rel (0) target = $region25
  $region24: #{simple_pfn_forward.1} parent=0 // pred_region
    _
  $region25: #{simple_pfn_forward.1} parent=0 // pred_fallthru
    _
  // Predicated region
  $region26: #{simple_pfn_forward.1} parent=0 // pred_check
    _
  $region27: #{simple_pfn_forward.1} parent=0 // pred_check_branch
    %36 = sbr.rel (0) target = $region29
  $region28: #{simple_pfn_forward.1} parent=0 // pred_region
    _
  $region29: #{simple_pfn_forward.1} parent=0 // pred_fallthru
    _
  // Predicated region
  $region30: #{simple_pfn_forward.1} parent=0 // pred_check
    _
  $region31: #{simple_pfn_forward.1} parent=0 // pred_check_branch
    %38 = sbr.rel (0) target = $region33
  $region32: #{simple_pfn_forward.1} parent=0 // pred_region
    _
  $region33: #{simple_pfn_forward.1} parent=0 // pred_fallthru
    _
  // Predicated region
  $region34: #{simple_pfn_forward.1} parent=0 // pred_check
    _
  $region35: #{simple_pfn_forward.1} parent=0 // pred_check_branch
    %40 = sbr.rel (0) target = $region37
  $region36: #{simple_pfn_forward.1} parent=0 // pred_region
    _
  $region37: #{simple_pfn_forward.1} parent=0 // pred_fallthru
    _
  // Predicated region
  $region38: #{simple_pfn_forward.1} parent=0 // pred_check
    _
  $region39: #{simple_pfn_forward.1} parent=0 // pred_check_branch
    %42 = sbr.rel (0) target = $region41
  $region40: #{simple_pfn_forward.1} parent=0 // pred_region
    _
  $region41: #{simple_pfn_forward.1} parent=0 // pred_fallthru
    _
  // Predicated region
  $region42: #{simple_pfn_forward.1} parent=0 // pred_check
    _
  $region43: #{simple_pfn_forward.1} parent=0 // pred_check_branch
    %44 = sbr.rel (0) target = $region45
  $region44: #{simple_pfn_forward.1} parent=0 // pred_region
    _
  $region45: #{simple_pfn_forward.1} parent=0 // pred_fallthru
    _
  // Predicated region
  $region46: #{simple_pfn_forward.1} parent=0 // pred_check
    _
  $region47: #{simple_pfn_forward.1} parent=0 // pred_check_branch
    %46 = sbr.rel (0) target = $region49
  $region48: #{simple_pfn_forward.1} parent=0 // pred_region
    _
  $region49: #{simple_pfn_forward.1} parent=0 // pred_fallthru
    _
  // Predicated region
  $region50: #{simple_pfn_forward.1} parent=0 // pred_check
    _
  $region51: #{simple_pfn_forward.1} parent=0 // pred_check_branch
    %48 = sbr.rel (0) target = $region53
  $region52: #{simple_pfn_forward.1} parent=0 // pred_region
    _
  $region53: #{simple_pfn_forward.1} parent=0 // pred_fallthru
    _
  // Predicated region
  $region54: #{simple_pfn_forward.1} parent=0 // pred_check
    _
  $region55: #{simple_pfn_forward.1} parent=0 // pred_check_branch
    %50 = sbr.rel (0) target = $region57
  $region56: #{simple_pfn_forward.1} parent=0 // pred_region
    _
  $region57: #{simple_pfn_forward.1} parent=0 // pred_fallthru
    _
  // Predicated region
  $region58: #{simple_pfn_forward.1} parent=0 // pred_check
    _
  $region59: #{simple_pfn_forward.1} parent=0 // pred_check_branch
    %52 = sbr.rel (0) target = $region61
  $region60: #{simple_pfn_forward.1} parent=0 // pred_region
    _
  $region61: #{simple_pfn_forward.1} parent=0 // pred_fallthru
    _
  // Predicated region
  $region62: #{simple_pfn_forward.1} parent=0 // pred_check
    _
  $region63: #{simple_pfn_forward.1} parent=0 // pred_check_branch
    %54 = sbr.rel (0) target = $region65
  $region64: #{simple_pfn_forward.1} parent=0 // pred_region
    _
  $region65: #{simple_pfn_forward.1} parent=0 // pred_fallthru
    _
  // Predicated region
  $region66: #{simple_pfn_forward.1} parent=0 // pred_check
    _
  $region67: #{simple_pfn_forward.1} parent=0 // pred_check_branch
    %56 = sbr.rel (0) target = $region69
  $region68: #{simple_pfn_forward.1} parent=0 // pred_region
    _
  $region69: #{simple_pfn_forward.1} parent=0 // pred_fallthru
    _
  // Predicated region
  $region70: #{simple_pfn_forward.1} parent=0 // pred_check
    _
  $region71: #{simple_pfn_forward.1} parent=0 // pred_check_branch
    %58 = sbr.rel (0) target = $region73
  $region72: #{simple_pfn_forward.1} parent=0 // pred_region
    _
  $region73: #{simple_pfn_forward.1} parent=0 // pred_fallthru
    _
  %v59 = vld [vmem:[%s0] sm:$0xff]
  %v60 = vld [vmem:[%s0 + $0x8] sm:$0xff]
  %v61 = vld [vmem:[%s0 + $0x10] sm:$0xff]
  %v62 = vld [vmem:[%s0 + $0x18] sm:$0xff]
  %v63 = vld [vmem:[%s0 + $0x20] sm:$0xff]
  %v64 = vld [vmem:[%s0 + $0x28] sm:$0xff]
  %v65 = vld [vmem:[%s0 + $0x30] sm:$0xff]
  %v66 = vld [vmem:[%s0 + $0x38] sm:$0xff]
  %v67 = vld [vmem:[%s0 + $0x40] sm:$0xff]
  %v68 = vld [vmem:[%s0 + $0x48] sm:$0xff]
  %v69 = vld [vmem:[%s0 + $0x50] sm:$0xff]
  %v70 = vld [vmem:[%s0 + $0x58] sm:$0xff]
  %v71 = vld [vmem:[%s0 + $0x60] sm:$0xff]
  %v72 = vld [vmem:[%s0 + $0x68] sm:$0xff]
  %v73 = vld [vmem:[%s0 + $0x70] sm:$0xff]
  %v74 = vld [vmem:[%s0 + $0x78] sm:$0xff]
  %v75 = vld [vmem:[%s2] sm:$0xff]
  %v76 = vld [vmem:[%s2 + $0x8] sm:$0xff]
  %v77 = vld [vmem:[%s2 + $0x10] sm:$0xff]
  %vm78 = vcmask 195584
  %v80 = vsel %vm78, %v59, 0
  %v83 = vsel %vm78, %v60, 0
  %v86 = vsel %vm78, %v61, 0
  %v89 = vsel %vm78, %v62, 0
  %v92 = vsel %vm78, %v63, 0
  %v95 = vsel %vm78, %v64, 0
  %v98 = vsel %vm78, %v65, 0
  %v101 = vsel %vm78, %v66, 0
  %v104 = vsel %vm78, %v67, 0
  %v107 = vsel %vm78, %v68, 0
  %v110 = vsel %vm78, %v69, 0
  %v113 = vsel %vm78, %v70, 0
  %v116 = vsel %vm78, %v71, 0
  %v119 = vsel %vm78, %v72, 0
  %v122 = vsel %vm78, %v73, 0
  %v125 = vsel %vm78, %v74, 0
  %127 = vmatprep.subr.mxu0 0.0
  %128 = vmatpush1.msra.mxu0 %v75
  %129 = vmatprep.subr.mxu0 0.0
  %130 = vmatpush1.msra.mxu0 %v76
  %131 = vmatprep.subr.mxu0 0.0
  %132 = vmatpush1.msra.mxu0 %v77
  %133 = vmatprep.subr.mxu0 0.0
  %134 = vmatpush1.msra.mxu0 0.0
  %135 = vmatprep.subr.mxu0 0.0
  %136 = vmatpush1.msra.mxu0 0.0
  %137 = vmatprep.subr.mxu0 0.0
  %138 = vmatpush1.msra.mxu0 0.0
  %139 = vmatprep.subr.mxu0 0.0
  %140 = vmatpush1.msra.mxu0 0.0
  %141 = vmatprep.subr.mxu0 0.0
  %142 = vmatpush1.msra.mxu0 0.0
  %143 = vmatprep.subr.mxu0 0.0
  %144 = vmatpush1.msra.mxu0 0.0
  %145 = vmatprep.subr.mxu0 0.0
  %146 = vmatpush1.msra.mxu0 0.0
  %147 = vmatprep.subr.mxu0 0.0
  %148 = vmatpush1.msra.mxu0 0.0
  %149 = vmatprep.subr.mxu0 0.0
  %150 = vmatpush1.msra.mxu0 0.0
  %151 = vmatprep.subr.mxu0 0.0
  %152 = vmatpush1.msra.mxu0 0.0
  %153 = vmatprep.subr.mxu0 0.0
  %154 = vmatpush1.msra.mxu0 0.0
  %155 = vmatprep.subr.mxu0 0.0
  %156 = vmatpush1.msra.mxu0 0.0
  %157 = vmatprep.subr.mxu0 0.0
  %158 = vmatpush1.msra.mxu0 0.0
  %159 = vmatprep.subr.mxu0 0.0
  %160 = vmatpush1.msra.mxu0 0.0
  %161 = vmatprep.subr.mxu0 0.0
  %162 = vmatpush1.msra.mxu0 0.0
  %163 = vmatprep.subr.mxu0 0.0
  %164 = vmatpush1.msra.mxu0 0.0
  %165 = vmatprep.subr.mxu0 0.0
  %166 = vmatpush1.msra.mxu0 0.0
  %167 = vmatprep.subr.mxu0 0.0
  %168 = vmatpush1.msra.mxu0 0.0
  %169 = vmatprep.subr.mxu0 0.0
  %170 = vmatpush1.msra.mxu0 0.0
  %171 = vmatprep.subr.mxu0 0.0
  %172 = vmatpush1.msra.mxu0 0.0
  %173 = vmatprep.subr.mxu0 0.0
  %174 = vmatpush1.msra.mxu0 0.0
  %175 = vmatprep.subr.mxu0 0.0
  %176 = vmatpush1.msra.mxu0 0.0
  %177 = vmatprep.subr.mxu0 0.0
  %178 = vmatpush1.msra.mxu0 0.0
  %179 = vmatprep.subr.mxu0 0.0
  %180 = vmatpush1.msra.mxu0 0.0
  %181 = vmatprep.subr.mxu0 0.0
  %182 = vmatpush1.msra.mxu0 0.0
  %183 = vmatprep.subr.mxu0 0.0
  %184 = vmatpush1.msra.mxu0 0.0
  %185 = vmatprep.subr.mxu0 0.0
  %186 = vmatpush1.msra.mxu0 0.0
  %187 = vmatprep.subr.mxu0 0.0
  %188 = vmatpush1.msra.mxu0 0.0
  %189 = vmatprep.subr.mxu0 0.0
  %190 = vmatpush1.msra.mxu0 0.0
  %191 = vmatprep.mubr.f32.mxu0 0.0
  %192 = vmatmul.mubr.f32.gmra.mrb[0].mxu0 %v80
  %v193 = vpop.f32.mrb[0].mxu0
  %v194 = vadd.f32 0.0, %v193
  %v195 = vpop.f32.mrb[0].mxu0
  %196 = vmatprep.mubr.f32.mxu0 0.0
  %197 = vmatmul.mubr.f32.gmra.mrb[0].mxu0 %v83
  %v198 = vpop.f32.mrb[0].mxu0
  %v199 = vadd.f32 0.0, %v198
  %v200 = vpop.f32.mrb[0].mxu0
  %201 = vmatprep.mubr.f32.mxu0 0.0
  %202 = vmatmul.mubr.f32.gmra.mrb[0].mxu0 %v86
  %v203 = vpop.f32.mrb[0].mxu0
  %v204 = vadd.f32 0.0, %v203
  %v205 = vpop.f32.mrb[0].mxu0
  %206 = vmatprep.mubr.f32.mxu0 0.0
  %207 = vmatmul.mubr.f32.gmra.mrb[0].mxu0 %v89
  %v208 = vpop.f32.mrb[0].mxu0
  %v209 = vadd.f32 0.0, %v208
  %v210 = vpop.f32.mrb[0].mxu0
  %211 = vmatprep.mubr.f32.mxu0 0.0
  %212 = vmatmul.mubr.f32.gmra.mrb[0].mxu0 %v92
  %v213 = vpop.f32.mrb[0].mxu0
  %v214 = vadd.f32 0.0, %v213
  %v215 = vpop.f32.mrb[0].mxu0
  %216 = vmatprep.mubr.f32.mxu0 0.0
  %217 = vmatmul.mubr.f32.gmra.mrb[0].mxu0 %v95
  %v218 = vpop.f32.mrb[0].mxu0
  %v219 = vadd.f32 0.0, %v218
  %v220 = vpop.f32.mrb[0].mxu0
  %221 = vmatprep.mubr.f32.mxu0 0.0
  %222 = vmatmul.mubr.f32.gmra.mrb[0].mxu0 %v98
  %v223 = vpop.f32.mrb[0].mxu0
  %v224 = vadd.f32 0.0, %v223
  %v225 = vpop.f32.mrb[0].mxu0
  %226 = vmatprep.mubr.f32.mxu0 0.0
  %227 = vmatmul.mubr.f32.gmra.mrb[0].mxu0 %v101
  %v228 = vpop.f32.mrb[0].mxu0
  %v229 = vadd.f32 0.0, %v228
  %v230 = vpop.f32.mrb[0].mxu0
  %231 = vmatprep.mubr.f32.mxu0 0.0
  %232 = vmatmul.mubr.f32.gmra.mrb[0].mxu0 %v104
  %v233 = vpop.f32.mrb[0].mxu0
  %v234 = vadd.f32 0.0, %v233
  %v235 = vpop.f32.mrb[0].mxu0
  %236 = vmatprep.mubr.f32.mxu0 0.0
  %237 = vmatmul.mubr.f32.gmra.mrb[0].mxu0 %v107
  %v238 = vpop.f32.mrb[0].mxu0
  %v239 = vadd.f32 0.0, %v238
  %v240 = vpop.f32.mrb[0].mxu0
  %241 = vmatprep.mubr.f32.mxu0 0.0
  %242 = vmatmul.mubr.f32.gmra.mrb[0].mxu0 %v110
  %v243 = vpop.f32.mrb[0].mxu0
  %v244 = vadd.f32 0.0, %v243
  %v245 = vpop.f32.mrb[0].mxu0
  %246 = vmatprep.mubr.f32.mxu0 0.0
  %247 = vmatmul.mubr.f32.gmra.mrb[0].mxu0 %v113
  %v248 = vpop.f32.mrb[0].mxu0
  %v249 = vadd.f32 0.0, %v248
  %v250 = vpop.f32.mrb[0].mxu0
  %251 = vmatprep.mubr.f32.mxu0 0.0
  %252 = vmatmul.mubr.f32.gmra.mrb[0].mxu0 %v116
  %v253 = vpop.f32.mrb[0].mxu0
  %v254 = vadd.f32 0.0, %v253
  %v255 = vpop.f32.mrb[0].mxu0
  %256 = vmatprep.mubr.f32.mxu0 0.0
  %257 = vmatmul.mubr.f32.gmra.mrb[0].mxu0 %v119
  %v258 = vpop.f32.mrb[0].mxu0
  %v259 = vadd.f32 0.0, %v258
  %v260 = vpop.f32.mrb[0].mxu0
  %261 = vmatprep.mubr.f32.mxu0 0.0
  %262 = vmatmul.mubr.f32.gmra.mrb[0].mxu0 %v122
  %v263 = vpop.f32.mrb[0].mxu0
  %v264 = vadd.f32 0.0, %v263
  %v265 = vpop.f32.mrb[0].mxu0
  %266 = vmatprep.mubr.f32.mxu0 0.0
  %267 = vmatmul.mubr.f32.gmra.mrb[0].mxu0 %v125
  %v268 = vpop.f32.mrb[0].mxu0
  %v269 = vadd.f32 0.0, %v268
  %v270 = vpop.f32.mrb[0].mxu0
  %271 = vdwg.mxu0
  %v272 = vld [vmem:[%s1] sm:$0xff]
  %v273 = vld [vmem:[%s1 + $0x8] sm:$0xff]
  %v274 = vadd.f32 %v194, %v272
  %v275 = vadd.f32 %v199, %v273
  %v276 = vadd.f32 %v204, %v272
  %v277 = vadd.f32 %v209, %v273
  %v278 = vadd.f32 %v214, %v272
  %v279 = vadd.f32 %v219, %v273
  %v280 = vadd.f32 %v224, %v272
  %v281 = vadd.f32 %v229, %v273
  %v282 = vadd.f32 %v234, %v272
  %v283 = vadd.f32 %v239, %v273
  %v284 = vadd.f32 %v244, %v272
  %v285 = vadd.f32 %v249, %v273
  %v286 = vadd.f32 %v254, %v272
  %v287 = vadd.f32 %v259, %v273
  %v288 = vadd.f32 %v264, %v272
  %v289 = vadd.f32 %v269, %v273
  %v290 = vld [vmem:[%s3] sm:$0xff]
  %v291 = vld [vmem:[%s3 + $0x8] sm:$0xff]
  %v292 = vld [vmem:[%s3 + $0x10] sm:$0xff]
  %v293 = vld [vmem:[%s3 + $0x18] sm:$0xff]
  %v294 = vld [vmem:[%s3 + $0x20] sm:$0xff]
  %v295 = vld [vmem:[%s3 + $0x28] sm:$0xff]
  %v296 = vld [vmem:[%s3 + $0x30] sm:$0xff]
  %v297 = vld [vmem:[%s3 + $0x38] sm:$0xff]
  %v298 = vld [vmem:[%s3 + $0x40] sm:$0xff]
  %v299 = vld [vmem:[%s3 + $0x48] sm:$0xff]
  %v300 = vld [vmem:[%s3 + $0x50] sm:$0xff]
  %v301 = vld [vmem:[%s3 + $0x58] sm:$0xff]
  %v302 = vld [vmem:[%s3 + $0x60] sm:$0xff]
  %v303 = vld [vmem:[%s3 + $0x68] sm:$0xff]
  %v304 = vld [vmem:[%s3 + $0x70] sm:$0xff]
  %v305 = vld [vmem:[%s3 + $0x78] sm:$0xff]
  %v306 = vld [vmem:[%s3 + $0x80] sm:$0xff]
  %v307 = vld [vmem:[%s3 + $0x88] sm:$0xff]
  %v308 = vld [vmem:[%s3 + $0x90] sm:$0xff]
  %v309 = vld [vmem:[%s3 + $0x98] sm:$0xff]
  %v310 = vld [vmem:[%s3 + $0xa0] sm:$0xff]
  %v311 = vld [vmem:[%s3 + $0xa8] sm:$0xff]
  %v312 = vld [vmem:[%s3 + $0xb0] sm:$0xff]
  %v313 = vld [vmem:[%s3 + $0xb8] sm:$0xff]
  %v314 = vld [vmem:[%s3 + $0xc0] sm:$0xff]
  %v315 = vld [vmem:[%s3 + $0xc8] sm:$0xff]
  %v316 = vld [vmem:[%s3 + $0xd0] sm:$0xff]
  %v317 = vld [vmem:[%s3 + $0xd8] sm:$0xff]
  %v318 = vld [vmem:[%s3 + $0xe0] sm:$0xff]
  %v319 = vld [vmem:[%s3 + $0xe8] sm:$0xff]
  %v320 = vld [vmem:[%s3 + $0xf0] sm:$0xff]
  %v321 = vld [vmem:[%s3 + $0xf8] sm:$0xff]
  %v322 = vld [vmem:[%s14] ss:$2 sm:$0x3]
  %v324 = vlaneseq
  %v325 = vshrl.u32 %v324, 7
  %v326 = vsub.s32 0, %v325
  %v327 = vrot.slane %v322, %v326
  %v328 = vlaneseq
  %v329 = vshrl.u32 %v328, 7
  %v330 = vsub.s32 1, %v329
  %v331 = vrot.slane %v322, %v330
  %334 = vmatprep.subr.mxu0 %v291
  %335 = vmatpush1.msra.mxu0 %v290
  %336 = vmatprep.subr.mxu0 %v293
  %337 = vmatpush1.msra.mxu0 %v292
  %338 = vmatprep.subr.mxu0 %v295
  %339 = vmatpush1.msra.mxu0 %v294
  %340 = vmatprep.subr.mxu0 %v297
  %341 = vmatpush1.msra.mxu0 %v296
  %342 = vmatprep.subr.mxu0 %v299
  %343 = vmatpush1.msra.mxu0 %v298
  %344 = vmatprep.subr.mxu0 %v301
  %345 = vmatpush1.msra.mxu0 %v300
  %346 = vmatprep.subr.mxu0 %v303
  %347 = vmatpush1.msra.mxu0 %v302
  %348 = vmatprep.subr.mxu0 %v305
  %349 = vmatpush1.msra.mxu0 %v304
  %350 = vmatprep.subr.mxu0 %v307
  %351 = vmatpush1.msra.mxu0 %v306
  %352 = vmatprep.subr.mxu0 %v309
  %353 = vmatpush1.msra.mxu0 %v308
  %354 = vmatprep.subr.mxu0 %v311
  %355 = vmatpush1.msra.mxu0 %v310
  %356 = vmatprep.subr.mxu0 %v313
  %357 = vmatpush1.msra.mxu0 %v312
  %358 = vmatprep.subr.mxu0 %v315
  %359 = vmatpush1.msra.mxu0 %v314
  %360 = vmatprep.subr.mxu0 %v317
  %361 = vmatpush1.msra.mxu0 %v316
  %362 = vmatprep.subr.mxu0 %v319
  %363 = vmatpush1.msra.mxu0 %v318
  %364 = vmatprep.subr.mxu0 %v321
  %365 = vmatpush1.msra.mxu0 %v320
  %366 = vmatprep.subr.mxu0 0.0
  %367 = vmatpush1.msra.mxu0 0.0
  %368 = vmatprep.subr.mxu0 0.0
  %369 = vmatpush1.msra.mxu0 0.0
  %370 = vmatprep.subr.mxu0 0.0
  %371 = vmatpush1.msra.mxu0 0.0
  %372 = vmatprep.subr.mxu0 0.0
  %373 = vmatpush1.msra.mxu0 0.0
  %374 = vmatprep.subr.mxu0 0.0
  %375 = vmatpush1.msra.mxu0 0.0
  %376 = vmatprep.subr.mxu0 0.0
  %377 = vmatpush1.msra.mxu0 0.0
  %378 = vmatprep.subr.mxu0 0.0
  %379 = vmatpush1.msra.mxu0 0.0
  %380 = vmatprep.subr.mxu0 0.0
  %381 = vmatpush1.msra.mxu0 0.0
  %382 = vmatprep.subr.mxu0 0.0
  %383 = vmatpush1.msra.mxu0 0.0
  %384 = vmatprep.subr.mxu0 0.0
  %385 = vmatpush1.msra.mxu0 0.0
  %386 = vmatprep.subr.mxu0 0.0
  %387 = vmatpush1.msra.mxu0 0.0
  %388 = vmatprep.subr.mxu0 0.0
  %389 = vmatpush1.msra.mxu0 0.0
  %390 = vmatprep.subr.mxu0 0.0
  %391 = vmatpush1.msra.mxu0 0.0
  %392 = vmatprep.subr.mxu0 0.0
  %393 = vmatpush1.msra.mxu0 0.0
  %394 = vmatprep.subr.mxu0 0.0
  %395 = vmatpush1.msra.mxu0 0.0
  %396 = vmatprep.subr.mxu0 0.0
  %397 = vmatpush1.msra.mxu0 0.0
  %398 = vmatprep.mubr.f32.mxu0 0.0
  %399 = vmatmul.mubr.f32.gmra.mrb[0].mxu0 %v274
  %v400 = vpop.f32.mrb[0].mxu0
  %v401 = vadd.f32 %v327, %v400
  %v402 = vpop.f32.mrb[0].mxu0
  %v403 = vadd.f32 %v331, %v402
  %404 = vmatprep.mubr.f32.mxu0 0.0
  %405 = vmatmul.mubr.f32.gmra.mrb[0].mxu0 %v275
  %v406 = vpop.f32.mrb[0].mxu0
  %v407 = vadd.f32 %v327, %v406
  %v408 = vpop.f32.mrb[0].mxu0
  %v409 = vadd.f32 %v331, %v408
  %410 = vmatprep.mubr.f32.mxu0 0.0
  %411 = vmatmul.mubr.f32.gmra.mrb[0].mxu0 %v276
  %v412 = vpop.f32.mrb[0].mxu0
  %v413 = vadd.f32 %v327, %v412
  %v414 = vpop.f32.mrb[0].mxu0
  %v415 = vadd.f32 %v331, %v414
  %416 = vmatprep.mubr.f32.mxu0 0.0
  %417 = vmatmul.mubr.f32.gmra.mrb[0].mxu0 %v277
  %v418 = vpop.f32.mrb[0].mxu0
  %v419 = vadd.f32 %v327, %v418
  %v420 = vpop.f32.mrb[0].mxu0
  %v421 = vadd.f32 %v331, %v420
  %422 = vmatprep.mubr.f32.mxu0 0.0
  %423 = vmatmul.mubr.f32.gmra.mrb[0].mxu0 %v278
  %v424 = vpop.f32.mrb[0].mxu0
  %v425 = vadd.f32 %v327, %v424
  %v426 = vpop.f32.mrb[0].mxu0
  %v427 = vadd.f32 %v331, %v426
  %428 = vmatprep.mubr.f32.mxu0 0.0
  %429 = vmatmul.mubr.f32.gmra.mrb[0].mxu0 %v279
  %v430 = vpop.f32.mrb[0].mxu0
  %v431 = vadd.f32 %v327, %v430
  %v432 = vpop.f32.mrb[0].mxu0
  %v433 = vadd.f32 %v331, %v432
  %434 = vmatprep.mubr.f32.mxu0 0.0
  %435 = vmatmul.mubr.f32.gmra.mrb[0].mxu0 %v280
  %v436 = vpop.f32.mrb[0].mxu0
  %v437 = vadd.f32 %v327, %v436
  %v438 = vpop.f32.mrb[0].mxu0
  %v439 = vadd.f32 %v331, %v438
  %440 = vmatprep.mubr.f32.mxu0 0.0
  %441 = vmatmul.mubr.f32.gmra.mrb[0].mxu0 %v281
  %v442 = vpop.f32.mrb[0].mxu0
  %v443 = vadd.f32 %v327, %v442
  %v444 = vpop.f32.mrb[0].mxu0
  %v445 = vadd.f32 %v331, %v444
  %446 = vmatprep.mubr.f32.mxu0 0.0
  %447 = vmatmul.mubr.f32.gmra.mrb[0].mxu0 %v282
  %v448 = vpop.f32.mrb[0].mxu0
  %v449 = vadd.f32 %v327, %v448
  %v450 = vpop.f32.mrb[0].mxu0
  %v451 = vadd.f32 %v331, %v450
  %452 = vmatprep.mubr.f32.mxu0 0.0
  %453 = vmatmul.mubr.f32.gmra.mrb[0].mxu0 %v283
  %v454 = vpop.f32.mrb[0].mxu0
  %v455 = vadd.f32 %v327, %v454
  %v456 = vpop.f32.mrb[0].mxu0
  %v457 = vadd.f32 %v331, %v456
  %458 = vmatprep.mubr.f32.mxu0 0.0
  %459 = vmatmul.mubr.f32.gmra.mrb[0].mxu0 %v284
  %v460 = vpop.f32.mrb[0].mxu0
  %v461 = vadd.f32 %v327, %v460
  %v462 = vpop.f32.mrb[0].mxu0
  %v463 = vadd.f32 %v331, %v462
  %464 = vmatprep.mubr.f32.mxu0 0.0
  %465 = vmatmul.mubr.f32.gmra.mrb[0].mxu0 %v285
  %v466 = vpop.f32.mrb[0].mxu0
  %v467 = vadd.f32 %v327, %v466
  %v468 = vpop.f32.mrb[0].mxu0
  %v469 = vadd.f32 %v331, %v468
  %470 = vmatprep.mubr.f32.mxu0 0.0
  %471 = vmatmul.mubr.f32.gmra.mrb[0].mxu0 %v286
  %v472 = vpop.f32.mrb[0].mxu0
  %v473 = vadd.f32 %v327, %v472
  %v474 = vpop.f32.mrb[0].mxu0
  %v475 = vadd.f32 %v331, %v474
  %476 = vmatprep.mubr.f32.mxu0 0.0
  %477 = vmatmul.mubr.f32.gmra.mrb[0].mxu0 %v287
  %v478 = vpop.f32.mrb[0].mxu0
  %v479 = vadd.f32 %v327, %v478
  %v480 = vpop.f32.mrb[0].mxu0
  %v481 = vadd.f32 %v331, %v480
  %482 = vmatprep.mubr.f32.mxu0 0.0
  %483 = vmatmul.mubr.f32.gmra.mrb[0].mxu0 %v288
  %v484 = vpop.f32.mrb[0].mxu0
  %v485 = vadd.f32 %v327, %v484
  %v486 = vpop.f32.mrb[0].mxu0
  %v487 = vadd.f32 %v331, %v486
  %488 = vmatprep.mubr.f32.mxu0 0.0
  %489 = vmatmul.mubr.f32.gmra.mrb[0].mxu0 %v289
  %v490 = vpop.f32.mrb[0].mxu0
  %v491 = vadd.f32 %v327, %v490
  %v492 = vpop.f32.mrb[0].mxu0
  %v493 = vadd.f32 %v331, %v492
  %494 = vdwg.mxu0
  %v495 = vld [vmem:[%s4] sm:$0xff]
  %v496 = vld [vmem:[%s4 + $0x8] sm:$0xff]
  %v497 = vld [vmem:[%s4 + $0x10] sm:$0xff]
  %v498 = vld [vmem:[%s4 + $0x18] sm:$0xff]
  %v499 = vld [vmem:[%s4 + $0x20] sm:$0xff]
  %v500 = vld [vmem:[%s4 + $0x28] sm:$0xff]
  %v501 = vld [vmem:[%s4 + $0x30] sm:$0xff]
  %v502 = vld [vmem:[%s4 + $0x38] sm:$0xff]
  %v503 = vld [vmem:[%s4 + $0x40] sm:$0xff]
  %v504 = vld [vmem:[%s4 + $0x48] sm:$0xff]
  %v505 = vld [vmem:[%s4 + $0x50] sm:$0xff]
  %v506 = vld [vmem:[%s4 + $0x58] sm:$0xff]
  %v507 = vld [vmem:[%s4 + $0x60] sm:$0xff]
  %v508 = vld [vmem:[%s4 + $0x68] sm:$0xff]
  %v509 = vld [vmem:[%s4 + $0x70] sm:$0xff]
  %v510 = vld [vmem:[%s4 + $0x78] sm:$0xff]
  %v511 = vld [vmem:[%s4 + $0x80] sm:$0xff]
  %v512 = vld [vmem:[%s4 + $0x88] sm:$0xff]
  %v513 = vld [vmem:[%s4 + $0x90] sm:$0xff]
  %v514 = vld [vmem:[%s4 + $0x98] sm:$0xff]
  %v515 = vld [vmem:[%s4 + $0xa0] sm:$0xff]
  %v516 = vld [vmem:[%s4 + $0xa8] sm:$0xff]
  %v517 = vld [vmem:[%s4 + $0xb0] sm:$0xff]
  %v518 = vld [vmem:[%s4 + $0xb8] sm:$0xff]
  %v519 = vld [vmem:[%s4 + $0xc0] sm:$0xff]
  %v520 = vld [vmem:[%s4 + $0xc8] sm:$0xff]
  %v521 = vld [vmem:[%s4 + $0xd0] sm:$0xff]
  %v522 = vld [vmem:[%s4 + $0xd8] sm:$0xff]
  %v523 = vld [vmem:[%s4 + $0xe0] sm:$0xff]
  %v524 = vld [vmem:[%s4 + $0xe8] sm:$0xff]
  %v525 = vld [vmem:[%s4 + $0xf0] sm:$0xff]
  %v526 = vld [vmem:[%s4 + $0xf8] sm:$0xff]
  %s527 = scalar_lea.vmem %s14, 1
  %v528 = vld [vmem:[%s527] ss:$2 sm:$0x3]
  %v530 = vlaneseq
  %v531 = vshrl.u32 %v530, 7
  %v532 = vsub.s32 0, %v531
  %v533 = vrot.slane %v528, %v532
  %v534 = vlaneseq
  %v535 = vshrl.u32 %v534, 7
  %v536 = vsub.s32 1, %v535
  %v537 = vrot.slane %v528, %v536
  %v548 = vrot.slane %v277, 7
  %vm549 = vcmask 1041409
  %v550 = vsel %vm549, %v548, %v275
  %v551 = vrot.slane %v279, 6
  %vm552 = vcmask 1042434
  %v553 = vsel %vm552, %v551, %v550
  %v554 = vrot.slane %v281, 5
  %vm555 = vcmask 1043459
  %v556 = vsel %vm555, %v554, %v553
  %v557 = vrot.slane %v283, 4
  %vm558 = vcmask 1044484
  %v559 = vsel %vm558, %v557, %v556
  %v560 = vrot.slane %v285, 3
  %vm561 = vcmask 1045509
  %v562 = vsel %vm561, %v560, %v559
  %v563 = vrot.slane %v287, 2
  %vm564 = vcmask 1046534
  %v565 = vsel %vm564, %v563, %v562
  %v566 = vrot.slane %v289, 1
  %vm567 = vcmask 1047559
  %v568 = vsel %vm567, %v566, %v565
  %570 = vmatprep.subr.mxu0 %v496
  %571 = vmatpush1.msra.mxu0 %v495
  %572 = vmatprep.subr.mxu0 %v498
  %573 = vmatpush1.msra.mxu0 %v497
  %574 = vmatprep.subr.mxu0 %v500
  %575 = vmatpush1.msra.mxu0 %v499
  %576 = vmatprep.subr.mxu0 %v502
  %577 = vmatpush1.msra.mxu0 %v501
  %578 = vmatprep.subr.mxu0 %v504
  %579 = vmatpush1.msra.mxu0 %v503
  %580 = vmatprep.subr.mxu0 %v506
  %581 = vmatpush1.msra.mxu0 %v505
  %582 = vmatprep.subr.mxu0 %v508
  %583 = vmatpush1.msra.mxu0 %v507
  %584 = vmatprep.subr.mxu0 %v510
  %585 = vmatpush1.msra.mxu0 %v509
  %586 = vmatprep.subr.mxu0 %v512
  %587 = vmatpush1.msra.mxu0 %v511
  %588 = vmatprep.subr.mxu0 %v514
  %589 = vmatpush1.msra.mxu0 %v513
  %590 = vmatprep.subr.mxu0 %v516
  %591 = vmatpush1.msra.mxu0 %v515
  %592 = vmatprep.subr.mxu0 %v518
  %593 = vmatpush1.msra.mxu0 %v517
  %594 = vmatprep.subr.mxu0 %v520
  %595 = vmatpush1.msra.mxu0 %v519
  %596 = vmatprep.subr.mxu0 %v522
  %597 = vmatpush1.msra.mxu0 %v521
  %598 = vmatprep.subr.mxu0 %v524
  %599 = vmatpush1.msra.mxu0 %v523
  %600 = vmatprep.subr.mxu0 %v526
  %601 = vmatpush1.msra.mxu0 %v525
  %602 = vmatprep.subr.mxu0 0.0
  %603 = vmatpush1.msra.mxu0 0.0
  %604 = vmatprep.subr.mxu0 0.0
  %605 = vmatpush1.msra.mxu0 0.0
  %606 = vmatprep.subr.mxu0 0.0
  %607 = vmatpush1.msra.mxu0 0.0
  %608 = vmatprep.subr.mxu0 0.0
  %609 = vmatpush1.msra.mxu0 0.0
  %610 = vmatprep.subr.mxu0 0.0
  %611 = vmatpush1.msra.mxu0 0.0
  %612 = vmatprep.subr.mxu0 0.0
  %613 = vmatpush1.msra.mxu0 0.0
  %614 = vmatprep.subr.mxu0 0.0
  %615 = vmatpush1.msra.mxu0 0.0
  %616 = vmatprep.subr.mxu0 0.0
  %617 = vmatpush1.msra.mxu0 0.0
  %618 = vmatprep.subr.mxu0 0.0
  %619 = vmatpush1.msra.mxu0 0.0
  %620 = vmatprep.subr.mxu0 0.0
  %621 = vmatpush1.msra.mxu0 0.0
  %622 = vmatprep.subr.mxu0 0.0
  %623 = vmatpush1.msra.mxu0 0.0
  %624 = vmatprep.subr.mxu0 0.0
  %625 = vmatpush1.msra.mxu0 0.0
  %626 = vmatprep.subr.mxu0 0.0
  %627 = vmatpush1.msra.mxu0 0.0
  %628 = vmatprep.subr.mxu0 0.0
  %629 = vmatpush1.msra.mxu0 0.0
  %630 = vmatprep.subr.mxu0 0.0
  %631 = vmatpush1.msra.mxu0 0.0
  %632 = vmatprep.subr.mxu0 0.0
  %633 = vmatpush1.msra.mxu0 0.0
  %634 = vmatprep.mubr.f32.mxu0 0.0
  %635 = vmatmul.mubr.f32.gmra.mrb[0].mxu0 %v568
  %v636 = vpop.f32.mrb[0].mxu0
  %v637 = vadd.f32 %v533, %v636
  %v638 = vpop.f32.mrb[0].mxu0
  %v639 = vadd.f32 %v537, %v638
  %640 = vdwg.mxu0
  %v643 = vcombine.low %v637, %v639
  %v644 = vcombine.high %v637, %v639
  %v646 = vunpack.c.l.s4 1966171168
  %v647 = vunpack.c.0.s8 %v646
  %v648 = vlaneseq
  %v649 = vshrl.u32 %v648, 7
  %v650 = vsub.s32 %v647, %v649
  %v651 = vrot.slane %v643, %v650
  %v653 = vunpack.c.l.s4 1966171168
  %v654 = vunpack.c.0.s8 %v653
  %v655 = vlaneseq
  %v656 = vshrl.u32 %v655, 7
  %v657 = vsub.s32 %v654, %v656
  %v658 = vrot.slane %v644, %v657
  %v659 = vcombine.high %v651, %v651
  %v660 = vcombine.high %v658, %v658
  %v662 = vunpack.c.l.s4 1966171168
  %v663 = vunpack.c.0.s8 %v662
  %v664 = vlaneseq
  %v665 = vshrl.u32 %v664, 7
  %v666 = vsub.s32 %v663, %v665
  %v667 = vrot.slane %v651, %v666
  %v669 = vunpack.c.l.s4 1966171168
  %v670 = vunpack.c.0.s8 %v669
  %v671 = vlaneseq
  %v672 = vshrl.u32 %v671, 7
  %v673 = vsub.s32 %v670, %v672
  %v674 = vrot.slane %v658, %v673
  %v676 = vunpack.c.l.s4 1966171168
  %v677 = vunpack.c.0.s8 %v676
  %v678 = vlaneseq
  %v679 = vshrl.u32 %v678, 7
  %v680 = vsub.s32 %v677, %v679
  %v681 = vrot.slane %v659, %v680
  %v683 = vunpack.c.l.s4 1966171168
  %v684 = vunpack.c.0.s8 %v683
  %v685 = vlaneseq
  %v686 = vshrl.u32 %v685, 7
  %v687 = vsub.s32 %v684, %v686
  %v688 = vrot.slane %v660, %v687
  %v689 = vcombine.high %v667, %v667
  %v690 = vcombine.high %v674, %v674
  %v691 = vcombine.high %v681, %v681
  %v692 = vcombine.high %v688, %v688
  %v693 = vlaneseq
  %v694 = vshrl.u32 %v693, 7
  %v695 = vsub.s32 0, %v694
  %v696 = vrot.slane %v667, %v695
  %v697 = vlaneseq
  %v698 = vshrl.u32 %v697, 7
  %v699 = vsub.s32 1, %v698
  %v700 = vrot.slane %v667, %v699
  %v701 = vlaneseq
  %v702 = vshrl.u32 %v701, 7
  %v703 = vsub.s32 0, %v702
  %v704 = vrot.slane %v681, %v703
  %v705 = vlaneseq
  %v706 = vshrl.u32 %v705, 7
  %v707 = vsub.s32 1, %v706
  %v708 = vrot.slane %v681, %v707
  %v709 = vlaneseq
  %v710 = vshrl.u32 %v709, 7
  %v711 = vsub.s32 0, %v710
  %v712 = vrot.slane %v689, %v711
  %v713 = vlaneseq
  %v714 = vshrl.u32 %v713, 7
  %v715 = vsub.s32 1, %v714
  %v716 = vrot.slane %v689, %v715
  %v717 = vlaneseq
  %v718 = vshrl.u32 %v717, 7
  %v719 = vsub.s32 0, %v718
  %v720 = vrot.slane %v691, %v719
  %v721 = vlaneseq
  %v722 = vshrl.u32 %v721, 7
  %v723 = vsub.s32 1, %v722
  %v724 = vrot.slane %v691, %v723
  %v725 = vlaneseq
  %v726 = vshrl.u32 %v725, 7
  %v727 = vsub.s32 0, %v726
  %v728 = vrot.slane %v674, %v727
  %v729 = vlaneseq
  %v730 = vshrl.u32 %v729, 7
  %v731 = vsub.s32 1, %v730
  %v732 = vrot.slane %v674, %v731
  %v733 = vlaneseq
  %v734 = vshrl.u32 %v733, 7
  %v735 = vsub.s32 0, %v734
  %v736 = vrot.slane %v688, %v735
  %v737 = vlaneseq
  %v738 = vshrl.u32 %v737, 7
  %v739 = vsub.s32 1, %v738
  %v740 = vrot.slane %v688, %v739
  %v741 = vlaneseq
  %v742 = vshrl.u32 %v741, 7
  %v743 = vsub.s32 0, %v742
  %v744 = vrot.slane %v690, %v743
  %v745 = vlaneseq
  %v746 = vshrl.u32 %v745, 7
  %v747 = vsub.s32 1, %v746
  %v748 = vrot.slane %v690, %v747
  %v749 = vlaneseq
  %v750 = vshrl.u32 %v749, 7
  %v751 = vsub.s32 0, %v750
  %v752 = vrot.slane %v692, %v751
  %v753 = vlaneseq
  %v754 = vshrl.u32 %v753, 7
  %v755 = vsub.s32 1, %v754
  %v756 = vrot.slane %v692, %v755
  %v773 = vmul.f32 %v696, %v401
  %v774 = vmul.f32 %v700, %v403
  %v775 = vmul.f32 %v696, %v407
  %v776 = vmul.f32 %v700, %v409
  %v777 = vmul.f32 %v704, %v413
  %v778 = vmul.f32 %v708, %v415
  %v779 = vmul.f32 %v704, %v419
  %v780 = vmul.f32 %v708, %v421
  %v781 = vmul.f32 %v712, %v425
  %v782 = vmul.f32 %v716, %v427
  %v783 = vmul.f32 %v712, %v431
  %v784 = vmul.f32 %v716, %v433
  %v785 = vmul.f32 %v720, %v437
  %v786 = vmul.f32 %v724, %v439
  %v787 = vmul.f32 %v720, %v443
  %v788 = vmul.f32 %v724, %v445
  %v789 = vmul.f32 %v728, %v449
  %v790 = vmul.f32 %v732, %v451
  %v791 = vmul.f32 %v728, %v455
  %v792 = vmul.f32 %v732, %v457
  %v793 = vmul.f32 %v736, %v461
  %v794 = vmul.f32 %v740, %v463
  %v795 = vmul.f32 %v736, %v467
  %v796 = vmul.f32 %v740, %v469
  %v797 = vmul.f32 %v744, %v473
  %v798 = vmul.f32 %v748, %v475
  %v799 = vmul.f32 %v744, %v479
  %v800 = vmul.f32 %v748, %v481
  %v801 = vmul.f32 %v752, %v485
  %v802 = vmul.f32 %v756, %v487
  %v803 = vmul.f32 %v752, %v491
  %v804 = vmul.f32 %v756, %v493
  %v805 = vld [vmem:[%s5] sm:$0xff]
  %v806 = vld [vmem:[%s5 + $0x8] sm:$0xff]
  %v807 = vld [vmem:[%s5 + $0x10] sm:$0xff]
  %v808 = vld [vmem:[%s5 + $0x18] sm:$0xff]
  %v809 = vld [vmem:[%s5 + $0x20] sm:$0xff]
  %v810 = vld [vmem:[%s5 + $0x28] sm:$0xff]
  %v811 = vld [vmem:[%s5 + $0x30] sm:$0xff]
  %v812 = vld [vmem:[%s5 + $0x38] sm:$0xff]
  %v813 = vld [vmem:[%s5 + $0x40] sm:$0xff]
  %v814 = vld [vmem:[%s5 + $0x48] sm:$0xff]
  %v815 = vld [vmem:[%s5 + $0x50] sm:$0xff]
  %v816 = vld [vmem:[%s5 + $0x58] sm:$0xff]
  %v817 = vld [vmem:[%s5 + $0x60] sm:$0xff]
  %v818 = vld [vmem:[%s5 + $0x68] sm:$0xff]
  %v819 = vld [vmem:[%s5 + $0x70] sm:$0xff]
  %v820 = vld [vmem:[%s5 + $0x78] sm:$0xff]
  %v821 = vld [vmem:[%s5 + $0x80] sm:$0xff]
  %v822 = vld [vmem:[%s5 + $0x88] sm:$0xff]
  %v823 = vld [vmem:[%s5 + $0x90] sm:$0xff]
  %v824 = vld [vmem:[%s5 + $0x98] sm:$0xff]
  %v825 = vld [vmem:[%s5 + $0xa0] sm:$0xff]
  %v826 = vld [vmem:[%s5 + $0xa8] sm:$0xff]
  %v827 = vld [vmem:[%s5 + $0xb0] sm:$0xff]
  %v828 = vld [vmem:[%s5 + $0xb8] sm:$0xff]
  %v829 = vld [vmem:[%s5 + $0xc0] sm:$0xff]
  %v830 = vld [vmem:[%s5 + $0xc8] sm:$0xff]
  %v831 = vld [vmem:[%s5 + $0xd0] sm:$0xff]
  %v832 = vld [vmem:[%s5 + $0xd8] sm:$0xff]
  %v833 = vld [vmem:[%s5 + $0xe0] sm:$0xff]
  %v834 = vld [vmem:[%s5 + $0xe8] sm:$0xff]
  %v835 = vld [vmem:[%s5 + $0xf0] sm:$0xff]
  %v836 = vld [vmem:[%s5 + $0xf8] sm:$0xff]
  %837 = vmatprep.subr.mxu0 0.0
  %838 = vmatpush1.msra.mxu0 %v805
  %839 = vmatprep.subr.mxu0 0.0
  %840 = vmatpush1.msra.mxu0 %v806
  %841 = vmatprep.subr.mxu0 0.0
  %842 = vmatpush1.msra.mxu0 %v807
  %843 = vmatprep.subr.mxu0 0.0
  %844 = vmatpush1.msra.mxu0 %v808
  %845 = vmatprep.subr.mxu0 0.0
  %846 = vmatpush1.msra.mxu0 %v809
  %847 = vmatprep.subr.mxu0 0.0
  %848 = vmatpush1.msra.mxu0 %v810
  %849 = vmatprep.subr.mxu0 0.0
  %850 = vmatpush1.msra.mxu0 %v811
  %851 = vmatprep.subr.mxu0 0.0
  %852 = vmatpush1.msra.mxu0 %v812
  %853 = vmatprep.subr.mxu0 0.0
  %854 = vmatpush1.msra.mxu0 %v813
  %855 = vmatprep.subr.mxu0 0.0
  %856 = vmatpush1.msra.mxu0 %v814
  %857 = vmatprep.subr.mxu0 0.0
  %858 = vmatpush1.msra.mxu0 %v815
  %859 = vmatprep.subr.mxu0 0.0
  %860 = vmatpush1.msra.mxu0 %v816
  %861 = vmatprep.subr.mxu0 0.0
  %862 = vmatpush1.msra.mxu0 %v817
  %863 = vmatprep.subr.mxu0 0.0
  %864 = vmatpush1.msra.mxu0 %v818
  %865 = vmatprep.subr.mxu0 0.0
  %866 = vmatpush1.msra.mxu0 %v819
  %867 = vmatprep.subr.mxu0 0.0
  %868 = vmatpush1.msra.mxu0 %v820
  %869 = vmatprep.subr.mxu0 0.0
  %870 = vmatpush1.msra.mxu0 %v821
  %871 = vmatprep.subr.mxu0 0.0
  %872 = vmatpush1.msra.mxu0 %v822
  %873 = vmatprep.subr.mxu0 0.0
  %874 = vmatpush1.msra.mxu0 %v823
  %875 = vmatprep.subr.mxu0 0.0
  %876 = vmatpush1.msra.mxu0 %v824
  %877 = vmatprep.subr.mxu0 0.0
  %878 = vmatpush1.msra.mxu0 %v825
  %879 = vmatprep.subr.mxu0 0.0
  %880 = vmatpush1.msra.mxu0 %v826
  %881 = vmatprep.subr.mxu0 0.0
  %882 = vmatpush1.msra.mxu0 %v827
  %883 = vmatprep.subr.mxu0 0.0
  %884 = vmatpush1.msra.mxu0 %v828
  %885 = vmatprep.subr.mxu0 0.0
  %886 = vmatpush1.msra.mxu0 %v829
  %887 = vmatprep.subr.mxu0 0.0
  %888 = vmatpush1.msra.mxu0 %v830
  %889 = vmatprep.subr.mxu0 0.0
  %890 = vmatpush1.msra.mxu0 %v831
  %891 = vmatprep.subr.mxu0 0.0
  %892 = vmatpush1.msra.mxu0 %v832
  %893 = vmatprep.subr.mxu0 0.0
  %894 = vmatpush1.msra.mxu0 %v833
  %895 = vmatprep.subr.mxu0 0.0
  %896 = vmatpush1.msra.mxu0 %v834
  %897 = vmatprep.subr.mxu0 0.0
  %898 = vmatpush1.msra.mxu0 %v835
  %899 = vmatprep.subr.mxu0 0.0
  %900 = vmatpush1.msra.mxu0 %v836
  %901 = vmatprep.mubr.f32.mxu0 %v774
  %902 = vmatmul.mubr.f32.gmra.mrb[0].mxu0 %v773
  %v903 = vpop.f32.mrb[0].mxu0
  %v904 = vadd.f32 0.0, %v903
  %v905 = vpop.f32.mrb[0].mxu0
  %906 = vmatprep.mubr.f32.mxu0 %v776
  %907 = vmatmul.mubr.f32.gmra.mrb[0].mxu0 %v775
  %v908 = vpop.f32.mrb[0].mxu0
  %v909 = vadd.f32 0.0, %v908
  %v910 = vpop.f32.mrb[0].mxu0
  %911 = vmatprep.mubr.f32.mxu0 %v778
  %912 = vmatmul.mubr.f32.gmra.mrb[0].mxu0 %v777
  %v913 = vpop.f32.mrb[0].mxu0
  %v914 = vadd.f32 0.0, %v913
  %v915 = vpop.f32.mrb[0].mxu0
  %916 = vmatprep.mubr.f32.mxu0 %v780
  %917 = vmatmul.mubr.f32.gmra.mrb[0].mxu0 %v779
  %v918 = vpop.f32.mrb[0].mxu0
  %v919 = vadd.f32 0.0, %v918
  %v920 = vpop.f32.mrb[0].mxu0
  %921 = vmatprep.mubr.f32.mxu0 %v782
  %922 = vmatmul.mubr.f32.gmra.mrb[0].mxu0 %v781
  %v923 = vpop.f32.mrb[0].mxu0
  %v924 = vadd.f32 0.0, %v923
  %v925 = vpop.f32.mrb[0].mxu0
  %926 = vmatprep.mubr.f32.mxu0 %v784
  %927 = vmatmul.mubr.f32.gmra.mrb[0].mxu0 %v783
  %v928 = vpop.f32.mrb[0].mxu0
  %v929 = vadd.f32 0.0, %v928
  %v930 = vpop.f32.mrb[0].mxu0
  %931 = vmatprep.mubr.f32.mxu0 %v786
  %932 = vmatmul.mubr.f32.gmra.mrb[0].mxu0 %v785
  %v933 = vpop.f32.mrb[0].mxu0
  %v934 = vadd.f32 0.0, %v933
  %v935 = vpop.f32.mrb[0].mxu0
  %936 = vmatprep.mubr.f32.mxu0 %v788
  %937 = vmatmul.mubr.f32.gmra.mrb[0].mxu0 %v787
  %v938 = vpop.f32.mrb[0].mxu0
  %v939 = vadd.f32 0.0, %v938
  %v940 = vpop.f32.mrb[0].mxu0
  %941 = vmatprep.mubr.f32.mxu0 %v790
  %942 = vmatmul.mubr.f32.gmra.mrb[0].mxu0 %v789
  %v943 = vpop.f32.mrb[0].mxu0
  %v944 = vadd.f32 0.0, %v943
  %v945 = vpop.f32.mrb[0].mxu0
  %946 = vmatprep.mubr.f32.mxu0 %v792
  %947 = vmatmul.mubr.f32.gmra.mrb[0].mxu0 %v791
  %v948 = vpop.f32.mrb[0].mxu0
  %v949 = vadd.f32 0.0, %v948
  %v950 = vpop.f32.mrb[0].mxu0
  %951 = vmatprep.mubr.f32.mxu0 %v794
  %952 = vmatmul.mubr.f32.gmra.mrb[0].mxu0 %v793
  %v953 = vpop.f32.mrb[0].mxu0
  %v954 = vadd.f32 0.0, %v953
  %v955 = vpop.f32.mrb[0].mxu0
  %956 = vmatprep.mubr.f32.mxu0 %v796
  %957 = vmatmul.mubr.f32.gmra.mrb[0].mxu0 %v795
  %v958 = vpop.f32.mrb[0].mxu0
  %v959 = vadd.f32 0.0, %v958
  %v960 = vpop.f32.mrb[0].mxu0
  %961 = vmatprep.mubr.f32.mxu0 %v798
  %962 = vmatmul.mubr.f32.gmra.mrb[0].mxu0 %v797
  %v963 = vpop.f32.mrb[0].mxu0
  %v964 = vadd.f32 0.0, %v963
  %v965 = vpop.f32.mrb[0].mxu0
  %966 = vmatprep.mubr.f32.mxu0 %v800
  %967 = vmatmul.mubr.f32.gmra.mrb[0].mxu0 %v799
  %v968 = vpop.f32.mrb[0].mxu0
  %v969 = vadd.f32 0.0, %v968
  %v970 = vpop.f32.mrb[0].mxu0
  %971 = vmatprep.mubr.f32.mxu0 %v802
  %972 = vmatmul.mubr.f32.gmra.mrb[0].mxu0 %v801
  %v973 = vpop.f32.mrb[0].mxu0
  %v974 = vadd.f32 0.0, %v973
  %v975 = vpop.f32.mrb[0].mxu0
  %976 = vmatprep.mubr.f32.mxu0 %v804
  %977 = vmatmul.mubr.f32.gmra.mrb[0].mxu0 %v803
  %v978 = vpop.f32.mrb[0].mxu0
  %v979 = vadd.f32 0.0, %v978
  %v980 = vpop.f32.mrb[0].mxu0
  %981 = vdwg.mxu0
  %v982 = vld [vmem:[%s7] sm:$0xff]
  %v983 = vld [vmem:[%s7 + $0x8] sm:$0xff]
  %v984 = vadd.f32 %v904, %v982
  %v985 = vadd.f32 %v909, %v983
  %v986 = vadd.f32 %v914, %v982
  %v987 = vadd.f32 %v919, %v983
  %v988 = vadd.f32 %v924, %v982
  %v989 = vadd.f32 %v929, %v983
  %v990 = vadd.f32 %v934, %v982
  %v991 = vadd.f32 %v939, %v983
  %v992 = vadd.f32 %v944, %v982
  %v993 = vadd.f32 %v949, %v983
  %v994 = vadd.f32 %v954, %v982
  %v995 = vadd.f32 %v959, %v983
  %v996 = vadd.f32 %v964, %v982
  %v997 = vadd.f32 %v969, %v983
  %v998 = vadd.f32 %v974, %v982
  %v999 = vadd.f32 %v979, %v983
  %vm1000 = vcmask 130048
  %v1001 = vsel %vm1000, %v984, -inf
  %v1002 = vsel %vm1000, %v985, -inf
  %v1003 = vmax.f32 %v1001, %v1002
  %v1004 = vrot.slane %v1003, 4
  %v1005 = vmax.f32 %v1003, %v1004
  %v1006 = vrot.slane %v1005, 2
  %v1007 = vmax.f32 %v1005, %v1006
  %v1008 = vrot.slane %v1007, 1
  %v1009 = vmax.f32 %v1007, %v1008
  %v1010 = vsel %vm1000, %v986, -inf
  %v1011 = vsel %vm1000, %v987, -inf
  %v1012 = vmax.f32 %v1010, %v1011
  %v1013 = vrot.slane %v1012, 4
  %v1014 = vmax.f32 %v1012, %v1013
  %v1015 = vrot.slane %v1014, 2
  %v1016 = vmax.f32 %v1014, %v1015
  %v1017 = vrot.slane %v1016, 1
  %v1018 = vmax.f32 %v1016, %v1017
  %v1019 = vsel %vm1000, %v988, -inf
  %v1020 = vsel %vm1000, %v989, -inf
  %v1021 = vmax.f32 %v1019, %v1020
  %v1022 = vrot.slane %v1021, 4
  %v1023 = vmax.f32 %v1021, %v1022
  %v1024 = vrot.slane %v1023, 2
  %v1025 = vmax.f32 %v1023, %v1024
  %v1026 = vrot.slane %v1025, 1
  %v1027 = vmax.f32 %v1025, %v1026
  %v1028 = vsel %vm1000, %v990, -inf
  %v1029 = vsel %vm1000, %v991, -inf
  %v1030 = vmax.f32 %v1028, %v1029
  %v1031 = vrot.slane %v1030, 4
  %v1032 = vmax.f32 %v1030, %v1031
  %v1033 = vrot.slane %v1032, 2
  %v1034 = vmax.f32 %v1032, %v1033
  %v1035 = vrot.slane %v1034, 1
  %v1036 = vmax.f32 %v1034, %v1035
  %v1037 = vsel %vm1000, %v992, -inf
  %v1038 = vsel %vm1000, %v993, -inf
  %v1039 = vmax.f32 %v1037, %v1038
  %v1040 = vrot.slane %v1039, 4
  %v1041 = vmax.f32 %v1039, %v1040
  %v1042 = vrot.slane %v1041, 2
  %v1043 = vmax.f32 %v1041, %v1042
  %v1044 = vrot.slane %v1043, 1
  %v1045 = vmax.f32 %v1043, %v1044
  %v1046 = vsel %vm1000, %v994, -inf
  %v1047 = vsel %vm1000, %v995, -inf
  %v1048 = vmax.f32 %v1046, %v1047
  %v1049 = vrot.slane %v1048, 4
  %v1050 = vmax.f32 %v1048, %v1049
  %v1051 = vrot.slane %v1050, 2
  %v1052 = vmax.f32 %v1050, %v1051
  %v1053 = vrot.slane %v1052, 1
  %v1054 = vmax.f32 %v1052, %v1053
  %v1055 = vsel %vm1000, %v996, -inf
  %v1056 = vsel %vm1000, %v997, -inf
  %v1057 = vmax.f32 %v1055, %v1056
  %v1058 = vrot.slane %v1057, 4
  %v1059 = vmax.f32 %v1057, %v1058
  %v1060 = vrot.slane %v1059, 2
  %v1061 = vmax.f32 %v1059, %v1060
  %v1062 = vrot.slane %v1061, 1
  %v1063 = vmax.f32 %v1061, %v1062
  %v1064 = vsel %vm1000, %v998, -inf
  %v1065 = vsel %vm1000, %v999, -inf
  %v1066 = vmax.f32 %v1064, %v1065
  %v1067 = vrot.slane %v1066, 4
  %v1068 = vmax.f32 %v1066, %v1067
  %v1069 = vrot.slane %v1068, 2
  %v1070 = vmax.f32 %v1068, %v1069
  %v1071 = vrot.slane %v1070, 1
  %v1072 = vmax.f32 %v1070, %v1071
  %v1073 = vsub.f32 %v984, %v1009
  %v1074 = vsub.f32 %v985, %v1009
  %v1075 = vsub.f32 %v986, %v1018
  %v1076 = vsub.f32 %v987, %v1018
  %v1077 = vsub.f32 %v988, %v1027
  %v1078 = vsub.f32 %v989, %v1027
  %v1079 = vsub.f32 %v990, %v1036
  %v1080 = vsub.f32 %v991, %v1036
  %v1081 = vsub.f32 %v992, %v1045
  %v1082 = vsub.f32 %v993, %v1045
  %v1083 = vsub.f32 %v994, %v1054
  %v1084 = vsub.f32 %v995, %v1054
  %v1085 = vsub.f32 %v996, %v1063
  %v1086 = vsub.f32 %v997, %v1063
  %v1087 = vsub.f32 %v998, %v1072
  %v1088 = vsub.f32 %v999, %v1072
  %v1089 = vmul.f32 %v1073, 1.442695
  %v1090 = vpow.pop %v1089
  %v1091 = vmul.f32 %v1074, 1.442695
  %v1092 = vpow.pop %v1091
  %v1093 = vmul.f32 %v1075, 1.442695
  %v1094 = vpow.pop %v1093
  %v1095 = vmul.f32 %v1076, 1.442695
  %v1096 = vpow.pop %v1095
  %v1097 = vmul.f32 %v1077, 1.442695
  %v1098 = vpow.pop %v1097
  %v1099 = vmul.f32 %v1078, 1.442695
  %v1100 = vpow.pop %v1099
  %v1101 = vmul.f32 %v1079, 1.442695
  %v1102 = vpow.pop %v1101
  %v1103 = vmul.f32 %v1080, 1.442695
  %v1104 = vpow.pop %v1103
  %v1105 = vmul.f32 %v1081, 1.442695
  %v1106 = vpow.pop %v1105
  %v1107 = vmul.f32 %v1082, 1.442695
  %v1108 = vpow.pop %v1107
  %v1109 = vmul.f32 %v1083, 1.442695
  %v1110 = vpow.pop %v1109
  %v1111 = vmul.f32 %v1084, 1.442695
  %v1112 = vpow.pop %v1111
  %v1113 = vmul.f32 %v1085, 1.442695
  %v1114 = vpow.pop %v1113
  %v1115 = vmul.f32 %v1086, 1.442695
  %v1116 = vpow.pop %v1115
  %v1117 = vmul.f32 %v1087, 1.442695
  %v1118 = vpow.pop %v1117
  %v1119 = vmul.f32 %v1088, 1.442695
  %v1120 = vpow.pop %v1119
  %v1121 = vsel %vm1000, %v1090, 0.0
  %v1122 = vsel %vm1000, %v1092, 0.0
  %v1123 = vadd.f32 %v1121, %v1122
  %v1124 = vrot.slane %v1123, 4
  %v1125 = vadd.f32 %v1123, %v1124
  %v1126 = vrot.slane %v1125, 2
  %v1127 = vadd.f32 %v1125, %v1126
  %v1128 = vrot.slane %v1127, 1
  %v1129 = vadd.f32 %v1127, %v1128
  %v1130 = vsel %vm1000, %v1094, 0.0
  %v1131 = vsel %vm1000, %v1096, 0.0
  %v1132 = vadd.f32 %v1130, %v1131
  %v1133 = vrot.slane %v1132, 4
  %v1134 = vadd.f32 %v1132, %v1133
  %v1135 = vrot.slane %v1134, 2
  %v1136 = vadd.f32 %v1134, %v1135
  %v1137 = vrot.slane %v1136, 1
  %v1138 = vadd.f32 %v1136, %v1137
  %v1139 = vsel %vm1000, %v1098, 0.0
  %v1140 = vsel %vm1000, %v1100, 0.0
  %v1141 = vadd.f32 %v1139, %v1140
  %v1142 = vrot.slane %v1141, 4
  %v1143 = vadd.f32 %v1141, %v1142
  %v1144 = vrot.slane %v1143, 2
  %v1145 = vadd.f32 %v1143, %v1144
  %v1146 = vrot.slane %v1145, 1
  %v1147 = vadd.f32 %v1145, %v1146
  %v1148 = vsel %vm1000, %v1102, 0.0
  %v1149 = vsel %vm1000, %v1104, 0.0
  %v1150 = vadd.f32 %v1148, %v1149
  %v1151 = vrot.slane %v1150, 4
  %v1152 = vadd.f32 %v1150, %v1151
  %v1153 = vrot.slane %v1152, 2
  %v1154 = vadd.f32 %v1152, %v1153
  %v1155 = vrot.slane %v1154, 1
  %v1156 = vadd.f32 %v1154, %v1155
  %v1157 = vsel %vm1000, %v1106, 0.0
  %v1158 = vsel %vm1000, %v1108, 0.0
  %v1159 = vadd.f32 %v1157, %v1158
  %v1160 = vrot.slane %v1159, 4
  %v1161 = vadd.f32 %v1159, %v1160
  %v1162 = vrot.slane %v1161, 2
  %v1163 = vadd.f32 %v1161, %v1162
  %v1164 = vrot.slane %v1163, 1
  %v1165 = vadd.f32 %v1163, %v1164
  %v1166 = vsel %vm1000, %v1110, 0.0
  %v1167 = vsel %vm1000, %v1112, 0.0
  %v1168 = vadd.f32 %v1166, %v1167
  %v1169 = vrot.slane %v1168, 4
  %v1170 = vadd.f32 %v1168, %v1169
  %v1171 = vrot.slane %v1170, 2
  %v1172 = vadd.f32 %v1170, %v1171
  %v1173 = vrot.slane %v1172, 1
  %v1174 = vadd.f32 %v1172, %v1173
  %v1175 = vsel %vm1000, %v1114, 0.0
  %v1176 = vsel %vm1000, %v1116, 0.0
  %v1177 = vadd.f32 %v1175, %v1176
  %v1178 = vrot.slane %v1177, 4
  %v1179 = vadd.f32 %v1177, %v1178
  %v1180 = vrot.slane %v1179, 2
  %v1181 = vadd.f32 %v1179, %v1180
  %v1182 = vrot.slane %v1181, 1
  %v1183 = vadd.f32 %v1181, %v1182
  %v1184 = vsel %vm1000, %v1118, 0.0
  %v1185 = vsel %vm1000, %v1120, 0.0
  %v1186 = vadd.f32 %v1184, %v1185
  %v1187 = vrot.slane %v1186, 4
  %v1188 = vadd.f32 %v1186, %v1187
  %v1189 = vrot.slane %v1188, 2
  %v1190 = vadd.f32 %v1188, %v1189
  %v1191 = vrot.slane %v1190, 1
  %v1192 = vadd.f32 %v1190, %v1191
  %v1193 = vrcp.pop %v1129
  %v1194 = vmul.f32 1.0, %v1193
  %v1195 = vrcp.pop %v1138
  %v1196 = vmul.f32 1.0, %v1195
  %v1197 = vrcp.pop %v1147
  %v1198 = vmul.f32 1.0, %v1197
  %v1199 = vrcp.pop %v1156
  %v1200 = vmul.f32 1.0, %v1199
  %v1201 = vrcp.pop %v1165
  %v1202 = vmul.f32 1.0, %v1201
  %v1203 = vrcp.pop %v1174
  %v1204 = vmul.f32 1.0, %v1203
  %v1205 = vrcp.pop %v1183
  %v1206 = vmul.f32 1.0, %v1205
  %v1207 = vrcp.pop %v1192
  %v1208 = vmul.f32 1.0, %v1207
  %v1209 = vmul.f32 %v1090, %v1194
  %v1210 = vmul.f32 %v1092, %v1194
  %v1211 = vmul.f32 %v1094, %v1196
  %v1212 = vmul.f32 %v1096, %v1196
  %v1213 = vmul.f32 %v1098, %v1198
  %v1214 = vmul.f32 %v1100, %v1198
  %v1215 = vmul.f32 %v1102, %v1200
  %v1216 = vmul.f32 %v1104, %v1200
  %v1217 = vmul.f32 %v1106, %v1202
  %v1218 = vmul.f32 %v1108, %v1202
  %v1219 = vmul.f32 %v1110, %v1204
  %v1220 = vmul.f32 %v1112, %v1204
  %v1221 = vmul.f32 %v1114, %v1206
  %v1222 = vmul.f32 %v1116, %v1206
  %v1223 = vmul.f32 %v1118, %v1208
  %v1224 = vmul.f32 %v1120, %v1208
  %v1225 = vld [vmem:[%s6] sm:$0xff]
  %v1226 = vld [vmem:[%s6 + $0x8] sm:$0xff]
  %v1227 = vld [vmem:[%s6 + $0x10] sm:$0xff]
  %v1228 = vld [vmem:[%s6 + $0x18] sm:$0xff]
  %v1230 = vsel %vm1000, %v1209, 0
  %v1233 = vsel %vm1000, %v1210, 0
  %v1236 = vsel %vm1000, %v1211, 0
  %v1239 = vsel %vm1000, %v1212, 0
  %v1242 = vsel %vm1000, %v1213, 0
  %v1245 = vsel %vm1000, %v1214, 0
  %v1248 = vsel %vm1000, %v1215, 0
  %v1251 = vsel %vm1000, %v1216, 0
  %v1254 = vsel %vm1000, %v1217, 0
  %v1257 = vsel %vm1000, %v1218, 0
  %v1260 = vsel %vm1000, %v1219, 0
  %v1263 = vsel %vm1000, %v1220, 0
  %v1266 = vsel %vm1000, %v1221, 0
  %v1269 = vsel %vm1000, %v1222, 0
  %v1272 = vsel %vm1000, %v1223, 0
  %v1275 = vsel %vm1000, %v1224, 0
  %1277 = vmatprep.subr.mxu0 %v1226
  %1278 = vmatpush1.msra.mxu0 %v1225
  %1279 = vmatprep.subr.mxu0 %v1228
  %1280 = vmatpush1.msra.mxu0 %v1227
  %1281 = vmatprep.subr.mxu0 0.0
  %1282 = vmatpush1.msra.mxu0 0.0
  %1283 = vmatprep.subr.mxu0 0.0
  %1284 = vmatpush1.msra.mxu0 0.0
  %1285 = vmatprep.subr.mxu0 0.0
  %1286 = vmatpush1.msra.mxu0 0.0
  %1287 = vmatprep.subr.mxu0 0.0
  %1288 = vmatpush1.msra.mxu0 0.0
  %1289 = vmatprep.subr.mxu0 0.0
  %1290 = vmatpush1.msra.mxu0 0.0
  %1291 = vmatprep.subr.mxu0 0.0
  %1292 = vmatpush1.msra.mxu0 0.0
  %1293 = vmatprep.subr.mxu0 0.0
  %1294 = vmatpush1.msra.mxu0 0.0
  %1295 = vmatprep.subr.mxu0 0.0
  %1296 = vmatpush1.msra.mxu0 0.0
  %1297 = vmatprep.subr.mxu0 0.0
  %1298 = vmatpush1.msra.mxu0 0.0
  %1299 = vmatprep.subr.mxu0 0.0
  %1300 = vmatpush1.msra.mxu0 0.0
  %1301 = vmatprep.subr.mxu0 0.0
  %1302 = vmatpush1.msra.mxu0 0.0
  %1303 = vmatprep.subr.mxu0 0.0
  %1304 = vmatpush1.msra.mxu0 0.0
  %1305 = vmatprep.subr.mxu0 0.0
  %1306 = vmatpush1.msra.mxu0 0.0
  %1307 = vmatprep.subr.mxu0 0.0
  %1308 = vmatpush1.msra.mxu0 0.0
  %1309 = vmatprep.subr.mxu0 0.0
  %1310 = vmatpush1.msra.mxu0 0.0
  %1311 = vmatprep.subr.mxu0 0.0
  %1312 = vmatpush1.msra.mxu0 0.0
  %1313 = vmatprep.subr.mxu0 0.0
  %1314 = vmatpush1.msra.mxu0 0.0
  %1315 = vmatprep.subr.mxu0 0.0
  %1316 = vmatpush1.msra.mxu0 0.0
  %1317 = vmatprep.subr.mxu0 0.0
  %1318 = vmatpush1.msra.mxu0 0.0
  %1319 = vmatprep.subr.mxu0 0.0
  %1320 = vmatpush1.msra.mxu0 0.0
  %1321 = vmatprep.subr.mxu0 0.0
  %1322 = vmatpush1.msra.mxu0 0.0
  %1323 = vmatprep.subr.mxu0 0.0
  %1324 = vmatpush1.msra.mxu0 0.0
  %1325 = vmatprep.subr.mxu0 0.0
  %1326 = vmatpush1.msra.mxu0 0.0
  %1327 = vmatprep.subr.mxu0 0.0
  %1328 = vmatpush1.msra.mxu0 0.0
  %1329 = vmatprep.subr.mxu0 0.0
  %1330 = vmatpush1.msra.mxu0 0.0
  %1331 = vmatprep.subr.mxu0 0.0
  %1332 = vmatpush1.msra.mxu0 0.0
  %1333 = vmatprep.subr.mxu0 0.0
  %1334 = vmatpush1.msra.mxu0 0.0
  %1335 = vmatprep.subr.mxu0 0.0
  %1336 = vmatpush1.msra.mxu0 0.0
  %1337 = vmatprep.subr.mxu0 0.0
  %1338 = vmatpush1.msra.mxu0 0.0
  %1339 = vmatprep.subr.mxu0 0.0
  %1340 = vmatpush1.msra.mxu0 0.0
  %1341 = vmatprep.mubr.f32.mxu0 0.0
  %1342 = vmatmul.mubr.f32.gmra.mrb[0].mxu0 %v1230
  %v1343 = vpop.f32.mrb[0].mxu0
  %v1344 = vadd.f32 0.0, %v1343
  %v1345 = vpop.f32.mrb[0].mxu0
  %v1346 = vadd.f32 0.0, %v1345
  %1347 = vmatprep.mubr.f32.mxu0 0.0
  %1348 = vmatmul.mubr.f32.gmra.mrb[0].mxu0 %v1233
  %v1349 = vpop.f32.mrb[0].mxu0
  %v1350 = vadd.f32 0.0, %v1349
  %v1351 = vpop.f32.mrb[0].mxu0
  %v1352 = vadd.f32 0.0, %v1351
  %1353 = vmatprep.mubr.f32.mxu0 0.0
  %1354 = vmatmul.mubr.f32.gmra.mrb[0].mxu0 %v1236
  %v1355 = vpop.f32.mrb[0].mxu0
  %v1356 = vadd.f32 0.0, %v1355
  %v1357 = vpop.f32.mrb[0].mxu0
  %v1358 = vadd.f32 0.0, %v1357
  %1359 = vmatprep.mubr.f32.mxu0 0.0
  %1360 = vmatmul.mubr.f32.gmra.mrb[0].mxu0 %v1239
  %v1361 = vpop.f32.mrb[0].mxu0
  %v1362 = vadd.f32 0.0, %v1361
  %v1363 = vpop.f32.mrb[0].mxu0
  %v1364 = vadd.f32 0.0, %v1363
  %1365 = vmatprep.mubr.f32.mxu0 0.0
  %1366 = vmatmul.mubr.f32.gmra.mrb[0].mxu0 %v1242
  %v1367 = vpop.f32.mrb[0].mxu0
  %v1368 = vadd.f32 0.0, %v1367
  %v1369 = vpop.f32.mrb[0].mxu0
  %v1370 = vadd.f32 0.0, %v1369
  %1371 = vmatprep.mubr.f32.mxu0 0.0
  %1372 = vmatmul.mubr.f32.gmra.mrb[0].mxu0 %v1245
  %v1373 = vpop.f32.mrb[0].mxu0
  %v1374 = vadd.f32 0.0, %v1373
  %v1375 = vpop.f32.mrb[0].mxu0
  %v1376 = vadd.f32 0.0, %v1375
  %1377 = vmatprep.mubr.f32.mxu0 0.0
  %1378 = vmatmul.mubr.f32.gmra.mrb[0].mxu0 %v1248
  %v1379 = vpop.f32.mrb[0].mxu0
  %v1380 = vadd.f32 0.0, %v1379
  %v1381 = vpop.f32.mrb[0].mxu0
  %v1382 = vadd.f32 0.0, %v1381
  %1383 = vmatprep.mubr.f32.mxu0 0.0
  %1384 = vmatmul.mubr.f32.gmra.mrb[0].mxu0 %v1251
  %v1385 = vpop.f32.mrb[0].mxu0
  %v1386 = vadd.f32 0.0, %v1385
  %v1387 = vpop.f32.mrb[0].mxu0
  %v1388 = vadd.f32 0.0, %v1387
  %1389 = vmatprep.mubr.f32.mxu0 0.0
  %1390 = vmatmul.mubr.f32.gmra.mrb[0].mxu0 %v1254
  %v1391 = vpop.f32.mrb[0].mxu0
  %v1392 = vadd.f32 0.0, %v1391
  %v1393 = vpop.f32.mrb[0].mxu0
  %v1394 = vadd.f32 0.0, %v1393
  %1395 = vmatprep.mubr.f32.mxu0 0.0
  %1396 = vmatmul.mubr.f32.gmra.mrb[0].mxu0 %v1257
  %v1397 = vpop.f32.mrb[0].mxu0
  %v1398 = vadd.f32 0.0, %v1397
  %v1399 = vpop.f32.mrb[0].mxu0
  %v1400 = vadd.f32 0.0, %v1399
  %1401 = vmatprep.mubr.f32.mxu0 0.0
  %1402 = vmatmul.mubr.f32.gmra.mrb[0].mxu0 %v1260
  %v1403 = vpop.f32.mrb[0].mxu0
  %v1404 = vadd.f32 0.0, %v1403
  %v1405 = vpop.f32.mrb[0].mxu0
  %v1406 = vadd.f32 0.0, %v1405
  %1407 = vmatprep.mubr.f32.mxu0 0.0
  %1408 = vmatmul.mubr.f32.gmra.mrb[0].mxu0 %v1263
  %v1409 = vpop.f32.mrb[0].mxu0
  %v1410 = vadd.f32 0.0, %v1409
  %v1411 = vpop.f32.mrb[0].mxu0
  %v1412 = vadd.f32 0.0, %v1411
  %1413 = vmatprep.mubr.f32.mxu0 0.0
  %1414 = vmatmul.mubr.f32.gmra.mrb[0].mxu0 %v1266
  %v1415 = vpop.f32.mrb[0].mxu0
  %v1416 = vadd.f32 0.0, %v1415
  %v1417 = vpop.f32.mrb[0].mxu0
  %v1418 = vadd.f32 0.0, %v1417
  %1419 = vmatprep.mubr.f32.mxu0 0.0
  %1420 = vmatmul.mubr.f32.gmra.mrb[0].mxu0 %v1269
  %v1421 = vpop.f32.mrb[0].mxu0
  %v1422 = vadd.f32 0.0, %v1421
  %v1423 = vpop.f32.mrb[0].mxu0
  %v1424 = vadd.f32 0.0, %v1423
  %1425 = vmatprep.mubr.f32.mxu0 0.0
  %1426 = vmatmul.mubr.f32.gmra.mrb[0].mxu0 %v1272
  %v1427 = vpop.f32.mrb[0].mxu0
  %v1428 = vadd.f32 0.0, %v1427
  %v1429 = vpop.f32.mrb[0].mxu0
  %v1430 = vadd.f32 0.0, %v1429
  %1431 = vmatprep.mubr.f32.mxu0 0.0
  %1432 = vmatmul.mubr.f32.gmra.mrb[0].mxu0 %v1275
  %v1433 = vpop.f32.mrb[0].mxu0
  %v1434 = vadd.f32 0.0, %v1433
  %v1435 = vpop.f32.mrb[0].mxu0
  %v1436 = vadd.f32 0.0, %v1435
  %1437 = vdwg.mxu0
  %v1438 = vmul.f32 %v1344, %v401
  %v1439 = vmul.f32 %v1346, %v403
  %v1440 = vmul.f32 %v1350, %v407
  %v1441 = vmul.f32 %v1352, %v409
  %v1442 = vmul.f32 %v1356, %v413
  %v1443 = vmul.f32 %v1358, %v415
  %v1444 = vmul.f32 %v1362, %v419
  %v1445 = vmul.f32 %v1364, %v421
  %v1446 = vmul.f32 %v1368, %v425
  %v1447 = vmul.f32 %v1370, %v427
  %v1448 = vmul.f32 %v1374, %v431
  %v1449 = vmul.f32 %v1376, %v433
  %v1450 = vmul.f32 %v1380, %v437
  %v1451 = vmul.f32 %v1382, %v439
  %v1452 = vmul.f32 %v1386, %v443
  %v1453 = vmul.f32 %v1388, %v445
  %v1454 = vmul.f32 %v1392, %v449
  %v1455 = vmul.f32 %v1394, %v451
  %v1456 = vmul.f32 %v1398, %v455
  %v1457 = vmul.f32 %v1400, %v457
  %v1458 = vmul.f32 %v1404, %v461
  %v1459 = vmul.f32 %v1406, %v463
  %v1460 = vmul.f32 %v1410, %v467
  %v1461 = vmul.f32 %v1412, %v469
  %v1462 = vmul.f32 %v1416, %v473
  %v1463 = vmul.f32 %v1418, %v475
  %v1464 = vmul.f32 %v1422, %v479
  %v1465 = vmul.f32 %v1424, %v481
  %v1466 = vmul.f32 %v1428, %v485
  %v1467 = vmul.f32 %v1430, %v487
  %v1468 = vmul.f32 %v1434, %v491
  %v1469 = vmul.f32 %v1436, %v493
  %v1470 = vadd.f32 %v1438, %v1440
  %v1471 = vrot.slane %v1470, 4
  %v1472 = vadd.f32 %v1470, %v1471
  %v1473 = vrot.slane %v1472, 2
  %v1474 = vadd.f32 %v1472, %v1473
  %v1475 = vrot.slane %v1474, 1
  %v1476 = vadd.f32 %v1474, %v1475
  %v1477 = vadd.f32 %v1439, %v1441
  %v1478 = vrot.slane %v1477, 4
  %v1479 = vadd.f32 %v1477, %v1478
  %v1480 = vrot.slane %v1479, 2
  %v1481 = vadd.f32 %v1479, %v1480
  %v1482 = vrot.slane %v1481, 1
  %v1483 = vadd.f32 %v1481, %v1482
  %v1484 = vadd.f32 %v1442, %v1444
  %v1485 = vrot.slane %v1484, 4
  %v1486 = vadd.f32 %v1484, %v1485
  %v1487 = vrot.slane %v1486, 2
  %v1488 = vadd.f32 %v1486, %v1487
  %v1489 = vrot.slane %v1488, 1
  %v1490 = vadd.f32 %v1488, %v1489
  %v1491 = vadd.f32 %v1443, %v1445
  %v1492 = vrot.slane %v1491, 4
  %v1493 = vadd.f32 %v1491, %v1492
  %v1494 = vrot.slane %v1493, 2
  %v1495 = vadd.f32 %v1493, %v1494
  %v1496 = vrot.slane %v1495, 1
  %v1497 = vadd.f32 %v1495, %v1496
  %v1498 = vadd.f32 %v1446, %v1448
  %v1499 = vrot.slane %v1498, 4
  %v1500 = vadd.f32 %v1498, %v1499
  %v1501 = vrot.slane %v1500, 2
  %v1502 = vadd.f32 %v1500, %v1501
  %v1503 = vrot.slane %v1502, 1
  %v1504 = vadd.f32 %v1502, %v1503
  %v1505 = vadd.f32 %v1447, %v1449
  %v1506 = vrot.slane %v1505, 4
  %v1507 = vadd.f32 %v1505, %v1506
  %v1508 = vrot.slane %v1507, 2
  %v1509 = vadd.f32 %v1507, %v1508
  %v1510 = vrot.slane %v1509, 1
  %v1511 = vadd.f32 %v1509, %v1510
  %v1512 = vadd.f32 %v1450, %v1452
  %v1513 = vrot.slane %v1512, 4
  %v1514 = vadd.f32 %v1512, %v1513
  %v1515 = vrot.slane %v1514, 2
  %v1516 = vadd.f32 %v1514, %v1515
  %v1517 = vrot.slane %v1516, 1
  %v1518 = vadd.f32 %v1516, %v1517
  %v1519 = vadd.f32 %v1451, %v1453
  %v1520 = vrot.slane %v1519, 4
  %v1521 = vadd.f32 %v1519, %v1520
  %v1522 = vrot.slane %v1521, 2
  %v1523 = vadd.f32 %v1521, %v1522
  %v1524 = vrot.slane %v1523, 1
  %v1525 = vadd.f32 %v1523, %v1524
  %v1526 = vadd.f32 %v1454, %v1456
  %v1527 = vrot.slane %v1526, 4
  %v1528 = vadd.f32 %v1526, %v1527
  %v1529 = vrot.slane %v1528, 2
  %v1530 = vadd.f32 %v1528, %v1529
  %v1531 = vrot.slane %v1530, 1
  %v1532 = vadd.f32 %v1530, %v1531
  %v1533 = vadd.f32 %v1455, %v1457
  %v1534 = vrot.slane %v1533, 4
  %v1535 = vadd.f32 %v1533, %v1534
  %v1536 = vrot.slane %v1535, 2
  %v1537 = vadd.f32 %v1535, %v1536
  %v1538 = vrot.slane %v1537, 1
  %v1539 = vadd.f32 %v1537, %v1538
  %v1540 = vadd.f32 %v1458, %v1460
  %v1541 = vrot.slane %v1540, 4
  %v1542 = vadd.f32 %v1540, %v1541
  %v1543 = vrot.slane %v1542, 2
  %v1544 = vadd.f32 %v1542, %v1543
  %v1545 = vrot.slane %v1544, 1
  %v1546 = vadd.f32 %v1544, %v1545
  %v1547 = vadd.f32 %v1459, %v1461
  %v1548 = vrot.slane %v1547, 4
  %v1549 = vadd.f32 %v1547, %v1548
  %v1550 = vrot.slane %v1549, 2
  %v1551 = vadd.f32 %v1549, %v1550
  %v1552 = vrot.slane %v1551, 1
  %v1553 = vadd.f32 %v1551, %v1552
  %v1554 = vadd.f32 %v1462, %v1464
  %v1555 = vrot.slane %v1554, 4
  %v1556 = vadd.f32 %v1554, %v1555
  %v1557 = vrot.slane %v1556, 2
  %v1558 = vadd.f32 %v1556, %v1557
  %v1559 = vrot.slane %v1558, 1
  %v1560 = vadd.f32 %v1558, %v1559
  %v1561 = vadd.f32 %v1463, %v1465
  %v1562 = vrot.slane %v1561, 4
  %v1563 = vadd.f32 %v1561, %v1562
  %v1564 = vrot.slane %v1563, 2
  %v1565 = vadd.f32 %v1563, %v1564
  %v1566 = vrot.slane %v1565, 1
  %v1567 = vadd.f32 %v1565, %v1566
  %v1568 = vadd.f32 %v1466, %v1468
  %v1569 = vrot.slane %v1568, 4
  %v1570 = vadd.f32 %v1568, %v1569
  %v1571 = vrot.slane %v1570, 2
  %v1572 = vadd.f32 %v1570, %v1571
  %v1573 = vrot.slane %v1572, 1
  %v1574 = vadd.f32 %v1572, %v1573
  %v1575 = vadd.f32 %v1467, %v1469
  %v1576 = vrot.slane %v1575, 4
  %v1577 = vadd.f32 %v1575, %v1576
  %v1578 = vrot.slane %v1577, 2
  %v1579 = vadd.f32 %v1577, %v1578
  %v1580 = vrot.slane %v1579, 1
  %v1581 = vadd.f32 %v1579, %v1580
  %v1582 = vld [vmem:[%s8] sm:$0xff]
  %v1583 = vld [vmem:[%s8 + $0x8] sm:$0xff]
  %v1584 = vld [vmem:[%s8 + $0x10] sm:$0xff]
  %v1585 = vld [vmem:[%s8 + $0x18] sm:$0xff]
  %v1586 = vld [vmem:[%s8 + $0x20] sm:$0xff]
  %v1587 = vld [vmem:[%s8 + $0x28] sm:$0xff]
  %v1588 = vld [vmem:[%s8 + $0x30] sm:$0xff]
  %v1589 = vld [vmem:[%s8 + $0x38] sm:$0xff]
  %v1590 = vld [vmem:[%s8 + $0x40] sm:$0xff]
  %v1591 = vld [vmem:[%s8 + $0x48] sm:$0xff]
  %v1592 = vld [vmem:[%s8 + $0x50] sm:$0xff]
  %v1593 = vld [vmem:[%s8 + $0x58] sm:$0xff]
  %v1594 = vld [vmem:[%s8 + $0x60] sm:$0xff]
  %v1595 = vld [vmem:[%s8 + $0x68] sm:$0xff]
  %v1596 = vld [vmem:[%s8 + $0x70] sm:$0xff]
  %v1597 = vld [vmem:[%s8 + $0x78] sm:$0xff]
  %v1598 = vld [vmem:[%s8 + $0x80] sm:$0xff]
  %v1599 = vld [vmem:[%s8 + $0x88] sm:$0xff]
  %v1600 = vld [vmem:[%s8 + $0x90] sm:$0xff]
  %v1601 = vld [vmem:[%s8 + $0x98] sm:$0xff]
  %v1602 = vld [vmem:[%s8 + $0xa0] sm:$0xff]
  %v1603 = vld [vmem:[%s8 + $0xa8] sm:$0xff]
  %v1604 = vld [vmem:[%s8 + $0xb0] sm:$0xff]
  %v1605 = vld [vmem:[%s8 + $0xb8] sm:$0xff]
  %v1606 = vld [vmem:[%s8 + $0xc0] sm:$0xff]
  %v1607 = vld [vmem:[%s8 + $0xc8] sm:$0xff]
  %v1608 = vld [vmem:[%s8 + $0xd0] sm:$0xff]
  %v1609 = vld [vmem:[%s8 + $0xd8] sm:$0xff]
  %v1610 = vld [vmem:[%s8 + $0xe0] sm:$0xff]
  %v1611 = vld [vmem:[%s8 + $0xe8] sm:$0xff]
  %v1612 = vld [vmem:[%s8 + $0xf0] sm:$0xff]
  %v1613 = vld [vmem:[%s8 + $0xf8] sm:$0xff]
  %v1614 = vld [vmem:[%s16] sm:$0x1]
  %v1615 = vlaneseq
  %v1616 = vshrl.u32 %v1615, 7
  %v1617 = vsub.s32 0, %v1616
  %v1618 = vrot.slane %v1614, %v1617
  %v1635 = vsel %vm549, %v1490, %v1476
  %v1636 = vsel %vm552, %v1504, %v1635
  %v1637 = vsel %vm555, %v1518, %v1636
  %v1638 = vsel %vm558, %v1532, %v1637
  %v1639 = vsel %vm561, %v1546, %v1638
  %v1640 = vsel %vm564, %v1560, %v1639
  %v1641 = vsel %vm567, %v1574, %v1640
  %v1642 = vsel %vm549, %v1497, %v1483
  %v1643 = vsel %vm552, %v1511, %v1642
  %v1644 = vsel %vm555, %v1525, %v1643
  %v1645 = vsel %vm558, %v1539, %v1644
  %v1646 = vsel %vm561, %v1553, %v1645
  %v1647 = vsel %vm564, %v1567, %v1646
  %v1648 = vsel %vm567, %v1581, %v1647
  %1651 = vmatprep.subr.mxu0 0.0
  %1652 = vmatpush1.msra.mxu0 %v1582
  %1653 = vmatprep.subr.mxu0 0.0
  %1654 = vmatpush1.msra.mxu0 %v1583
  %1655 = vmatprep.subr.mxu0 0.0
  %1656 = vmatpush1.msra.mxu0 %v1584
  %1657 = vmatprep.subr.mxu0 0.0
  %1658 = vmatpush1.msra.mxu0 %v1585
  %1659 = vmatprep.subr.mxu0 0.0
  %1660 = vmatpush1.msra.mxu0 %v1586
  %1661 = vmatprep.subr.mxu0 0.0
  %1662 = vmatpush1.msra.mxu0 %v1587
  %1663 = vmatprep.subr.mxu0 0.0
  %1664 = vmatpush1.msra.mxu0 %v1588
  %1665 = vmatprep.subr.mxu0 0.0
  %1666 = vmatpush1.msra.mxu0 %v1589
  %1667 = vmatprep.subr.mxu0 0.0
  %1668 = vmatpush1.msra.mxu0 %v1590
  %1669 = vmatprep.subr.mxu0 0.0
  %1670 = vmatpush1.msra.mxu0 %v1591
  %1671 = vmatprep.subr.mxu0 0.0
  %1672 = vmatpush1.msra.mxu0 %v1592
  %1673 = vmatprep.subr.mxu0 0.0
  %1674 = vmatpush1.msra.mxu0 %v1593
  %1675 = vmatprep.subr.mxu0 0.0
  %1676 = vmatpush1.msra.mxu0 %v1594
  %1677 = vmatprep.subr.mxu0 0.0
  %1678 = vmatpush1.msra.mxu0 %v1595
  %1679 = vmatprep.subr.mxu0 0.0
  %1680 = vmatpush1.msra.mxu0 %v1596
  %1681 = vmatprep.subr.mxu0 0.0
  %1682 = vmatpush1.msra.mxu0 %v1597
  %1683 = vmatprep.subr.mxu0 0.0
  %1684 = vmatpush1.msra.mxu0 %v1598
  %1685 = vmatprep.subr.mxu0 0.0
  %1686 = vmatpush1.msra.mxu0 %v1599
  %1687 = vmatprep.subr.mxu0 0.0
  %1688 = vmatpush1.msra.mxu0 %v1600
  %1689 = vmatprep.subr.mxu0 0.0
  %1690 = vmatpush1.msra.mxu0 %v1601
  %1691 = vmatprep.subr.mxu0 0.0
  %1692 = vmatpush1.msra.mxu0 %v1602
  %1693 = vmatprep.subr.mxu0 0.0
  %1694 = vmatpush1.msra.mxu0 %v1603
  %1695 = vmatprep.subr.mxu0 0.0
  %1696 = vmatpush1.msra.mxu0 %v1604
  %1697 = vmatprep.subr.mxu0 0.0
  %1698 = vmatpush1.msra.mxu0 %v1605
  %1699 = vmatprep.subr.mxu0 0.0
  %1700 = vmatpush1.msra.mxu0 %v1606
  %1701 = vmatprep.subr.mxu0 0.0
  %1702 = vmatpush1.msra.mxu0 %v1607
  %1703 = vmatprep.subr.mxu0 0.0
  %1704 = vmatpush1.msra.mxu0 %v1608
  %1705 = vmatprep.subr.mxu0 0.0
  %1706 = vmatpush1.msra.mxu0 %v1609
  %1707 = vmatprep.subr.mxu0 0.0
  %1708 = vmatpush1.msra.mxu0 %v1610
  %1709 = vmatprep.subr.mxu0 0.0
  %1710 = vmatpush1.msra.mxu0 %v1611
  %1711 = vmatprep.subr.mxu0 0.0
  %1712 = vmatpush1.msra.mxu0 %v1612
  %1713 = vmatprep.subr.mxu0 0.0
  %1714 = vmatpush1.msra.mxu0 %v1613
  %1715 = vmatprep.mubr.f32.mxu0 %v1648
  %1716 = vmatmul.mubr.f32.gmra.mrb[0].mxu0 %v1641
  %v1717 = vpop.f32.mrb[0].mxu0
  %v1718 = vadd.f32 %v1618, %v1717
  %v1719 = vpop.f32.mrb[0].mxu0
  %1720 = vdwg.mxu0
  %v1722 = vrot.slane %v1718, 1
  %v1723 = vrot.slane %v1718, 2
  %v1724 = vrot.slane %v1718, 3
  %v1725 = vrot.slane %v1718, 4
  %v1726 = vrot.slane %v1718, 5
  %v1727 = vrot.slane %v1718, 6
  %v1728 = vrot.slane %v1718, 7
  %v1737 = vadd.f32 %v275, %v1718
  %v1738 = vadd.f32 %v277, %v1722
  %v1739 = vadd.f32 %v279, %v1723
  %v1740 = vadd.f32 %v281, %v1724
  %v1741 = vadd.f32 %v283, %v1725
  %v1742 = vadd.f32 %v285, %v1726
  %v1743 = vadd.f32 %v287, %v1727
  %v1744 = vadd.f32 %v289, %v1728
  %v1745 = vld [vmem:[%s16 + $0x1] sm:$0x1]
  %v1746 = vld [vmem:[%s16 + $0x2] sm:$0x1]
  %v1747 = vld [vmem:[%s12] sm:$0xff]
  %v1748 = vld [vmem:[%s12 + $0x8] sm:$0xff]
  %v1749 = vld [vmem:[%s12 + $0x10] sm:$0xff]
  %v1750 = vld [vmem:[%s12 + $0x18] sm:$0xff]
  %v1751 = vld [vmem:[%s12 + $0x20] sm:$0xff]
  %v1752 = vld [vmem:[%s12 + $0x28] sm:$0xff]
  %v1753 = vld [vmem:[%s12 + $0x30] sm:$0xff]
  %v1754 = vld [vmem:[%s12 + $0x38] sm:$0xff]
  %v1755 = vld [vmem:[%s12 + $0x40] sm:$0xff]
  %v1756 = vld [vmem:[%s12 + $0x48] sm:$0xff]
  %v1757 = vld [vmem:[%s12 + $0x50] sm:$0xff]
  %v1758 = vld [vmem:[%s12 + $0x58] sm:$0xff]
  %v1759 = vld [vmem:[%s12 + $0x60] sm:$0xff]
  %v1760 = vld [vmem:[%s12 + $0x68] sm:$0xff]
  %v1761 = vld [vmem:[%s12 + $0x70] sm:$0xff]
  %v1762 = vld [vmem:[%s12 + $0x78] sm:$0xff]
  %v1771 = vrot.slane %v1738, 7
  %v1772 = vsel %vm549, %v1771, %v1737
  %v1773 = vrot.slane %v1739, 6
  %v1774 = vsel %vm552, %v1773, %v1772
  %v1775 = vrot.slane %v1740, 5
  %v1776 = vsel %vm555, %v1775, %v1774
  %v1777 = vrot.slane %v1741, 4
  %v1778 = vsel %vm558, %v1777, %v1776
  %v1779 = vrot.slane %v1742, 3
  %v1780 = vsel %vm561, %v1779, %v1778
  %v1781 = vrot.slane %v1743, 2
  %v1782 = vsel %vm564, %v1781, %v1780
  %v1783 = vrot.slane %v1744, 1
  %v1784 = vsel %vm567, %v1783, %v1782
  %1786 = vmatprep.subr.mxu0 0.0
  %1787 = vmatpush1.msra.mxu0 %v1747
  %1788 = vmatprep.subr.mxu0 0.0
  %1789 = vmatpush1.msra.mxu0 %v1748
  %1790 = vmatprep.subr.mxu0 0.0
  %1791 = vmatpush1.msra.mxu0 %v1749
  %1792 = vmatprep.subr.mxu0 0.0
  %1793 = vmatpush1.msra.mxu0 %v1750
  %1794 = vmatprep.subr.mxu0 0.0
  %1795 = vmatpush1.msra.mxu0 %v1751
  %1796 = vmatprep.subr.mxu0 0.0
  %1797 = vmatpush1.msra.mxu0 %v1752
  %1798 = vmatprep.subr.mxu0 0.0
  %1799 = vmatpush1.msra.mxu0 %v1753
  %1800 = vmatprep.subr.mxu0 0.0
  %1801 = vmatpush1.msra.mxu0 %v1754
  %1802 = vmatprep.subr.mxu0 0.0
  %1803 = vmatpush1.msra.mxu0 %v1755
  %1804 = vmatprep.subr.mxu0 0.0
  %1805 = vmatpush1.msra.mxu0 %v1756
  %1806 = vmatprep.subr.mxu0 0.0
  %1807 = vmatpush1.msra.mxu0 %v1757
  %1808 = vmatprep.subr.mxu0 0.0
  %1809 = vmatpush1.msra.mxu0 %v1758
  %1810 = vmatprep.subr.mxu0 0.0
  %1811 = vmatpush1.msra.mxu0 %v1759
  %1812 = vmatprep.subr.mxu0 0.0
  %1813 = vmatpush1.msra.mxu0 %v1760
  %1814 = vmatprep.subr.mxu0 0.0
  %1815 = vmatpush1.msra.mxu0 %v1761
  %1816 = vmatprep.subr.mxu0 0.0
  %1817 = vmatpush1.msra.mxu0 %v1762
  %1818 = vmatprep.subr.mxu0 0.0
  %1819 = vmatpush1.msra.mxu0 0.0
  %1820 = vmatprep.subr.mxu0 0.0
  %1821 = vmatpush1.msra.mxu0 0.0
  %1822 = vmatprep.subr.mxu0 0.0
  %1823 = vmatpush1.msra.mxu0 0.0
  %1824 = vmatprep.subr.mxu0 0.0
  %1825 = vmatpush1.msra.mxu0 0.0
  %1826 = vmatprep.subr.mxu0 0.0
  %1827 = vmatpush1.msra.mxu0 0.0
  %1828 = vmatprep.subr.mxu0 0.0
  %1829 = vmatpush1.msra.mxu0 0.0
  %1830 = vmatprep.subr.mxu0 0.0
  %1831 = vmatpush1.msra.mxu0 0.0
  %1832 = vmatprep.subr.mxu0 0.0
  %1833 = vmatpush1.msra.mxu0 0.0
  %1834 = vmatprep.subr.mxu0 0.0
  %1835 = vmatpush1.msra.mxu0 0.0
  %1836 = vmatprep.subr.mxu0 0.0
  %1837 = vmatpush1.msra.mxu0 0.0
  %1838 = vmatprep.subr.mxu0 0.0
  %1839 = vmatpush1.msra.mxu0 0.0
  %1840 = vmatprep.subr.mxu0 0.0
  %1841 = vmatpush1.msra.mxu0 0.0
  %1842 = vmatprep.subr.mxu0 0.0
  %1843 = vmatpush1.msra.mxu0 0.0
  %1844 = vmatprep.subr.mxu0 0.0
  %1845 = vmatpush1.msra.mxu0 0.0
  %1846 = vmatprep.subr.mxu0 0.0
  %1847 = vmatpush1.msra.mxu0 0.0
  %1848 = vmatprep.subr.mxu0 0.0
  %1849 = vmatpush1.msra.mxu0 0.0
  %1850 = vmatprep.mubr.f32.mxu0 0.0
  %1851 = vmatmul.mubr.f32.gmra.mrb[0].mxu0 %v1784
  %v1852 = vpop.f32.mrb[0].mxu0
  %v1853 = vadd.f32 0.0, %v1852
  %v1854 = vpop.f32.mrb[0].mxu0
  %1855 = vdwg.mxu0
  %v1856 = vld [vmem:[%s13] sm:$0xf]
  %vm1857 = vcmask 31744
  %v1859 = vsel %vm1857, %v1853, 0
  %vm1861 = vcmask 1043456
  %v1863 = vsel %vm1861, %v1856, 0
  %1865 = vmatprep.subr.mxu0 0.0
  %1866 = vmatpush1.msra.mxu0 %v1863
  %1867 = vmatprep.subr.mxu0 0.0
  %1868 = vmatpush1.msra.mxu0 0.0
  %1869 = vmatprep.subr.mxu0 0.0
  %1870 = vmatpush1.msra.mxu0 0.0
  %1871 = vmatprep.subr.mxu0 0.0
  %1872 = vmatpush1.msra.mxu0 0.0
  %1873 = vmatprep.subr.mxu0 0.0
  %1874 = vmatpush1.msra.mxu0 0.0
  %1875 = vmatprep.subr.mxu0 0.0
  %1876 = vmatpush1.msra.mxu0 0.0
  %1877 = vmatprep.subr.mxu0 0.0
  %1878 = vmatpush1.msra.mxu0 0.0
  %1879 = vmatprep.subr.mxu0 0.0
  %1880 = vmatpush1.msra.mxu0 0.0
  %1881 = vmatprep.subr.mxu0 0.0
  %1882 = vmatpush1.msra.mxu0 0.0
  %1883 = vmatprep.subr.mxu0 0.0
  %1884 = vmatpush1.msra.mxu0 0.0
  %1885 = vmatprep.subr.mxu0 0.0
  %1886 = vmatpush1.msra.mxu0 0.0
  %1887 = vmatprep.subr.mxu0 0.0
  %1888 = vmatpush1.msra.mxu0 0.0
  %1889 = vmatprep.subr.mxu0 0.0
  %1890 = vmatpush1.msra.mxu0 0.0
  %1891 = vmatprep.subr.mxu0 0.0
  %1892 = vmatpush1.msra.mxu0 0.0
  %1893 = vmatprep.subr.mxu0 0.0
  %1894 = vmatpush1.msra.mxu0 0.0
  %1895 = vmatprep.subr.mxu0 0.0
  %1896 = vmatpush1.msra.mxu0 0.0
  %1897 = vmatprep.subr.mxu0 0.0
  %1898 = vmatpush1.msra.mxu0 0.0
  %1899 = vmatprep.subr.mxu0 0.0
  %1900 = vmatpush1.msra.mxu0 0.0
  %1901 = vmatprep.subr.mxu0 0.0
  %1902 = vmatpush1.msra.mxu0 0.0
  %1903 = vmatprep.subr.mxu0 0.0
  %1904 = vmatpush1.msra.mxu0 0.0
  %1905 = vmatprep.subr.mxu0 0.0
  %1906 = vmatpush1.msra.mxu0 0.0
  %1907 = vmatprep.subr.mxu0 0.0
  %1908 = vmatpush1.msra.mxu0 0.0
  %1909 = vmatprep.subr.mxu0 0.0
  %1910 = vmatpush1.msra.mxu0 0.0
  %1911 = vmatprep.subr.mxu0 0.0
  %1912 = vmatpush1.msra.mxu0 0.0
  %1913 = vmatprep.subr.mxu0 0.0
  %1914 = vmatpush1.msra.mxu0 0.0
  %1915 = vmatprep.subr.mxu0 0.0
  %1916 = vmatpush1.msra.mxu0 0.0
  %1917 = vmatprep.subr.mxu0 0.0
  %1918 = vmatpush1.msra.mxu0 0.0
  %1919 = vmatprep.subr.mxu0 0.0
  %1920 = vmatpush1.msra.mxu0 0.0
  %1921 = vmatprep.subr.mxu0 0.0
  %1922 = vmatpush1.msra.mxu0 0.0
  %1923 = vmatprep.subr.mxu0 0.0
  %1924 = vmatpush1.msra.mxu0 0.0
  %1925 = vmatprep.subr.mxu0 0.0
  %1926 = vmatpush1.msra.mxu0 0.0
  %1927 = vmatprep.subr.mxu0 0.0
  %1928 = vmatpush1.msra.mxu0 0.0
  %1929 = vmatprep.mubr.f32.mxu0 0.0
  %1930 = vmatmul.mubr.f32.gmra.mrb[0].mxu0 %v1859
  %v1931 = vpop.f32.mrb[0].mxu0
  %v1932 = vadd.f32 0.0, %v1931
  %v1933 = vpop.f32.mrb[0].mxu0
  %1934 = vdwg.mxu0
  %v1936 = vrot.slane %v1932, 1
  %v1937 = vrot.slane %v1932, 2
  %v1938 = vrot.slane %v1932, 3
  %v1939 = vrot.slane %v1932, 4
  %v1940 = vrot.slane %v1932, 5
  %v1941 = vrot.slane %v1932, 6
  %v1942 = vrot.slane %v1932, 7
  %v1951 = vsub.f32 %v1737, %v1932
  %v1952 = vsub.f32 %v1738, %v1936
  %v1953 = vsub.f32 %v1739, %v1937
  %v1954 = vsub.f32 %v1740, %v1938
  %v1955 = vsub.f32 %v1741, %v1939
  %v1956 = vsub.f32 %v1742, %v1940
  %v1957 = vsub.f32 %v1743, %v1941
  %v1958 = vsub.f32 %v1744, %v1942
  %v1959 = vmul.f32 %v1951, %v1951
  %v1960 = vmul.f32 %v1952, %v1952
  %v1961 = vmul.f32 %v1953, %v1953
  %v1962 = vmul.f32 %v1954, %v1954
  %v1963 = vmul.f32 %v1955, %v1955
  %v1964 = vmul.f32 %v1956, %v1956
  %v1965 = vmul.f32 %v1957, %v1957
  %v1966 = vmul.f32 %v1958, %v1958
  %v1975 = vrot.slane %v1960, 7
  %v1976 = vsel %vm549, %v1975, %v1959
  %v1977 = vrot.slane %v1961, 6
  %v1978 = vsel %vm552, %v1977, %v1976
  %v1979 = vrot.slane %v1962, 5
  %v1980 = vsel %vm555, %v1979, %v1978
  %v1981 = vrot.slane %v1963, 4
  %v1982 = vsel %vm558, %v1981, %v1980
  %v1983 = vrot.slane %v1964, 3
  %v1984 = vsel %vm561, %v1983, %v1982
  %v1985 = vrot.slane %v1965, 2
  %v1986 = vsel %vm564, %v1985, %v1984
  %v1987 = vrot.slane %v1966, 1
  %v1988 = vsel %vm567, %v1987, %v1986
  %1990 = vmatprep.subr.mxu0 0.0
  %1991 = vmatpush1.msra.mxu0 %v1747
  %1992 = vmatprep.subr.mxu0 0.0
  %1993 = vmatpush1.msra.mxu0 %v1748
  %1994 = vmatprep.subr.mxu0 0.0
  %1995 = vmatpush1.msra.mxu0 %v1749
  %1996 = vmatprep.subr.mxu0 0.0
  %1997 = vmatpush1.msra.mxu0 %v1750
  %1998 = vmatprep.subr.mxu0 0.0
  %1999 = vmatpush1.msra.mxu0 %v1751
  %2000 = vmatprep.subr.mxu0 0.0
  %2001 = vmatpush1.msra.mxu0 %v1752
  %2002 = vmatprep.subr.mxu0 0.0
  %2003 = vmatpush1.msra.mxu0 %v1753
  %2004 = vmatprep.subr.mxu0 0.0
  %2005 = vmatpush1.msra.mxu0 %v1754
  %2006 = vmatprep.subr.mxu0 0.0
  %2007 = vmatpush1.msra.mxu0 %v1755
  %2008 = vmatprep.subr.mxu0 0.0
  %2009 = vmatpush1.msra.mxu0 %v1756
  %2010 = vmatprep.subr.mxu0 0.0
  %2011 = vmatpush1.msra.mxu0 %v1757
  %2012 = vmatprep.subr.mxu0 0.0
  %2013 = vmatpush1.msra.mxu0 %v1758
  %2014 = vmatprep.subr.mxu0 0.0
  %2015 = vmatpush1.msra.mxu0 %v1759
  %2016 = vmatprep.subr.mxu0 0.0
  %2017 = vmatpush1.msra.mxu0 %v1760
  %2018 = vmatprep.subr.mxu0 0.0
  %2019 = vmatpush1.msra.mxu0 %v1761
  %2020 = vmatprep.subr.mxu0 0.0
  %2021 = vmatpush1.msra.mxu0 %v1762
  %2022 = vmatprep.subr.mxu0 0.0
  %2023 = vmatpush1.msra.mxu0 0.0
  %2024 = vmatprep.subr.mxu0 0.0
  %2025 = vmatpush1.msra.mxu0 0.0
  %2026 = vmatprep.subr.mxu0 0.0
  %2027 = vmatpush1.msra.mxu0 0.0
  %2028 = vmatprep.subr.mxu0 0.0
  %2029 = vmatpush1.msra.mxu0 0.0
  %2030 = vmatprep.subr.mxu0 0.0
  %2031 = vmatpush1.msra.mxu0 0.0
  %2032 = vmatprep.subr.mxu0 0.0
  %2033 = vmatpush1.msra.mxu0 0.0
  %2034 = vmatprep.subr.mxu0 0.0
  %2035 = vmatpush1.msra.mxu0 0.0
  %2036 = vmatprep.subr.mxu0 0.0
  %2037 = vmatpush1.msra.mxu0 0.0
  %2038 = vmatprep.subr.mxu0 0.0
  %2039 = vmatpush1.msra.mxu0 0.0
  %2040 = vmatprep.subr.mxu0 0.0
  %2041 = vmatpush1.msra.mxu0 0.0
  %2042 = vmatprep.subr.mxu0 0.0
  %2043 = vmatpush1.msra.mxu0 0.0
  %2044 = vmatprep.subr.mxu0 0.0
  %2045 = vmatpush1.msra.mxu0 0.0
  %2046 = vmatprep.subr.mxu0 0.0
  %2047 = vmatpush1.msra.mxu0 0.0
  %2048 = vmatprep.subr.mxu0 0.0
  %2049 = vmatpush1.msra.mxu0 0.0
  %2050 = vmatprep.subr.mxu0 0.0
  %2051 = vmatpush1.msra.mxu0 0.0
  %2052 = vmatprep.subr.mxu0 0.0
  %2053 = vmatpush1.msra.mxu0 0.0
  %2054 = vmatprep.mubr.f32.mxu0 0.0
  %2055 = vmatmul.mubr.f32.gmra.mrb[0].mxu0 %v1988
  %v2056 = vpop.f32.mrb[0].mxu0
  %v2057 = vadd.f32 1e-05, %v2056
  %v2058 = vpop.f32.mrb[0].mxu0
  %2059 = vdwg.mxu0
  %v2060 = vrsqrt.pop %v2057
  %v2062 = vsel %vm1857, %v2060, 0
  %2064 = vmatprep.subr.mxu0 0.0
  %2065 = vmatpush1.msra.mxu0 %v1863
  %2066 = vmatprep.subr.mxu0 0.0
  %2067 = vmatpush1.msra.mxu0 0.0
  %2068 = vmatprep.subr.mxu0 0.0
  %2069 = vmatpush1.msra.mxu0 0.0
  %2070 = vmatprep.subr.mxu0 0.0
  %2071 = vmatpush1.msra.mxu0 0.0
  %2072 = vmatprep.subr.mxu0 0.0
  %2073 = vmatpush1.msra.mxu0 0.0
  %2074 = vmatprep.subr.mxu0 0.0
  %2075 = vmatpush1.msra.mxu0 0.0
  %2076 = vmatprep.subr.mxu0 0.0
  %2077 = vmatpush1.msra.mxu0 0.0
  %2078 = vmatprep.subr.mxu0 0.0
  %2079 = vmatpush1.msra.mxu0 0.0
  %2080 = vmatprep.subr.mxu0 0.0
  %2081 = vmatpush1.msra.mxu0 0.0
  %2082 = vmatprep.subr.mxu0 0.0
  %2083 = vmatpush1.msra.mxu0 0.0
  %2084 = vmatprep.subr.mxu0 0.0
  %2085 = vmatpush1.msra.mxu0 0.0
  %2086 = vmatprep.subr.mxu0 0.0
  %2087 = vmatpush1.msra.mxu0 0.0
  %2088 = vmatprep.subr.mxu0 0.0
  %2089 = vmatpush1.msra.mxu0 0.0
  %2090 = vmatprep.subr.mxu0 0.0
  %2091 = vmatpush1.msra.mxu0 0.0
  %2092 = vmatprep.subr.mxu0 0.0
  %2093 = vmatpush1.msra.mxu0 0.0
  %2094 = vmatprep.subr.mxu0 0.0
  %2095 = vmatpush1.msra.mxu0 0.0
  %2096 = vmatprep.subr.mxu0 0.0
  %2097 = vmatpush1.msra.mxu0 0.0
  %2098 = vmatprep.subr.mxu0 0.0
  %2099 = vmatpush1.msra.mxu0 0.0
  %2100 = vmatprep.subr.mxu0 0.0
  %2101 = vmatpush1.msra.mxu0 0.0
  %2102 = vmatprep.subr.mxu0 0.0
  %2103 = vmatpush1.msra.mxu0 0.0
  %2104 = vmatprep.subr.mxu0 0.0
  %2105 = vmatpush1.msra.mxu0 0.0
  %2106 = vmatprep.subr.mxu0 0.0
  %2107 = vmatpush1.msra.mxu0 0.0
  %2108 = vmatprep.subr.mxu0 0.0
  %2109 = vmatpush1.msra.mxu0 0.0
  %2110 = vmatprep.subr.mxu0 0.0
  %2111 = vmatpush1.msra.mxu0 0.0
  %2112 = vmatprep.subr.mxu0 0.0
  %2113 = vmatpush1.msra.mxu0 0.0
  %2114 = vmatprep.subr.mxu0 0.0
  %2115 = vmatpush1.msra.mxu0 0.0
  %2116 = vmatprep.subr.mxu0 0.0
  %2117 = vmatpush1.msra.mxu0 0.0
  %2118 = vmatprep.subr.mxu0 0.0
  %2119 = vmatpush1.msra.mxu0 0.0
  %2120 = vmatprep.subr.mxu0 0.0
  %2121 = vmatpush1.msra.mxu0 0.0
  %2122 = vmatprep.subr.mxu0 0.0
  %2123 = vmatpush1.msra.mxu0 0.0
  %2124 = vmatprep.subr.mxu0 0.0
  %2125 = vmatpush1.msra.mxu0 0.0
  %2126 = vmatprep.subr.mxu0 0.0
  %2127 = vmatpush1.msra.mxu0 0.0
  %2128 = vmatprep.mubr.f32.mxu0 0.0
  %2129 = vmatmul.mubr.f32.gmra.mrb[0].mxu0 %v2062
  %v2130 = vpop.f32.mrb[0].mxu0
  %v2131 = vadd.f32 0.0, %v2130
  %v2132 = vpop.f32.mrb[0].mxu0
  %2133 = vdwg.mxu0
  %v2135 = vrot.slane %v2131, 1
  %v2136 = vrot.slane %v2131, 2
  %v2137 = vrot.slane %v2131, 3
  %v2138 = vrot.slane %v2131, 4
  %v2139 = vrot.slane %v2131, 5
  %v2140 = vrot.slane %v2131, 6
  %v2141 = vrot.slane %v2131, 7
  %v2150 = vmul.f32 %v1951, %v2131
  %v2151 = vmul.f32 %v1952, %v2135
  %v2152 = vmul.f32 %v1953, %v2136
  %v2153 = vmul.f32 %v1954, %v2137
  %v2154 = vmul.f32 %v1955, %v2138
  %v2155 = vmul.f32 %v1956, %v2139
  %v2156 = vmul.f32 %v1957, %v2140
  %v2157 = vmul.f32 %v1958, %v2141
  %v2158 = vlaneseq
  %v2159 = vshrl.u32 %v2158, 7
  %v2160 = vsub.s32 0, %v2159
  %v2161 = vrot.slane %v1745, %v2160
  %v2162 = vmul.f32 %v2150, %v2161
  %v2163 = vmul.f32 %v2151, %v2161
  %v2164 = vmul.f32 %v2152, %v2161
  %v2165 = vmul.f32 %v2153, %v2161
  %v2166 = vmul.f32 %v2154, %v2161
  %v2167 = vmul.f32 %v2155, %v2161
  %v2168 = vmul.f32 %v2156, %v2161
  %v2169 = vmul.f32 %v2157, %v2161
  %v2170 = vlaneseq
  %v2171 = vshrl.u32 %v2170, 7
  %v2172 = vsub.s32 0, %v2171
  %v2173 = vrot.slane %v1746, %v2172
  %v2174 = vadd.f32 %v2162, %v2173
  %v2175 = vadd.f32 %v2163, %v2173
  %v2176 = vadd.f32 %v2164, %v2173
  %v2177 = vadd.f32 %v2165, %v2173
  %v2178 = vadd.f32 %v2166, %v2173
  %v2179 = vadd.f32 %v2167, %v2173
  %v2180 = vadd.f32 %v2168, %v2173
  %v2181 = vadd.f32 %v2169, %v2173
  %v2182 = vld [vmem:[%s9] sm:$0xff]
  %v2183 = vld [vmem:[%s9 + $0x8] sm:$0xff]
  %v2184 = vld [vmem:[%s9 + $0x10] sm:$0xff]
  %v2185 = vld [vmem:[%s9 + $0x18] sm:$0xff]
  %v2186 = vld [vmem:[%s9 + $0x20] sm:$0xff]
  %v2187 = vld [vmem:[%s9 + $0x28] sm:$0xff]
  %v2188 = vld [vmem:[%s9 + $0x30] sm:$0xff]
  %v2189 = vld [vmem:[%s9 + $0x38] sm:$0xff]
  %v2190 = vld [vmem:[%s9 + $0x40] sm:$0xff]
  %v2191 = vld [vmem:[%s9 + $0x48] sm:$0xff]
  %v2192 = vld [vmem:[%s9 + $0x50] sm:$0xff]
  %v2193 = vld [vmem:[%s9 + $0x58] sm:$0xff]
  %v2194 = vld [vmem:[%s9 + $0x60] sm:$0xff]
  %v2195 = vld [vmem:[%s9 + $0x68] sm:$0xff]
  %v2196 = vld [vmem:[%s9 + $0x70] sm:$0xff]
  %v2197 = vld [vmem:[%s9 + $0x78] sm:$0xff]
  %v2198 = vld [vmem:[%s9 + $0x80] sm:$0xff]
  %v2199 = vld [vmem:[%s9 + $0x88] sm:$0xff]
  %v2200 = vld [vmem:[%s9 + $0x90] sm:$0xff]
  %v2201 = vld [vmem:[%s9 + $0x98] sm:$0xff]
  %v2202 = vld [vmem:[%s9 + $0xa0] sm:$0xff]
  %v2203 = vld [vmem:[%s9 + $0xa8] sm:$0xff]
  %v2204 = vld [vmem:[%s9 + $0xb0] sm:$0xff]
  %v2205 = vld [vmem:[%s9 + $0xb8] sm:$0xff]
  %v2206 = vld [vmem:[%s9 + $0xc0] sm:$0xff]
  %v2207 = vld [vmem:[%s9 + $0xc8] sm:$0xff]
  %v2208 = vld [vmem:[%s9 + $0xd0] sm:$0xff]
  %v2209 = vld [vmem:[%s9 + $0xd8] sm:$0xff]
  %v2210 = vld [vmem:[%s9 + $0xe0] sm:$0xff]
  %v2211 = vld [vmem:[%s9 + $0xe8] sm:$0xff]
  %v2212 = vld [vmem:[%s9 + $0xf0] sm:$0xff]
  %v2213 = vld [vmem:[%s9 + $0xf8] sm:$0xff]
  %v2214 = vld [vmem:[%s15] sm:$0x3]
  %v2216 = vlaneseq
  %v2217 = vshrl.u32 %v2216, 7
  %v2218 = vsub.s32 0, %v2217
  %v2219 = vrot.slane %v2214, %v2218
  %v2220 = vlaneseq
  %v2221 = vshrl.u32 %v2220, 7
  %v2222 = vsub.s32 1, %v2221
  %v2223 = vrot.slane %v2214, %v2222
  %v2234 = vrot.slane %v2175, 7
  %v2235 = vsel %vm549, %v2234, %v2174
  %v2236 = vrot.slane %v2176, 6
  %v2237 = vsel %vm552, %v2236, %v2235
  %v2238 = vrot.slane %v2177, 5
  %v2239 = vsel %vm555, %v2238, %v2237
  %v2240 = vrot.slane %v2178, 4
  %v2241 = vsel %vm558, %v2240, %v2239
  %v2242 = vrot.slane %v2179, 3
  %v2243 = vsel %vm561, %v2242, %v2241
  %v2244 = vrot.slane %v2180, 2
  %v2245 = vsel %vm564, %v2244, %v2243
  %v2246 = vrot.slane %v2181, 1
  %v2247 = vsel %vm567, %v2246, %v2245
  %2249 = vmatprep.subr.mxu0 %v2183
  %2250 = vmatpush1.msra.mxu0 %v2182
  %2251 = vmatprep.subr.mxu0 %v2185
  %2252 = vmatpush1.msra.mxu0 %v2184
  %2253 = vmatprep.subr.mxu0 %v2187
  %2254 = vmatpush1.msra.mxu0 %v2186
  %2255 = vmatprep.subr.mxu0 %v2189
  %2256 = vmatpush1.msra.mxu0 %v2188
  %2257 = vmatprep.subr.mxu0 %v2191
  %2258 = vmatpush1.msra.mxu0 %v2190
  %2259 = vmatprep.subr.mxu0 %v2193
  %2260 = vmatpush1.msra.mxu0 %v2192
  %2261 = vmatprep.subr.mxu0 %v2195
  %2262 = vmatpush1.msra.mxu0 %v2194
  %2263 = vmatprep.subr.mxu0 %v2197
  %2264 = vmatpush1.msra.mxu0 %v2196
  %2265 = vmatprep.subr.mxu0 %v2199
  %2266 = vmatpush1.msra.mxu0 %v2198
  %2267 = vmatprep.subr.mxu0 %v2201
  %2268 = vmatpush1.msra.mxu0 %v2200
  %2269 = vmatprep.subr.mxu0 %v2203
  %2270 = vmatpush1.msra.mxu0 %v2202
  %2271 = vmatprep.subr.mxu0 %v2205
  %2272 = vmatpush1.msra.mxu0 %v2204
  %2273 = vmatprep.subr.mxu0 %v2207
  %2274 = vmatpush1.msra.mxu0 %v2206
  %2275 = vmatprep.subr.mxu0 %v2209
  %2276 = vmatpush1.msra.mxu0 %v2208
  %2277 = vmatprep.subr.mxu0 %v2211
  %2278 = vmatpush1.msra.mxu0 %v2210
  %2279 = vmatprep.subr.mxu0 %v2213
  %2280 = vmatpush1.msra.mxu0 %v2212
  %2281 = vmatprep.subr.mxu0 0.0
  %2282 = vmatpush1.msra.mxu0 0.0
  %2283 = vmatprep.subr.mxu0 0.0
  %2284 = vmatpush1.msra.mxu0 0.0
  %2285 = vmatprep.subr.mxu0 0.0
  %2286 = vmatpush1.msra.mxu0 0.0
  %2287 = vmatprep.subr.mxu0 0.0
  %2288 = vmatpush1.msra.mxu0 0.0
  %2289 = vmatprep.subr.mxu0 0.0
  %2290 = vmatpush1.msra.mxu0 0.0
  %2291 = vmatprep.subr.mxu0 0.0
  %2292 = vmatpush1.msra.mxu0 0.0
  %2293 = vmatprep.subr.mxu0 0.0
  %2294 = vmatpush1.msra.mxu0 0.0
  %2295 = vmatprep.subr.mxu0 0.0
  %2296 = vmatpush1.msra.mxu0 0.0
  %2297 = vmatprep.subr.mxu0 0.0
  %2298 = vmatpush1.msra.mxu0 0.0
  %2299 = vmatprep.subr.mxu0 0.0
  %2300 = vmatpush1.msra.mxu0 0.0
  %2301 = vmatprep.subr.mxu0 0.0
  %2302 = vmatpush1.msra.mxu0 0.0
  %2303 = vmatprep.subr.mxu0 0.0
  %2304 = vmatpush1.msra.mxu0 0.0
  %2305 = vmatprep.subr.mxu0 0.0
  %2306 = vmatpush1.msra.mxu0 0.0
  %2307 = vmatprep.subr.mxu0 0.0
  %2308 = vmatpush1.msra.mxu0 0.0
  %2309 = vmatprep.subr.mxu0 0.0
  %2310 = vmatpush1.msra.mxu0 0.0
  %2311 = vmatprep.subr.mxu0 0.0
  %2312 = vmatpush1.msra.mxu0 0.0
  %2313 = vmatprep.mubr.f32.mxu0 0.0
  %2314 = vmatmul.mubr.f32.gmra.mrb[0].mxu0 %v2247
  %v2315 = vpop.f32.mrb[0].mxu0
  %v2316 = vadd.f32 %v2219, %v2315
  %v2317 = vpop.f32.mrb[0].mxu0
  %v2318 = vadd.f32 %v2223, %v2317
  %2319 = vdwg.mxu0
  %v2320 = vmax.f32 %v2316, 0.0
  %v2321 = vmax.f32 %v2318, 0.0
  %v2322 = vld [vmem:[%s10] sm:$0xff]
  %v2323 = vld [vmem:[%s10 + $0x8] sm:$0xff]
  %v2324 = vld [vmem:[%s10 + $0x10] sm:$0xff]
  %v2325 = vld [vmem:[%s10 + $0x18] sm:$0xff]
  %v2326 = vld [vmem:[%s10 + $0x20] sm:$0xff]
  %v2327 = vld [vmem:[%s10 + $0x28] sm:$0xff]
  %v2328 = vld [vmem:[%s10 + $0x30] sm:$0xff]
  %v2329 = vld [vmem:[%s10 + $0x38] sm:$0xff]
  %v2330 = vld [vmem:[%s10 + $0x40] sm:$0xff]
  %v2331 = vld [vmem:[%s10 + $0x48] sm:$0xff]
  %v2332 = vld [vmem:[%s10 + $0x50] sm:$0xff]
  %v2333 = vld [vmem:[%s10 + $0x58] sm:$0xff]
  %v2334 = vld [vmem:[%s10 + $0x60] sm:$0xff]
  %v2335 = vld [vmem:[%s10 + $0x68] sm:$0xff]
  %v2336 = vld [vmem:[%s10 + $0x70] sm:$0xff]
  %v2337 = vld [vmem:[%s10 + $0x78] sm:$0xff]
  %v2338 = vld [vmem:[%s10 + $0x80] sm:$0xff]
  %v2339 = vld [vmem:[%s10 + $0x88] sm:$0xff]
  %v2340 = vld [vmem:[%s10 + $0x90] sm:$0xff]
  %v2341 = vld [vmem:[%s10 + $0x98] sm:$0xff]
  %v2342 = vld [vmem:[%s10 + $0xa0] sm:$0xff]
  %v2343 = vld [vmem:[%s10 + $0xa8] sm:$0xff]
  %v2344 = vld [vmem:[%s10 + $0xb0] sm:$0xff]
  %v2345 = vld [vmem:[%s10 + $0xb8] sm:$0xff]
  %v2346 = vld [vmem:[%s10 + $0xc0] sm:$0xff]
  %v2347 = vld [vmem:[%s10 + $0xc8] sm:$0xff]
  %v2348 = vld [vmem:[%s10 + $0xd0] sm:$0xff]
  %v2349 = vld [vmem:[%s10 + $0xd8] sm:$0xff]
  %v2350 = vld [vmem:[%s10 + $0xe0] sm:$0xff]
  %v2351 = vld [vmem:[%s10 + $0xe8] sm:$0xff]
  %v2352 = vld [vmem:[%s10 + $0xf0] sm:$0xff]
  %v2353 = vld [vmem:[%s10 + $0xf8] sm:$0xff]
  %v2354 = vld [vmem:[%s16 + $0x3] sm:$0x1]
  %v2355 = vlaneseq
  %v2356 = vshrl.u32 %v2355, 7
  %v2357 = vsub.s32 0, %v2356
  %v2358 = vrot.slane %v2354, %v2357
  %2359 = vmatprep.subr.mxu0 0.0
  %2360 = vmatpush1.msra.mxu0 %v2322
  %2361 = vmatprep.subr.mxu0 0.0
  %2362 = vmatpush1.msra.mxu0 %v2323
  %2363 = vmatprep.subr.mxu0 0.0
  %2364 = vmatpush1.msra.mxu0 %v2324
  %2365 = vmatprep.subr.mxu0 0.0
  %2366 = vmatpush1.msra.mxu0 %v2325
  %2367 = vmatprep.subr.mxu0 0.0
  %2368 = vmatpush1.msra.mxu0 %v2326
  %2369 = vmatprep.subr.mxu0 0.0
  %2370 = vmatpush1.msra.mxu0 %v2327
  %2371 = vmatprep.subr.mxu0 0.0
  %2372 = vmatpush1.msra.mxu0 %v2328
  %2373 = vmatprep.subr.mxu0 0.0
  %2374 = vmatpush1.msra.mxu0 %v2329
  %2375 = vmatprep.subr.mxu0 0.0
  %2376 = vmatpush1.msra.mxu0 %v2330
  %2377 = vmatprep.subr.mxu0 0.0
  %2378 = vmatpush1.msra.mxu0 %v2331
  %2379 = vmatprep.subr.mxu0 0.0
  %2380 = vmatpush1.msra.mxu0 %v2332
  %2381 = vmatprep.subr.mxu0 0.0
  %2382 = vmatpush1.msra.mxu0 %v2333
  %2383 = vmatprep.subr.mxu0 0.0
  %2384 = vmatpush1.msra.mxu0 %v2334
  %2385 = vmatprep.subr.mxu0 0.0
  %2386 = vmatpush1.msra.mxu0 %v2335
  %2387 = vmatprep.subr.mxu0 0.0
  %2388 = vmatpush1.msra.mxu0 %v2336
  %2389 = vmatprep.subr.mxu0 0.0
  %2390 = vmatpush1.msra.mxu0 %v2337
  %2391 = vmatprep.subr.mxu0 0.0
  %2392 = vmatpush1.msra.mxu0 %v2338
  %2393 = vmatprep.subr.mxu0 0.0
  %2394 = vmatpush1.msra.mxu0 %v2339
  %2395 = vmatprep.subr.mxu0 0.0
  %2396 = vmatpush1.msra.mxu0 %v2340
  %2397 = vmatprep.subr.mxu0 0.0
  %2398 = vmatpush1.msra.mxu0 %v2341
  %2399 = vmatprep.subr.mxu0 0.0
  %2400 = vmatpush1.msra.mxu0 %v2342
  %2401 = vmatprep.subr.mxu0 0.0
  %2402 = vmatpush1.msra.mxu0 %v2343
  %2403 = vmatprep.subr.mxu0 0.0
  %2404 = vmatpush1.msra.mxu0 %v2344
  %2405 = vmatprep.subr.mxu0 0.0
  %2406 = vmatpush1.msra.mxu0 %v2345
  %2407 = vmatprep.subr.mxu0 0.0
  %2408 = vmatpush1.msra.mxu0 %v2346
  %2409 = vmatprep.subr.mxu0 0.0
  %2410 = vmatpush1.msra.mxu0 %v2347
  %2411 = vmatprep.subr.mxu0 0.0
  %2412 = vmatpush1.msra.mxu0 %v2348
  %2413 = vmatprep.subr.mxu0 0.0
  %2414 = vmatpush1.msra.mxu0 %v2349
  %2415 = vmatprep.subr.mxu0 0.0
  %2416 = vmatpush1.msra.mxu0 %v2350
  %2417 = vmatprep.subr.mxu0 0.0
  %2418 = vmatpush1.msra.mxu0 %v2351
  %2419 = vmatprep.subr.mxu0 0.0
  %2420 = vmatpush1.msra.mxu0 %v2352
  %2421 = vmatprep.subr.mxu0 0.0
  %2422 = vmatpush1.msra.mxu0 %v2353
  %2423 = vmatprep.mubr.f32.mxu0 %v2321
  %2424 = vmatmul.mubr.f32.gmra.mrb[0].mxu0 %v2320
  %v2425 = vpop.f32.mrb[0].mxu0
  %v2426 = vadd.f32 %v2358, %v2425
  %v2427 = vpop.f32.mrb[0].mxu0
  %2428 = vdwg.mxu0
  %v2430 = vrot.slane %v2426, 1
  %v2431 = vrot.slane %v2426, 2
  %v2432 = vrot.slane %v2426, 3
  %v2433 = vrot.slane %v2426, 4
  %v2434 = vrot.slane %v2426, 5
  %v2435 = vrot.slane %v2426, 6
  %v2436 = vrot.slane %v2426, 7
  %v2445 = vadd.f32 %v2174, %v2426
  %v2446 = vadd.f32 %v2175, %v2430
  %v2447 = vadd.f32 %v2176, %v2431
  %v2448 = vadd.f32 %v2177, %v2432
  %v2449 = vadd.f32 %v2178, %v2433
  %v2450 = vadd.f32 %v2179, %v2434
  %v2451 = vadd.f32 %v2180, %v2435
  %v2452 = vadd.f32 %v2181, %v2436
  %v2453 = vld [vmem:[%s16 + $0x4] sm:$0x1]
  %v2454 = vld [vmem:[%s16 + $0x5] sm:$0x1]
  %v2463 = vrot.slane %v2446, 7
  %v2464 = vsel %vm549, %v2463, %v2445
  %v2465 = vrot.slane %v2447, 6
  %v2466 = vsel %vm552, %v2465, %v2464
  %v2467 = vrot.slane %v2448, 5
  %v2468 = vsel %vm555, %v2467, %v2466
  %v2469 = vrot.slane %v2449, 4
  %v2470 = vsel %vm558, %v2469, %v2468
  %v2471 = vrot.slane %v2450, 3
  %v2472 = vsel %vm561, %v2471, %v2470
  %v2473 = vrot.slane %v2451, 2
  %v2474 = vsel %vm564, %v2473, %v2472
  %v2475 = vrot.slane %v2452, 1
  %v2476 = vsel %vm567, %v2475, %v2474
  %2478 = vmatprep.subr.mxu0 0.0
  %2479 = vmatpush1.msra.mxu0 %v1747
  %2480 = vmatprep.subr.mxu0 0.0
  %2481 = vmatpush1.msra.mxu0 %v1748
  %2482 = vmatprep.subr.mxu0 0.0
  %2483 = vmatpush1.msra.mxu0 %v1749
  %2484 = vmatprep.subr.mxu0 0.0
  %2485 = vmatpush1.msra.mxu0 %v1750
  %2486 = vmatprep.subr.mxu0 0.0
  %2487 = vmatpush1.msra.mxu0 %v1751
  %2488 = vmatprep.subr.mxu0 0.0
  %2489 = vmatpush1.msra.mxu0 %v1752
  %2490 = vmatprep.subr.mxu0 0.0
  %2491 = vmatpush1.msra.mxu0 %v1753
  %2492 = vmatprep.subr.mxu0 0.0
  %2493 = vmatpush1.msra.mxu0 %v1754
  %2494 = vmatprep.subr.mxu0 0.0
  %2495 = vmatpush1.msra.mxu0 %v1755
  %2496 = vmatprep.subr.mxu0 0.0
  %2497 = vmatpush1.msra.mxu0 %v1756
  %2498 = vmatprep.subr.mxu0 0.0
  %2499 = vmatpush1.msra.mxu0 %v1757
  %2500 = vmatprep.subr.mxu0 0.0
  %2501 = vmatpush1.msra.mxu0 %v1758
  %2502 = vmatprep.subr.mxu0 0.0
  %2503 = vmatpush1.msra.mxu0 %v1759
  %2504 = vmatprep.subr.mxu0 0.0
  %2505 = vmatpush1.msra.mxu0 %v1760
  %2506 = vmatprep.subr.mxu0 0.0
  %2507 = vmatpush1.msra.mxu0 %v1761
  %2508 = vmatprep.subr.mxu0 0.0
  %2509 = vmatpush1.msra.mxu0 %v1762
  %2510 = vmatprep.subr.mxu0 0.0
  %2511 = vmatpush1.msra.mxu0 0.0
  %2512 = vmatprep.subr.mxu0 0.0
  %2513 = vmatpush1.msra.mxu0 0.0
  %2514 = vmatprep.subr.mxu0 0.0
  %2515 = vmatpush1.msra.mxu0 0.0
  %2516 = vmatprep.subr.mxu0 0.0
  %2517 = vmatpush1.msra.mxu0 0.0
  %2518 = vmatprep.subr.mxu0 0.0
  %2519 = vmatpush1.msra.mxu0 0.0
  %2520 = vmatprep.subr.mxu0 0.0
  %2521 = vmatpush1.msra.mxu0 0.0
  %2522 = vmatprep.subr.mxu0 0.0
  %2523 = vmatpush1.msra.mxu0 0.0
  %2524 = vmatprep.subr.mxu0 0.0
  %2525 = vmatpush1.msra.mxu0 0.0
  %2526 = vmatprep.subr.mxu0 0.0
  %2527 = vmatpush1.msra.mxu0 0.0
  %2528 = vmatprep.subr.mxu0 0.0
  %2529 = vmatpush1.msra.mxu0 0.0
  %2530 = vmatprep.subr.mxu0 0.0
  %2531 = vmatpush1.msra.mxu0 0.0
  %2532 = vmatprep.subr.mxu0 0.0
  %2533 = vmatpush1.msra.mxu0 0.0
  %2534 = vmatprep.subr.mxu0 0.0
  %2535 = vmatpush1.msra.mxu0 0.0
  %2536 = vmatprep.subr.mxu0 0.0
  %2537 = vmatpush1.msra.mxu0 0.0
  %2538 = vmatprep.subr.mxu0 0.0
  %2539 = vmatpush1.msra.mxu0 0.0
  %2540 = vmatprep.subr.mxu0 0.0
  %2541 = vmatpush1.msra.mxu0 0.0
  %2542 = vmatprep.mubr.f32.mxu0 0.0
  %2543 = vmatmul.mubr.f32.gmra.mrb[0].mxu0 %v2476
  %v2544 = vpop.f32.mrb[0].mxu0
  %v2545 = vadd.f32 0.0, %v2544
  %v2546 = vpop.f32.mrb[0].mxu0
  %2547 = vdwg.mxu0
  %v2549 = vsel %vm1857, %v2545, 0
  %2551 = vmatprep.subr.mxu0 0.0
  %2552 = vmatpush1.msra.mxu0 %v1863
  %2553 = vmatprep.subr.mxu0 0.0
  %2554 = vmatpush1.msra.mxu0 0.0
  %2555 = vmatprep.subr.mxu0 0.0
  %2556 = vmatpush1.msra.mxu0 0.0
  %2557 = vmatprep.subr.mxu0 0.0
  %2558 = vmatpush1.msra.mxu0 0.0
  %2559 = vmatprep.subr.mxu0 0.0
  %2560 = vmatpush1.msra.mxu0 0.0
  %2561 = vmatprep.subr.mxu0 0.0
  %2562 = vmatpush1.msra.mxu0 0.0
  %2563 = vmatprep.subr.mxu0 0.0
  %2564 = vmatpush1.msra.mxu0 0.0
  %2565 = vmatprep.subr.mxu0 0.0
  %2566 = vmatpush1.msra.mxu0 0.0
  %2567 = vmatprep.subr.mxu0 0.0
  %2568 = vmatpush1.msra.mxu0 0.0
  %2569 = vmatprep.subr.mxu0 0.0
  %2570 = vmatpush1.msra.mxu0 0.0
  %2571 = vmatprep.subr.mxu0 0.0
  %2572 = vmatpush1.msra.mxu0 0.0
  %2573 = vmatprep.subr.mxu0 0.0
  %2574 = vmatpush1.msra.mxu0 0.0
  %2575 = vmatprep.subr.mxu0 0.0
  %2576 = vmatpush1.msra.mxu0 0.0
  %2577 = vmatprep.subr.mxu0 0.0
  %2578 = vmatpush1.msra.mxu0 0.0
  %2579 = vmatprep.subr.mxu0 0.0
  %2580 = vmatpush1.msra.mxu0 0.0
  %2581 = vmatprep.subr.mxu0 0.0
  %2582 = vmatpush1.msra.mxu0 0.0
  %2583 = vmatprep.subr.mxu0 0.0
  %2584 = vmatpush1.msra.mxu0 0.0
  %2585 = vmatprep.subr.mxu0 0.0
  %2586 = vmatpush1.msra.mxu0 0.0
  %2587 = vmatprep.subr.mxu0 0.0
  %2588 = vmatpush1.msra.mxu0 0.0
  %2589 = vmatprep.subr.mxu0 0.0
  %2590 = vmatpush1.msra.mxu0 0.0
  %2591 = vmatprep.subr.mxu0 0.0
  %2592 = vmatpush1.msra.mxu0 0.0
  %2593 = vmatprep.subr.mxu0 0.0
  %2594 = vmatpush1.msra.mxu0 0.0
  %2595 = vmatprep.subr.mxu0 0.0
  %2596 = vmatpush1.msra.mxu0 0.0
  %2597 = vmatprep.subr.mxu0 0.0
  %2598 = vmatpush1.msra.mxu0 0.0
  %2599 = vmatprep.subr.mxu0 0.0
  %2600 = vmatpush1.msra.mxu0 0.0
  %2601 = vmatprep.subr.mxu0 0.0
  %2602 = vmatpush1.msra.mxu0 0.0
  %2603 = vmatprep.subr.mxu0 0.0
  %2604 = vmatpush1.msra.mxu0 0.0
  %2605 = vmatprep.subr.mxu0 0.0
  %2606 = vmatpush1.msra.mxu0 0.0
  %2607 = vmatprep.subr.mxu0 0.0
  %2608 = vmatpush1.msra.mxu0 0.0
  %2609 = vmatprep.subr.mxu0 0.0
  %2610 = vmatpush1.msra.mxu0 0.0
  %2611 = vmatprep.subr.mxu0 0.0
  %2612 = vmatpush1.msra.mxu0 0.0
  %2613 = vmatprep.subr.mxu0 0.0
  %2614 = vmatpush1.msra.mxu0 0.0
  %2615 = vmatprep.mubr.f32.mxu0 0.0
  %2616 = vmatmul.mubr.f32.gmra.mrb[0].mxu0 %v2549
  %v2617 = vpop.f32.mrb[0].mxu0
  %v2618 = vadd.f32 0.0, %v2617
  %v2619 = vpop.f32.mrb[0].mxu0
  %2620 = vdwg.mxu0
  %v2622 = vrot.slane %v2618, 1
  %v2623 = vrot.slane %v2618, 2
  %v2624 = vrot.slane %v2618, 3
  %v2625 = vrot.slane %v2618, 4
  %v2626 = vrot.slane %v2618, 5
  %v2627 = vrot.slane %v2618, 6
  %v2628 = vrot.slane %v2618, 7
  %v2637 = vsub.f32 %v2445, %v2618
  %v2638 = vsub.f32 %v2446, %v2622
  %v2639 = vsub.f32 %v2447, %v2623
  %v2640 = vsub.f32 %v2448, %v2624
  %v2641 = vsub.f32 %v2449, %v2625
  %v2642 = vsub.f32 %v2450, %v2626
  %v2643 = vsub.f32 %v2451, %v2627
  %v2644 = vsub.f32 %v2452, %v2628
  %v2645 = vmul.f32 %v2637, %v2637
  %v2646 = vmul.f32 %v2638, %v2638
  %v2647 = vmul.f32 %v2639, %v2639
  %v2648 = vmul.f32 %v2640, %v2640
  %v2649 = vmul.f32 %v2641, %v2641
  %v2650 = vmul.f32 %v2642, %v2642
  %v2651 = vmul.f32 %v2643, %v2643
  %v2652 = vmul.f32 %v2644, %v2644
  %v2661 = vrot.slane %v2646, 7
  %v2662 = vsel %vm549, %v2661, %v2645
  %v2663 = vrot.slane %v2647, 6
  %v2664 = vsel %vm552, %v2663, %v2662
  %v2665 = vrot.slane %v2648, 5
  %v2666 = vsel %vm555, %v2665, %v2664
  %v2667 = vrot.slane %v2649, 4
  %v2668 = vsel %vm558, %v2667, %v2666
  %v2669 = vrot.slane %v2650, 3
  %v2670 = vsel %vm561, %v2669, %v2668
  %v2671 = vrot.slane %v2651, 2
  %v2672 = vsel %vm564, %v2671, %v2670
  %v2673 = vrot.slane %v2652, 1
  %v2674 = vsel %vm567, %v2673, %v2672
  %2676 = vmatprep.subr.mxu0 0.0
  %2677 = vmatpush1.msra.mxu0 %v1747
  %2678 = vmatprep.subr.mxu0 0.0
  %2679 = vmatpush1.msra.mxu0 %v1748
  %2680 = vmatprep.subr.mxu0 0.0
  %2681 = vmatpush1.msra.mxu0 %v1749
  %2682 = vmatprep.subr.mxu0 0.0
  %2683 = vmatpush1.msra.mxu0 %v1750
  %2684 = vmatprep.subr.mxu0 0.0
  %2685 = vmatpush1.msra.mxu0 %v1751
  %2686 = vmatprep.subr.mxu0 0.0
  %2687 = vmatpush1.msra.mxu0 %v1752
  %2688 = vmatprep.subr.mxu0 0.0
  %2689 = vmatpush1.msra.mxu0 %v1753
  %2690 = vmatprep.subr.mxu0 0.0
  %2691 = vmatpush1.msra.mxu0 %v1754
  %2692 = vmatprep.subr.mxu0 0.0
  %2693 = vmatpush1.msra.mxu0 %v1755
  %2694 = vmatprep.subr.mxu0 0.0
  %2695 = vmatpush1.msra.mxu0 %v1756
  %2696 = vmatprep.subr.mxu0 0.0
  %2697 = vmatpush1.msra.mxu0 %v1757
  %2698 = vmatprep.subr.mxu0 0.0
  %2699 = vmatpush1.msra.mxu0 %v1758
  %2700 = vmatprep.subr.mxu0 0.0
  %2701 = vmatpush1.msra.mxu0 %v1759
  %2702 = vmatprep.subr.mxu0 0.0
  %2703 = vmatpush1.msra.mxu0 %v1760
  %2704 = vmatprep.subr.mxu0 0.0
  %2705 = vmatpush1.msra.mxu0 %v1761
  %2706 = vmatprep.subr.mxu0 0.0
  %2707 = vmatpush1.msra.mxu0 %v1762
  %2708 = vmatprep.subr.mxu0 0.0
  %2709 = vmatpush1.msra.mxu0 0.0
  %2710 = vmatprep.subr.mxu0 0.0
  %2711 = vmatpush1.msra.mxu0 0.0
  %2712 = vmatprep.subr.mxu0 0.0
  %2713 = vmatpush1.msra.mxu0 0.0
  %2714 = vmatprep.subr.mxu0 0.0
  %2715 = vmatpush1.msra.mxu0 0.0
  %2716 = vmatprep.subr.mxu0 0.0
  %2717 = vmatpush1.msra.mxu0 0.0
  %2718 = vmatprep.subr.mxu0 0.0
  %2719 = vmatpush1.msra.mxu0 0.0
  %2720 = vmatprep.subr.mxu0 0.0
  %2721 = vmatpush1.msra.mxu0 0.0
  %2722 = vmatprep.subr.mxu0 0.0
  %2723 = vmatpush1.msra.mxu0 0.0
  %2724 = vmatprep.subr.mxu0 0.0
  %2725 = vmatpush1.msra.mxu0 0.0
  %2726 = vmatprep.subr.mxu0 0.0
  %2727 = vmatpush1.msra.mxu0 0.0
  %2728 = vmatprep.subr.mxu0 0.0
  %2729 = vmatpush1.msra.mxu0 0.0
  %2730 = vmatprep.subr.mxu0 0.0
  %2731 = vmatpush1.msra.mxu0 0.0
  %2732 = vmatprep.subr.mxu0 0.0
  %2733 = vmatpush1.msra.mxu0 0.0
  %2734 = vmatprep.subr.mxu0 0.0
  %2735 = vmatpush1.msra.mxu0 0.0
  %2736 = vmatprep.subr.mxu0 0.0
  %2737 = vmatpush1.msra.mxu0 0.0
  %2738 = vmatprep.subr.mxu0 0.0
  %2739 = vmatpush1.msra.mxu0 0.0
  %2740 = vmatprep.mubr.f32.mxu0 0.0
  %2741 = vmatmul.mubr.f32.gmra.mrb[0].mxu0 %v2674
  %v2742 = vpop.f32.mrb[0].mxu0
  %v2743 = vadd.f32 1e-05, %v2742
  %v2744 = vpop.f32.mrb[0].mxu0
  %2745 = vdwg.mxu0
  %v2746 = vrsqrt.pop %v2743
  %v2748 = vsel %vm1857, %v2746, 0
  %2750 = vmatprep.subr.mxu0 0.0
  %2751 = vmatpush1.msra.mxu0 %v1863
  %2752 = vmatprep.subr.mxu0 0.0
  %2753 = vmatpush1.msra.mxu0 0.0
  %2754 = vmatprep.subr.mxu0 0.0
  %2755 = vmatpush1.msra.mxu0 0.0
  %2756 = vmatprep.subr.mxu0 0.0
  %2757 = vmatpush1.msra.mxu0 0.0
  %2758 = vmatprep.subr.mxu0 0.0
  %2759 = vmatpush1.msra.mxu0 0.0
  %2760 = vmatprep.subr.mxu0 0.0
  %2761 = vmatpush1.msra.mxu0 0.0
  %2762 = vmatprep.subr.mxu0 0.0
  %2763 = vmatpush1.msra.mxu0 0.0
  %2764 = vmatprep.subr.mxu0 0.0
  %2765 = vmatpush1.msra.mxu0 0.0
  %2766 = vmatprep.subr.mxu0 0.0
  %2767 = vmatpush1.msra.mxu0 0.0
  %2768 = vmatprep.subr.mxu0 0.0
  %2769 = vmatpush1.msra.mxu0 0.0
  %2770 = vmatprep.subr.mxu0 0.0
  %2771 = vmatpush1.msra.mxu0 0.0
  %2772 = vmatprep.subr.mxu0 0.0
  %2773 = vmatpush1.msra.mxu0 0.0
  %2774 = vmatprep.subr.mxu0 0.0
  %2775 = vmatpush1.msra.mxu0 0.0
  %2776 = vmatprep.subr.mxu0 0.0
  %2777 = vmatpush1.msra.mxu0 0.0
  %2778 = vmatprep.subr.mxu0 0.0
  %2779 = vmatpush1.msra.mxu0 0.0
  %2780 = vmatprep.subr.mxu0 0.0
  %2781 = vmatpush1.msra.mxu0 0.0
  %2782 = vmatprep.subr.mxu0 0.0
  %2783 = vmatpush1.msra.mxu0 0.0
  %2784 = vmatprep.subr.mxu0 0.0
  %2785 = vmatpush1.msra.mxu0 0.0
  %2786 = vmatprep.subr.mxu0 0.0
  %2787 = vmatpush1.msra.mxu0 0.0
  %2788 = vmatprep.subr.mxu0 0.0
  %2789 = vmatpush1.msra.mxu0 0.0
  %2790 = vmatprep.subr.mxu0 0.0
  %2791 = vmatpush1.msra.mxu0 0.0
  %2792 = vmatprep.subr.mxu0 0.0
  %2793 = vmatpush1.msra.mxu0 0.0
  %2794 = vmatprep.subr.mxu0 0.0
  %2795 = vmatpush1.msra.mxu0 0.0
  %2796 = vmatprep.subr.mxu0 0.0
  %2797 = vmatpush1.msra.mxu0 0.0
  %2798 = vmatprep.subr.mxu0 0.0
  %2799 = vmatpush1.msra.mxu0 0.0
  %2800 = vmatprep.subr.mxu0 0.0
  %2801 = vmatpush1.msra.mxu0 0.0
  %2802 = vmatprep.subr.mxu0 0.0
  %2803 = vmatpush1.msra.mxu0 0.0
  %2804 = vmatprep.subr.mxu0 0.0
  %2805 = vmatpush1.msra.mxu0 0.0
  %2806 = vmatprep.subr.mxu0 0.0
  %2807 = vmatpush1.msra.mxu0 0.0
  %2808 = vmatprep.subr.mxu0 0.0
  %2809 = vmatpush1.msra.mxu0 0.0
  %2810 = vmatprep.subr.mxu0 0.0
  %2811 = vmatpush1.msra.mxu0 0.0
  %2812 = vmatprep.subr.mxu0 0.0
  %2813 = vmatpush1.msra.mxu0 0.0
  %2814 = vmatprep.mubr.f32.mxu0 0.0
  %2815 = vmatmul.mubr.f32.gmra.mrb[0].mxu0 %v2748
  %v2816 = vpop.f32.mrb[0].mxu0
  %v2817 = vadd.f32 0.0, %v2816
  %v2818 = vpop.f32.mrb[0].mxu0
  %2819 = vdwg.mxu0
  %v2821 = vrot.slane %v2817, 1
  %v2822 = vrot.slane %v2817, 2
  %v2823 = vrot.slane %v2817, 3
  %v2824 = vrot.slane %v2817, 4
  %v2825 = vrot.slane %v2817, 5
  %v2826 = vrot.slane %v2817, 6
  %v2827 = vrot.slane %v2817, 7
  %v2836 = vmul.f32 %v2637, %v2817
  %v2837 = vmul.f32 %v2638, %v2821
  %v2838 = vmul.f32 %v2639, %v2822
  %v2839 = vmul.f32 %v2640, %v2823
  %v2840 = vmul.f32 %v2641, %v2824
  %v2841 = vmul.f32 %v2642, %v2825
  %v2842 = vmul.f32 %v2643, %v2826
  %v2843 = vmul.f32 %v2644, %v2827
  %v2844 = vlaneseq
  %v2845 = vshrl.u32 %v2844, 7
  %v2846 = vsub.s32 0, %v2845
  %v2847 = vrot.slane %v2453, %v2846
  %v2848 = vmul.f32 %v2836, %v2847
  %v2849 = vmul.f32 %v2837, %v2847
  %v2850 = vmul.f32 %v2838, %v2847
  %v2851 = vmul.f32 %v2839, %v2847
  %v2852 = vmul.f32 %v2840, %v2847
  %v2853 = vmul.f32 %v2841, %v2847
  %v2854 = vmul.f32 %v2842, %v2847
  %v2855 = vmul.f32 %v2843, %v2847
  %v2856 = vlaneseq
  %v2857 = vshrl.u32 %v2856, 7
  %v2858 = vsub.s32 0, %v2857
  %v2859 = vrot.slane %v2454, %v2858
  %v2860 = vadd.f32 %v2848, %v2859
  %v2861 = vadd.f32 %v2849, %v2859
  %v2862 = vadd.f32 %v2850, %v2859
  %v2863 = vadd.f32 %v2851, %v2859
  %v2864 = vadd.f32 %v2852, %v2859
  %v2865 = vadd.f32 %v2853, %v2859
  %v2866 = vadd.f32 %v2854, %v2859
  %v2867 = vadd.f32 %v2855, %v2859
  %v2868 = vld [vmem:[%s11] sm:$0xff]
  %v2869 = vld [vmem:[%s11 + $0x8] sm:$0xff]
  %v2870 = vld [vmem:[%s11 + $0x10] sm:$0xff]
  %v2871 = vld [vmem:[%s11 + $0x18] sm:$0xff]
  %v2872 = vld [vmem:[%s11 + $0x20] sm:$0xff]
  %v2873 = vld [vmem:[%s11 + $0x28] sm:$0xff]
  %v2874 = vld [vmem:[%s11 + $0x30] sm:$0xff]
  %v2875 = vld [vmem:[%s11 + $0x38] sm:$0xff]
  %v2876 = vld [vmem:[%s11 + $0x40] sm:$0xff]
  %v2877 = vld [vmem:[%s11 + $0x48] sm:$0xff]
  %v2878 = vld [vmem:[%s11 + $0x50] sm:$0xff]
  %v2879 = vld [vmem:[%s11 + $0x58] sm:$0xff]
  %v2880 = vld [vmem:[%s11 + $0x60] sm:$0xff]
  %v2881 = vld [vmem:[%s11 + $0x68] sm:$0xff]
  %v2882 = vld [vmem:[%s11 + $0x70] sm:$0xff]
  %v2883 = vld [vmem:[%s11 + $0x78] sm:$0xff]
  %v2884 = vld [vmem:[%s17] sm:$0x1]
  %v2886 = vlaneseq
  %v2887 = vshrl.u32 %v2886, 7
  %v2888 = vsub.s32 0, %v2887
  %v2889 = vrot.slane %v2884, %v2888
  %v2899 = vrot.slane %v2861, 7
  %v2900 = vsel %vm549, %v2899, %v2860
  %v2901 = vrot.slane %v2862, 6
  %v2902 = vsel %vm552, %v2901, %v2900
  %v2903 = vrot.slane %v2863, 5
  %v2904 = vsel %vm555, %v2903, %v2902
  %v2905 = vrot.slane %v2864, 4
  %v2906 = vsel %vm558, %v2905, %v2904
  %v2907 = vrot.slane %v2865, 3
  %v2908 = vsel %vm561, %v2907, %v2906
  %v2909 = vrot.slane %v2866, 2
  %v2910 = vsel %vm564, %v2909, %v2908
  %v2911 = vrot.slane %v2867, 1
  %v2912 = vsel %vm567, %v2911, %v2910
  %2914 = vmatprep.subr.mxu0 0.0
  %2915 = vmatpush1.msra.mxu0 %v2868
  %2916 = vmatprep.subr.mxu0 0.0
  %2917 = vmatpush1.msra.mxu0 %v2869
  %2918 = vmatprep.subr.mxu0 0.0
  %2919 = vmatpush1.msra.mxu0 %v2870
  %2920 = vmatprep.subr.mxu0 0.0
  %2921 = vmatpush1.msra.mxu0 %v2871
  %2922 = vmatprep.subr.mxu0 0.0
  %2923 = vmatpush1.msra.mxu0 %v2872
  %2924 = vmatprep.subr.mxu0 0.0
  %2925 = vmatpush1.msra.mxu0 %v2873
  %2926 = vmatprep.subr.mxu0 0.0
  %2927 = vmatpush1.msra.mxu0 %v2874
  %2928 = vmatprep.subr.mxu0 0.0
  %2929 = vmatpush1.msra.mxu0 %v2875
  %2930 = vmatprep.subr.mxu0 0.0
  %2931 = vmatpush1.msra.mxu0 %v2876
  %2932 = vmatprep.subr.mxu0 0.0
  %2933 = vmatpush1.msra.mxu0 %v2877
  %2934 = vmatprep.subr.mxu0 0.0
  %2935 = vmatpush1.msra.mxu0 %v2878
  %2936 = vmatprep.subr.mxu0 0.0
  %2937 = vmatpush1.msra.mxu0 %v2879
  %2938 = vmatprep.subr.mxu0 0.0
  %2939 = vmatpush1.msra.mxu0 %v2880
  %2940 = vmatprep.subr.mxu0 0.0
  %2941 = vmatpush1.msra.mxu0 %v2881
  %2942 = vmatprep.subr.mxu0 0.0
  %2943 = vmatpush1.msra.mxu0 %v2882
  %2944 = vmatprep.subr.mxu0 0.0
  %2945 = vmatpush1.msra.mxu0 %v2883
  %2946 = vmatprep.subr.mxu0 0.0
  %2947 = vmatpush1.msra.mxu0 0.0
  %2948 = vmatprep.subr.mxu0 0.0
  %2949 = vmatpush1.msra.mxu0 0.0
  %2950 = vmatprep.subr.mxu0 0.0
  %2951 = vmatpush1.msra.mxu0 0.0
  %2952 = vmatprep.subr.mxu0 0.0
  %2953 = vmatpush1.msra.mxu0 0.0
  %2954 = vmatprep.subr.mxu0 0.0
  %2955 = vmatpush1.msra.mxu0 0.0
  %2956 = vmatprep.subr.mxu0 0.0
  %2957 = vmatpush1.msra.mxu0 0.0
  %2958 = vmatprep.subr.mxu0 0.0
  %2959 = vmatpush1.msra.mxu0 0.0
  %2960 = vmatprep.subr.mxu0 0.0
  %2961 = vmatpush1.msra.mxu0 0.0
  %2962 = vmatprep.subr.mxu0 0.0
  %2963 = vmatpush1.msra.mxu0 0.0
  %2964 = vmatprep.subr.mxu0 0.0
  %2965 = vmatpush1.msra.mxu0 0.0
  %2966 = vmatprep.subr.mxu0 0.0
  %2967 = vmatpush1.msra.mxu0 0.0
  %2968 = vmatprep.subr.mxu0 0.0
  %2969 = vmatpush1.msra.mxu0 0.0
  %2970 = vmatprep.subr.mxu0 0.0
  %2971 = vmatpush1.msra.mxu0 0.0
  %2972 = vmatprep.subr.mxu0 0.0
  %2973 = vmatpush1.msra.mxu0 0.0
  %2974 = vmatprep.subr.mxu0 0.0
  %2975 = vmatpush1.msra.mxu0 0.0
  %2976 = vmatprep.subr.mxu0 0.0
  %2977 = vmatpush1.msra.mxu0 0.0
  %2978 = vmatprep.mubr.f32.mxu0 0.0
  %2979 = vmatmul.mubr.f32.gmra.mrb[0].mxu0 %v2912
  %v2980 = vpop.f32.mrb[0].mxu0
  %v2981 = vadd.f32 %v2889, %v2980
  %v2982 = vpop.f32.mrb[0].mxu0
  %2983 = vdwg.mxu0
  %2984 = vst [vmem:[%s18] sm:$0xff] %v2981
  // Predicated region
  $region74: #{simple_pfn_forward.1} parent=0 // pred_check
    _
  $region75: #{simple_pfn_forward.1} parent=0 // pred_check_branch
    %2986 = sbr.rel (0) target = $region77
  $region76: #{simple_pfn_forward.1} parent=0 // pred_region
    _
  $region77: #{simple_pfn_forward.1} parent=0 // pred_fallthru
    _
  // Predicated region
  $region78: #{simple_pfn_forward.1} parent=0 // pred_check
    _
  $region79: #{simple_pfn_forward.1} parent=0 // pred_check_branch
    %2988 = sbr.rel (0) target = $region81
  $region80: #{simple_pfn_forward.1} parent=0 // pred_region
    _
  $region81: #{simple_pfn_forward.1} parent=0 // pred_fallthru
    _

</llo_original>
